<compile_context>
chip_gen: v7x
topology: tpu7x:2x2x1
jax: 0.10.0
libtpu: 0.0.40
codegen_flags: <defaults>
</compile_context>

<pallas_src>
import jax
import jax.numpy as jnp
from jax import lax
from jax.experimental import pallas as pl
from jax.experimental.pallas import tpu as pltpu


# ---------------- Fused Pallas kernel ----------------

def _bottleneck_kernel(xp_ref, w1_ref, b1_ref, w2_ref, b2_ref, w3_ref, b3_ref, o_ref):
    # xp_ref: (BT, Hp, Wp, Cin) bf16 block of the reflect-padded input (Hp=H+2, Wp=W+2).
    bt, hp, wp, cin = xp_ref.shape
    p = w1_ref.shape[1]
    cout = w3_ref.shape[1]
    h, w = hp - 2, wp - 2
    f = bt * hp * wp

    # Flatten the padded frame: row j <-> (b, h_p, w_p) with j = (b*Hp + h_p)*Wp + w_p.
    x2d = xp_ref[...].reshape(f, cin)                                  # (F, Cin) bf16

    # ---- conv1 (1x1, BN scale folded) + bias + relu over the whole padded frame ----
    # (pointwise ops commute with reflect padding, so this frame IS the reflect-pad of y1)
    y1 = jnp.dot(x2d, w1_ref[...], preferred_element_type=jnp.float32)
    y1 = jnp.maximum(y1 + b1_ref[...], 0.0).astype(jnp.bfloat16)       # (F, P)

    # ---- conv2 (3x3, BN scale folded): row-offset taps (kh = -1/0/+1 <-> -Wp/0/+Wp) are
    #      lane-concatenated once (K = 3P); one matmul per kw shares that LHS; the +/-1
    #      column offsets are applied on the f32 partial outputs. ----
    taps = jnp.concatenate(
        [jnp.roll(y1, wp, axis=0), y1, jnp.roll(y1, -wp, axis=0)], axis=-1)  # (F, 3P)
    p0 = jnp.dot(taps, w2_ref[0], preferred_element_type=jnp.float32)  # kw = 0
    p1 = jnp.dot(taps, w2_ref[1], preferred_element_type=jnp.float32)  # kw = 1
    p2 = jnp.dot(taps, w2_ref[2], preferred_element_type=jnp.float32)  # kw = 2
    y2 = jnp.roll(p0, 1, axis=0) + p1 + jnp.roll(p2, -1, axis=0)       # (F, P) f32
    y2 = jnp.maximum(y2 + b2_ref[...], 0.0).astype(jnp.bfloat16)

    # ---- conv3 (1x1, BN scale folded) + bias + residual + relu ----
    # Output at frame index j corresponds to interior pixel (h_p-1, w_p-1), so the residual
    # is simply the (center-aligned) padded-input row j itself: no shift/relayout needed.
    y3 = jnp.dot(y2, w3_ref[...], preferred_element_type=jnp.float32)  # (F, Cout)
    y3 = jnp.maximum(y3 + b3_ref[...] + x2d.astype(jnp.float32), 0.0)  # Cin == Cout

    # Single interior slice (drop the pad border) and store.
    y4 = y3.reshape(bt, hp, wp, cout)[:, 1:1 + h, 1:1 + w, :]
    o_ref[...] = y4.astype(o_ref.dtype)


# ---------------- Tile selection ----------------

def _estimate_image_bytes(H, W, Cin, Cout, P):
    """Rough per-image VMEM footprint (double-buffered in/out blocks + temporaries)."""
    Hp, Wp = H + 2, W + 2
    f = Hp * Wp
    in_b = f * Cin * 2                       # bf16 input block
    out_b = H * W * Cout * 4                 # f32 output block
    tmp_b = f * (6 * P * 2 + 4 * P * 4 + 2 * Cout * 4)   # y1/rolls/taps + partials + y3
    return 2 * (in_b + out_b) + tmp_b


def _pick_batch_tile(N, per_image_bytes, budget_bytes, batch_tile=None):
    if batch_tile is not None:
        assert N % batch_tile == 0, "batch_tile must divide N"
        return batch_tile
    target = max(per_image_bytes, 4 << 20)                # ~1-4 MiB activation blocks
    cap = min(target, budget_bytes)
    divs = [d for d in range(1, N + 1) if N % d == 0]
    fit = [d for d in divs if d * per_image_bytes <= cap] or [1]
    multi = [d for d in fit if N // d >= 2]               # keep >=2 grid steps if possible
    return max(multi) if multi else max(fit)


# ---------------- Wrapper ----------------

def bottleneck_forward(x_nhwc, params, batch_tile=None,
                       vmem_limit_bytes=48 * 1024 * 1024):
    """Bottleneck forward (stride=1, downsample=None). x_nhwc: (N, H, W, Cin) f32."""
    N, H, W, Cin = x_nhwc.shape
    assert H >= 2 and W >= 2, "reflect padding requires H >= 2 and W >= 2"
    w1, (s1, b1), w2, (s2, b2), w3, (s3, b3) = params
    P = w1.shape[1]
    Cout = w3.shape[1]
    assert Cin == Cout, "downsample=None requires inplanes == planes * expansion"
    Hp, Wp = H + 2, W + 2

    # Reflect-pad once; ship activations as bf16 (halves the dominant HBM read).
    x_pad = jnp.pad(x_nhwc, ((0, 0), (1, 1), (1, 1), (0, 0)),
                    mode="reflect").astype(jnp.bfloat16)               # (N, Hp, Wp, Cin)

    # Fold BN scales into the conv weights; keep only the bias adds in-kernel.
    w1s = (w1 * s1.reshape(1, P)).astype(jnp.bfloat16)                 # (Cin, P)
    w2s = w2 * s2.reshape(1, 1, 1, P)                                  # (3, 3, P, P) HWIO
    # Per-kw RHS with rows ordered (kh, ci) to match the lane-concat [kh=0,1,2] of taps.
    w2dw = jnp.stack([w2s[:, kw].reshape(3 * P, P) for kw in range(3)],
                     axis=0).astype(jnp.bfloat16)                      # (3, 3P, P)
    w3s = (w3 * s3.reshape(1, Cout)).astype(jnp.bfloat16)              # (P, Cout)
    b1r = b1.reshape(1, P).astype(jnp.float32)
    b2r = b2.reshape(1, P).astype(jnp.float32)
    b3r = b3.reshape(1, Cout).astype(jnp.float32)

    per_image = _estimate_image_bytes(H, W, Cin, Cout, P)
    budget = int(0.75 * vmem_limit_bytes)
    assert per_image <= budget, (
        "image too large for whole-image tiling")  # TODO(synk): row-tiled manual-DMA path
    BT = _pick_batch_tile(N, per_image, budget, batch_tile)
    grid = (N // BT,)

    out = pl.pallas_call(
        _bottleneck_kernel,
        out_shape=jax.ShapeDtypeStruct((N, H, W, Cout), jnp.float32),
        grid=grid,
        in_specs=[
            pl.BlockSpec((BT, Hp, Wp, Cin), lambda b: (b, 0, 0, 0)),
            pl.BlockSpec((Cin, P), lambda b: (0, 0)),
            pl.BlockSpec((1, P), lambda b: (0, 0)),
            pl.BlockSpec((3, 3 * P, P), lambda b: (0, 0, 0)),
            pl.BlockSpec((1, P), lambda b: (0, 0)),
            pl.BlockSpec((P, Cout), lambda b: (0, 0)),
            pl.BlockSpec((1, Cout), lambda b: (0, 0)),
        ],
        out_specs=pl.BlockSpec((BT, H, W, Cout), lambda b: (b, 0, 0, 0)),
        compiler_params=pltpu.CompilerParams(
            dimension_semantics=("parallel",),
            vmem_limit_bytes=vmem_limit_bytes),
    )(x_pad, w1s, b1r, w2dw, b2r, w3s, b3r)

    return out


# ---------------- Deterministic parameter construction ----------------

def make_params(key, inplanes, planes, expansion=4, eps=1e-5):
    ks = jax.random.split(key, 15)
    w1 = 0.1 * jax.random.normal(ks[0], (inplanes, planes), jnp.float32)
    w2 = 0.1 * jax.random.normal(ks[1], (3, 3, planes, planes), jnp.float32)
    w3 = 0.1 * jax.random.normal(ks[2], (planes, planes * expansion), jnp.float32)

    def bn(kg, kb, km, kv, c):
        gamma = 1.0 + 0.1 * jax.random.normal(kg, (c,), jnp.float32)
        beta = 0.1 * jax.random.normal(kb, (c,), jnp.float32)
        mean = 0.1 * jax.random.normal(km, (c,), jnp.float32)
        var = jnp.abs(jax.random.normal(kv, (c,), jnp.float32)) + 0.5
        scale = gamma / jnp.sqrt(var + eps)
        bias = beta - mean * scale
        return scale.reshape(1, c), bias.reshape(1, c)

    bn1 = bn(ks[3], ks[4], ks[5], ks[6], planes)
    bn2 = bn(ks[7], ks[8], ks[9], ks[10], planes)
    bn3 = bn(ks[11], ks[12], ks[13], ks[14], planes * expansion)
    return w1, bn1, w2, bn2, w3, bn3


# ---------------- Pure-JAX reference (for verification) ----------------

def reference(x_nhwc, params):
    w1, (s1, b1), w2, (s2, b2), w3, (s3, b3) = params
    dn = ("NHWC", "HWIO", "NHWC")
    y = lax.conv_general_dilated(
        x_nhwc, w1.reshape(1, 1, *w1.shape), (1, 1), "VALID", dimension_numbers=dn)
    y = jnp.maximum(y * s1 + b1, 0.0)
    yp = jnp.pad(y, ((0, 0), (1, 1), (1, 1), (0, 0)), mode="reflect")
    y = lax.conv_general_dilated(yp, w2, (1, 1), "VALID", dimension_numbers=dn)
    y = jnp.maximum(y * s2 + b2, 0.0)
    y = lax.conv_general_dilated(
        y, w3.reshape(1, 1, *w3.shape), (1, 1), "VALID", dimension_numbers=dn)
    y = y * s3 + b3
    return jnp.maximum(y + x_nhwc, 0.0)


if __name__ == "__main__":
    key = jax.random.PRNGKey(0)
    N, H, W = 2, 16, 16
    planes, expansion = 32, 4
    inplanes = planes * expansion          # 128 -> residual path has no downsample

    kx, kp = jax.random.split(key)
    x_nchw = jax.random.normal(kx, (N, inplanes, H, W), jnp.float32)   # PyTorch NCHW
    x_nhwc = jnp.transpose(x_nchw, (0, 2, 3, 1))

    params = make_params(kp, inplanes, planes, expansion)

    out = bottleneck_forward(x_nhwc, params)
    out = jax.block_until_ready(out)

    ref = reference(x_nhwc, params)
    max_err = float(jnp.max(jnp.abs(out - ref)))
    # bf16 activations + bf16 matmul operands (f32 accumulation and f32 epilogue).
    assert jnp.allclose(out, ref, atol=5e-2, rtol=5e-2), f"max_err={max_err}"
    print("KERNEL_OK")
</pallas_src>

<mosaic_0001>
module attributes {stable_mosaic.version = 11 : i64} {
  func.func @_bottleneck_kernel(%arg0: i32, %arg1: memref<1x18x18x128xbf16, #tpu.memory_space<vmem>>, %arg2: memref<128x32xbf16, #tpu.memory_space<vmem>>, %arg3: memref<1x32xf32, #tpu.memory_space<vmem>>, %arg4: memref<3x96x32xbf16, #tpu.memory_space<vmem>>, %arg5: memref<1x32xf32, #tpu.memory_space<vmem>>, %arg6: memref<32x128xbf16, #tpu.memory_space<vmem>>, %arg7: memref<1x128xf32, #tpu.memory_space<vmem>>, %arg8: memref<1x16x16x128xf32, #tpu.memory_space<vmem>>) attributes {dimension_semantics = [#tpu.dimension_semantics<parallel>], iteration_bounds = array<i64: 2>, scalar_prefetch = 0 : i64, scratch_operands = 0 : i64, tpu.core_type = #tpu.core_type<tc>, window_params = [{transform_indices = @transform_0, window_bounds = array<i64: 1, 18, 18, 128>}, {pipeline_mode = #tpu.pipeline_mode<synchronous>, transform_indices = @transform_1, window_bounds = array<i64: 128, 32>}, {pipeline_mode = #tpu.pipeline_mode<synchronous>, transform_indices = @transform_2, window_bounds = array<i64: 1, 32>}, {pipeline_mode = #tpu.pipeline_mode<synchronous>, transform_indices = @transform_3, window_bounds = array<i64: 3, 96, 32>}, {pipeline_mode = #tpu.pipeline_mode<synchronous>, transform_indices = @transform_4, window_bounds = array<i64: 1, 32>}, {pipeline_mode = #tpu.pipeline_mode<synchronous>, transform_indices = @transform_5, window_bounds = array<i64: 32, 128>}, {pipeline_mode = #tpu.pipeline_mode<synchronous>, transform_indices = @transform_6, window_bounds = array<i64: 1, 128>}, {transform_indices = @transform_7, window_bounds = array<i64: 1, 16, 16, 128>}]} {
    %c0 = arith.constant 0 : index
    %c0_0 = arith.constant 0 : index
    %c0_1 = arith.constant 0 : index
    %c0_2 = arith.constant 0 : index
    %0 = vector.load %arg1[%c0, %c0_0, %c0_1, %c0_2] : memref<1x18x18x128xbf16, #tpu.memory_space<vmem>>, vector<1x18x18x128xbf16>
    %1 = vector.shape_cast %0 : vector<1x18x18x128xbf16> to vector<324x128xbf16>
    %c0_3 = arith.constant 0 : index
    %c0_4 = arith.constant 0 : index
    %2 = vector.load %arg2[%c0_3, %c0_4] : memref<128x32xbf16, #tpu.memory_space<vmem>>, vector<128x32xbf16>
    %cst = arith.constant dense<0.000000e+00> : vector<324x32xf32>
    %3 = tpu.matmul %1, %2, %cst {dimension_numbers = #tpu.dot_dimension_numbers<[1], [0], [0], [1], [0, 0, 1, 1], [], []>} : vector<324x128xbf16>, vector<128x32xbf16>, vector<324x32xf32> -> vector<324x32xf32>
    %c0_5 = arith.constant 0 : index
    %c0_6 = arith.constant 0 : index
    %4 = vector.load %arg3[%c0_5, %c0_6] : memref<1x32xf32, #tpu.memory_space<vmem>>, vector<1x32xf32>
    %5 = vector.broadcast %4 : vector<1x32xf32> to vector<324x32xf32>
    %6 = arith.addf %3, %5 : vector<324x32xf32>
    %cst_7 = arith.constant 0.000000e+00 : f32
    %7 = vector.broadcast %cst_7 : f32 to vector<324x32xf32>
    %8 = arith.maximumf %6, %7 : vector<324x32xf32>
    %9 = arith.truncf %8 : vector<324x32xf32> to vector<324x32xbf16>
    %10 = vector.extract_strided_slice %9 {offsets = [306, 0], sizes = [18, 32], strides = [1, 1]} : vector<324x32xbf16> to vector<18x32xbf16>
    %11 = vector.extract_strided_slice %9 {offsets = [0, 0], sizes = [306, 32], strides = [1, 1]} : vector<324x32xbf16> to vector<306x32xbf16>
    %12 = tpu.concatenate %10, %11 in 0 : vector<18x32xbf16>, vector<306x32xbf16> -> vector<324x32xbf16>
    %13 = vector.extract_strided_slice %9 {offsets = [18, 0], sizes = [306, 32], strides = [1, 1]} : vector<324x32xbf16> to vector<306x32xbf16>
    %14 = vector.extract_strided_slice %9 {offsets = [0, 0], sizes = [18, 32], strides = [1, 1]} : vector<324x32xbf16> to vector<18x32xbf16>
    %15 = tpu.concatenate %13, %14 in 0 : vector<306x32xbf16>, vector<18x32xbf16> -> vector<324x32xbf16>
    %16 = tpu.concatenate %12, %9, %15 in 1 : vector<324x32xbf16>, vector<324x32xbf16>, vector<324x32xbf16> -> vector<324x96xbf16>
    %c0_8 = arith.constant 0 : index
    %c0_9 = arith.constant 0 : index
    %c0_10 = arith.constant 0 : index
    %17 = vector.load %arg4[%c0_8, %c0_9, %c0_10] : memref<3x96x32xbf16, #tpu.memory_space<vmem>>, vector<1x96x32xbf16>
    %18 = vector.shape_cast %17 : vector<1x96x32xbf16> to vector<96x32xbf16>
    %cst_11 = arith.constant dense<0.000000e+00> : vector<324x32xf32>
    %19 = tpu.matmul %16, %18, %cst_11 {dimension_numbers = #tpu.dot_dimension_numbers<[1], [0], [0], [1], [0, 0, 1, 1], [], []>} : vector<324x96xbf16>, vector<96x32xbf16>, vector<324x32xf32> -> vector<324x32xf32>
    %c1 = arith.constant 1 : index
    %c0_12 = arith.constant 0 : index
    %c0_13 = arith.constant 0 : index
    %20 = vector.load %arg4[%c1, %c0_12, %c0_13] : memref<3x96x32xbf16, #tpu.memory_space<vmem>>, vector<1x96x32xbf16>
    %21 = vector.shape_cast %20 : vector<1x96x32xbf16> to vector<96x32xbf16>
    %cst_14 = arith.constant dense<0.000000e+00> : vector<324x32xf32>
    %22 = tpu.matmul %16, %21, %cst_14 {dimension_numbers = #tpu.dot_dimension_numbers<[1], [0], [0], [1], [0, 0, 1, 1], [], []>} : vector<324x96xbf16>, vector<96x32xbf16>, vector<324x32xf32> -> vector<324x32xf32>
    %c2 = arith.constant 2 : index
    %c0_15 = arith.constant 0 : index
    %c0_16 = arith.constant 0 : index
    %23 = vector.load %arg4[%c2, %c0_15, %c0_16] : memref<3x96x32xbf16, #tpu.memory_space<vmem>>, vector<1x96x32xbf16>
    %24 = vector.shape_cast %23 : vector<1x96x32xbf16> to vector<96x32xbf16>
    %cst_17 = arith.constant dense<0.000000e+00> : vector<324x32xf32>
    %25 = tpu.matmul %16, %24, %cst_17 {dimension_numbers = #tpu.dot_dimension_numbers<[1], [0], [0], [1], [0, 0, 1, 1], [], []>} : vector<324x96xbf16>, vector<96x32xbf16>, vector<324x32xf32> -> vector<324x32xf32>
    %26 = vector.extract_strided_slice %19 {offsets = [323, 0], sizes = [1, 32], strides = [1, 1]} : vector<324x32xf32> to vector<1x32xf32>
    %27 = vector.extract_strided_slice %19 {offsets = [0, 0], sizes = [323, 32], strides = [1, 1]} : vector<324x32xf32> to vector<323x32xf32>
    %28 = tpu.concatenate %26, %27 in 0 : vector<1x32xf32>, vector<323x32xf32> -> vector<324x32xf32>
    %29 = arith.addf %28, %22 : vector<324x32xf32>
    %30 = vector.extract_strided_slice %25 {offsets = [1, 0], sizes = [323, 32], strides = [1, 1]} : vector<324x32xf32> to vector<323x32xf32>
    %31 = vector.extract_strided_slice %25 {offsets = [0, 0], sizes = [1, 32], strides = [1, 1]} : vector<324x32xf32> to vector<1x32xf32>
    %32 = tpu.concatenate %30, %31 in 0 : vector<323x32xf32>, vector<1x32xf32> -> vector<324x32xf32>
    %33 = arith.addf %29, %32 : vector<324x32xf32>
    %c0_18 = arith.constant 0 : index
    %c0_19 = arith.constant 0 : index
    %34 = vector.load %arg5[%c0_18, %c0_19] : memref<1x32xf32, #tpu.memory_space<vmem>>, vector<1x32xf32>
    %35 = vector.broadcast %34 : vector<1x32xf32> to vector<324x32xf32>
    %36 = arith.addf %33, %35 : vector<324x32xf32>
    %cst_20 = arith.constant 0.000000e+00 : f32
    %37 = vector.broadcast %cst_20 : f32 to vector<324x32xf32>
    %38 = arith.maximumf %36, %37 : vector<324x32xf32>
    %39 = arith.truncf %38 : vector<324x32xf32> to vector<324x32xbf16>
    %c0_21 = arith.constant 0 : index
    %c0_22 = arith.constant 0 : index
    %40 = vector.load %arg6[%c0_21, %c0_22] : memref<32x128xbf16, #tpu.memory_space<vmem>>, vector<32x128xbf16>
    %cst_23 = arith.constant dense<0.000000e+00> : vector<324x128xf32>
    %41 = tpu.matmul %39, %40, %cst_23 {dimension_numbers = #tpu.dot_dimension_numbers<[1], [0], [0], [1], [0, 0, 1, 1], [], []>} : vector<324x32xbf16>, vector<32x128xbf16>, vector<324x128xf32> -> vector<324x128xf32>
    %c0_24 = arith.constant 0 : index
    %c0_25 = arith.constant 0 : index
    %42 = vector.load %arg7[%c0_24, %c0_25] : memref<1x128xf32, #tpu.memory_space<vmem>>, vector<1x128xf32>
    %43 = vector.broadcast %42 : vector<1x128xf32> to vector<324x128xf32>
    %44 = arith.addf %41, %43 : vector<324x128xf32>
    %45 = arith.extf %1 : vector<324x128xbf16> to vector<324x128xf32>
    %46 = arith.addf %44, %45 : vector<324x128xf32>
    %cst_26 = arith.constant 0.000000e+00 : f32
    %47 = vector.broadcast %cst_26 : f32 to vector<324x128xf32>
    %48 = arith.maximumf %46, %47 : vector<324x128xf32>
    %49 = vector.shape_cast %48 : vector<324x128xf32> to vector<1x18x18x128xf32>
    %50 = vector.extract_strided_slice %49 {offsets = [0, 1, 1, 0], sizes = [1, 16, 16, 128], strides = [1, 1, 1, 1]} : vector<1x18x18x128xf32> to vector<1x16x16x128xf32>
    %c0_27 = arith.constant 0 : index
    %c0_28 = arith.constant 0 : index
    %c0_29 = arith.constant 0 : index
    %c0_30 = arith.constant 0 : index
    %51 = vector.load %arg8[%c0_27, %c0_28, %c0_29, %c0_30] : memref<1x16x16x128xf32, #tpu.memory_space<vmem>>, vector<1x16x16x128xf32>
    tpu.vector_store %arg8[%c0_27, %c0_28, %c0_29, %c0_30], %50 {strides = array<i32>} : memref<1x16x16x128xf32, #tpu.memory_space<vmem>>, vector<1x16x16x128xf32>,
    return
  }
  func.func @transform_0(%arg0: i32) -> (i32, i32, i32, i32) {
    %c0_i32 = arith.constant 0 : i32
    %c0_i32_0 = arith.constant 0 : i32
    %c0_i32_1 = arith.constant 0 : i32
    %c0_i32_2 = arith.constant 0 : i32
    return %arg0, %c0_i32, %c0_i32_0, %c0_i32_1 : i32, i32, i32, i32
  }
  func.func @transform_1(%arg0: i32) -> (i32, i32) {
    %c0_i32 = arith.constant 0 : i32
    %c0_i32_0 = arith.constant 0 : i32
    %c0_i32_1 = arith.constant 0 : i32
    return %c0_i32, %c0_i32_0 : i32, i32
  }
  func.func @transform_2(%arg0: i32) -> (i32, i32) {
    %c0_i32 = arith.constant 0 : i32
    %c0_i32_0 = arith.constant 0 : i32
    %c0_i32_1 = arith.constant 0 : i32
    return %c0_i32, %c0_i32_0 : i32, i32
  }
  func.func @transform_3(%arg0: i32) -> (i32, i32, i32) {
    %c0_i32 = arith.constant 0 : i32
    %c0_i32_0 = arith.constant 0 : i32
    %c0_i32_1 = arith.constant 0 : i32
    %c0_i32_2 = arith.constant 0 : i32
    return %c0_i32, %c0_i32_0, %c0_i32_1 : i32, i32, i32
  }
  func.func @transform_4(%arg0: i32) -> (i32, i32) {
    %c0_i32 = arith.constant 0 : i32
    %c0_i32_0 = arith.constant 0 : i32
    %c0_i32_1 = arith.constant 0 : i32
    return %c0_i32, %c0_i32_0 : i32, i32
  }
  func.func @transform_5(%arg0: i32) -> (i32, i32) {
    %c0_i32 = arith.constant 0 : i32
    %c0_i32_0 = arith.constant 0 : i32
    %c0_i32_1 = arith.constant 0 : i32
    return %c0_i32, %c0_i32_0 : i32, i32
  }
  func.func @transform_6(%arg0: i32) -> (i32, i32) {
    %c0_i32 = arith.constant 0 : i32
    %c0_i32_0 = arith.constant 0 : i32
    %c0_i32_1 = arith.constant 0 : i32
    return %c0_i32, %c0_i32_0 : i32, i32
  }
  func.func @transform_7(%arg0: i32) -> (i32, i32, i32, i32) {
    %c0_i32 = arith.constant 0 : i32
    %c0_i32_0 = arith.constant 0 : i32
    %c0_i32_1 = arith.constant 0 : i32
    %c0_i32_2 = arith.constant 0 : i32
    return %arg0, %c0_i32, %c0_i32_0, %c0_i32_1 : i32, i32, i32, i32
  }
}

</mosaic_0001>

<llo_original>
// kernel: tpu_custom_call.1
$region0: #{tpu_custom_call.1}
  #allocation0 [shape = 'u32[]', space=smem, size = 0x4, offset = 0x4, fixed_abs, tag = 'smem constant byte address 0x4 - core index']
  #allocation1 [shape = 'u32[144,128]{1,0:T(1,128)}', space=vmem, size = 0x12000, scoped, tag = 'internal scratch']
  %s0 = inlined_call_operand.vmem [shape: bf16[2,18,18,128], index: 0, kind: input, shape index: {}]
  %s1 = inlined_call_operand.vmem [shape: bf16[128,32], index: 1, kind: input, shape index: {}]
  %s2 = inlined_call_operand.vmem [shape: f32[1,32], index: 2, kind: input, shape index: {}]
  %s3 = inlined_call_operand.vmem [shape: bf16[3,96,32], index: 3, kind: input, shape index: {}]
  %s4 = inlined_call_operand.vmem [shape: f32[1,32], index: 4, kind: input, shape index: {}]
  %s5 = inlined_call_operand.vmem [shape: bf16[32,128], index: 5, kind: input, shape index: {}]
  %s6 = inlined_call_operand.vmem [shape: f32[1,128], index: 6, kind: input, shape index: {}]
  %s7 = inlined_call_operand.hbm [shape: f32[2,16,16,128], index: 7, kind: output, shape index: {}]
  %s8 = sld [smem:[#allocation0]]
  $region61: #{tpu_custom_call.1} parent=0
    _
  %s10 = ssub.s32 1, %s8
  %s11 = scalar_select 0, %s10, %s8
  $region1: #{tpu_custom_call.1} parent=0
    #allocation2 [shape = 'u8[262144]{0}', space=vmem, size = 0x40000, scoped, tag = 'output window, operand 0']
    #allocation3 [shape = 's32[2]{0}', space=sflag, size = 0x8, scoped, tag = 'scoped memory for tpu_custom_call.1']
    %12 = vsyncpa [#allocation3], 0
    %s13 = scalar_lea.sflag [#allocation3], 1
    %14 = vsyncpa %s13, 0
    loop: start=0, step=1, limit=4
    $region2: #{tpu_custom_call.1} parent=1 // loop_pre_header
      _
    $region3: #{tpu_custom_call.1} parent=1 // loop_header
      %s16 = sphi 0, %s20
      %p17 = scmp.ge.s32.totalorder %s16, 4
      %s26 = sphi 0, %s28
      %s29 = sphi 0, %s26
      %s30 = sphi 0, %s29
      %s46 = sphi 0, %s30
      %s50 = sphi 0, %s50
      %s52 = sphi 0, %s50
      %s53 = sphi 0, %s52
      %s67 = sphi 0, %s53
      %s71 = sphi 0, %s71
      %s73 = sphi 0, %s71
      %s74 = sphi 0, %s73
      %s88 = sphi 0, %s74
      %s92 = sphi 0, %s92
      %s94 = sphi 0, %s92
      %s95 = sphi 0, %s94
      %s109 = sphi 0, %s95
      %s113 = sphi 0, %s113
      %s115 = sphi 0, %s113
      %s116 = sphi 0, %s115
      %s130 = sphi 0, %s116
      %s134 = sphi 0, %s134
      %s136 = sphi 0, %s134
      %s137 = sphi 0, %s136
      %s151 = sphi 0, %s137
      %s155 = sphi 0, %s155
      %s157 = sphi 0, %s155
      %s158 = sphi 0, %s157
      %s172 = sphi 0, %s158
      %s178 = sphi 0, %s180
      %s181 = sphi 0, %s178
      %s182 = sphi 0, %s181
      %s198 = sphi 0, %s182
    $region4: #{tpu_custom_call.1} parent=1 // loop_header_branch
      %19 = sbr.rel (%p17) target = $region8
    $region5: #{tpu_custom_call.1} parent=1 // loop_body
      %s21 = ssub.s32 %s16, 1
      %s22 = ssub.s32 %s16, 2
      %s23 = sadd.s32 %s16, 1
      %s24 = ssub.s32 %s16, %s23
      %p25 = scmp.eq.s32.totalorder %s24, 0
      %s27 = sadd.s32 %s26, 1
      %s28 = scalar_select %p25, %s26, %s27
      %p31 = pneg %p25
      %p32 = scmp.eq.s32.totalorder %s16, 1
      %p33 = por %p31, %p32
      %p34 = scmp.ne.s32.totalorder %s26, %s29
      %p35 = scmp.eq.s32.totalorder %s16, 0
      %p36 = por %p34, %p35
      %p37 = scmp.ne.s32.totalorder %s26, %s29
      %p38 = scmp.eq.s32.totalorder %s21, 1
      %p39 = por %p37, %p38
      %p40 = scmp.ne.s32.totalorder %s29, %s30
      %p41 = scmp.eq.s32.totalorder %s21, 0
      %p42 = por %p40, %p41
      %p43 = scmp.ne.s32.totalorder %s29, %s30
      %p44 = scmp.eq.s32.totalorder %s22, 1
      %p45 = por %p43, %p44
      %p47 = scmp.ne.s32.totalorder %s30, %s46
      %p48 = scmp.eq.s32.totalorder %s22, 0
      %p49 = por %p47, %p48
      %s51 = sadd.s32 %s50, 1
      %p54 = scmp.eq.s32.totalorder %s16, 1
      %p55 = scmp.ne.s32.totalorder %s50, %s52
      %p56 = scmp.eq.s32.totalorder %s16, 0
      %p57 = por %p55, %p56
      %p58 = scmp.ne.s32.totalorder %s50, %s52
      %p59 = scmp.eq.s32.totalorder %s21, 1
      %p60 = por %p58, %p59
      %p61 = scmp.ne.s32.totalorder %s52, %s53
      %p62 = scmp.eq.s32.totalorder %s21, 0
      %p63 = por %p61, %p62
      %p64 = scmp.ne.s32.totalorder %s52, %s53
      %p65 = scmp.eq.s32.totalorder %s22, 1
      %p66 = por %p64, %p65
      %p68 = scmp.ne.s32.totalorder %s53, %s67
      %p69 = scmp.eq.s32.totalorder %s22, 0
      %p70 = por %p68, %p69
      %s72 = sadd.s32 %s71, 1
      %p75 = scmp.eq.s32.totalorder %s16, 1
      %p76 = scmp.ne.s32.totalorder %s71, %s73
      %p77 = scmp.eq.s32.totalorder %s16, 0
      %p78 = por %p76, %p77
      %p79 = scmp.ne.s32.totalorder %s71, %s73
      %p80 = scmp.eq.s32.totalorder %s21, 1
      %p81 = por %p79, %p80
      %p82 = scmp.ne.s32.totalorder %s73, %s74
      %p83 = scmp.eq.s32.totalorder %s21, 0
      %p84 = por %p82, %p83
      %p85 = scmp.ne.s32.totalorder %s73, %s74
      %p86 = scmp.eq.s32.totalorder %s22, 1
      %p87 = por %p85, %p86
      %p89 = scmp.ne.s32.totalorder %s74, %s88
      %p90 = scmp.eq.s32.totalorder %s22, 0
      %p91 = por %p89, %p90
      %s93 = sadd.s32 %s92, 1
      %p96 = scmp.eq.s32.totalorder %s16, 1
      %p97 = scmp.ne.s32.totalorder %s92, %s94
      %p98 = scmp.eq.s32.totalorder %s16, 0
      %p99 = por %p97, %p98
      %p100 = scmp.ne.s32.totalorder %s92, %s94
      %p101 = scmp.eq.s32.totalorder %s21, 1
      %p102 = por %p100, %p101
      %p103 = scmp.ne.s32.totalorder %s94, %s95
      %p104 = scmp.eq.s32.totalorder %s21, 0
      %p105 = por %p103, %p104
      %p106 = scmp.ne.s32.totalorder %s94, %s95
      %p107 = scmp.eq.s32.totalorder %s22, 1
      %p108 = por %p106, %p107
      %p110 = scmp.ne.s32.totalorder %s95, %s109
      %p111 = scmp.eq.s32.totalorder %s22, 0
      %p112 = por %p110, %p111
      %s114 = sadd.s32 %s113, 1
      %p117 = scmp.eq.s32.totalorder %s16, 1
      %p118 = scmp.ne.s32.totalorder %s113, %s115
      %p119 = scmp.eq.s32.totalorder %s16, 0
      %p120 = por %p118, %p119
      %p121 = scmp.ne.s32.totalorder %s113, %s115
      %p122 = scmp.eq.s32.totalorder %s21, 1
      %p123 = por %p121, %p122
      %p124 = scmp.ne.s32.totalorder %s115, %s116
      %p125 = scmp.eq.s32.totalorder %s21, 0
      %p126 = por %p124, %p125
      %p127 = scmp.ne.s32.totalorder %s115, %s116
      %p128 = scmp.eq.s32.totalorder %s22, 1
      %p129 = por %p127, %p128
      %p131 = scmp.ne.s32.totalorder %s116, %s130
      %p132 = scmp.eq.s32.totalorder %s22, 0
      %p133 = por %p131, %p132
      %s135 = sadd.s32 %s134, 1
      %p138 = scmp.eq.s32.totalorder %s16, 1
      %p139 = scmp.ne.s32.totalorder %s134, %s136
      %p140 = scmp.eq.s32.totalorder %s16, 0
      %p141 = por %p139, %p140
      %p142 = scmp.ne.s32.totalorder %s134, %s136
      %p143 = scmp.eq.s32.totalorder %s21, 1
      %p144 = por %p142, %p143
      %p145 = scmp.ne.s32.totalorder %s136, %s137
      %p146 = scmp.eq.s32.totalorder %s21, 0
      %p147 = por %p145, %p146
      %p148 = scmp.ne.s32.totalorder %s136, %s137
      %p149 = scmp.eq.s32.totalorder %s22, 1
      %p150 = por %p148, %p149
      %p152 = scmp.ne.s32.totalorder %s137, %s151
      %p153 = scmp.eq.s32.totalorder %s22, 0
      %p154 = por %p152, %p153
      %s156 = sadd.s32 %s155, 1
      %p159 = scmp.eq.s32.totalorder %s16, 1
      %p160 = scmp.ne.s32.totalorder %s155, %s157
      %p161 = scmp.eq.s32.totalorder %s16, 0
      %p162 = por %p160, %p161
      %p163 = scmp.ne.s32.totalorder %s155, %s157
      %p164 = scmp.eq.s32.totalorder %s21, 1
      %p165 = por %p163, %p164
      %p166 = scmp.ne.s32.totalorder %s157, %s158
      %p167 = scmp.eq.s32.totalorder %s21, 0
      %p168 = por %p166, %p167
      %p169 = scmp.ne.s32.totalorder %s157, %s158
      %p170 = scmp.eq.s32.totalorder %s22, 1
      %p171 = por %p169, %p170
      %p173 = scmp.ne.s32.totalorder %s158, %s172
      %p174 = scmp.eq.s32.totalorder %s22, 0
      %p175 = por %p173, %p174
      %s176 = ssub.s32 %s16, %s23
      %p177 = scmp.eq.s32.totalorder %s176, 0
      %s179 = sadd.s32 %s178, 1
      %s180 = scalar_select %p177, %s178, %s179
      %p183 = pneg %p177
      %p184 = scmp.eq.s32.totalorder %s16, 1
      %p185 = por %p183, %p184
      %p186 = scmp.ne.s32.totalorder %s178, %s181
      %p187 = scmp.eq.s32.totalorder %s16, 0
      %p188 = por %p186, %p187
      %p189 = scmp.ne.s32.totalorder %s178, %s181
      %p190 = scmp.eq.s32.totalorder %s21, 1
      %p191 = por %p189, %p190
      %p192 = scmp.ne.s32.totalorder %s181, %s182
      %p193 = scmp.eq.s32.totalorder %s21, 0
      %p194 = por %p192, %p193
      %p195 = scmp.ne.s32.totalorder %s181, %s182
      %p196 = scmp.eq.s32.totalorder %s22, 1
      %p197 = por %p195, %p196
      %p199 = scmp.ne.s32.totalorder %s182, %s198
      %p200 = scmp.eq.s32.totalorder %s22, 0
      %p201 = por %p199, %p200
      %p202 = scmp.le.s32.totalorder 1, %s16
      %p203 = scmp.lt.s32.totalorder %s16, 3
      %p204 = pnand %p202, %p203
      %p205 = pneg %p204
      // Predicated region
      $region9: #{tpu_custom_call.1} parent=5 // pred_check
        _
      $region10: #{tpu_custom_call.1} parent=5 // pred_check_branch
        %207 = sbr.rel (%p204) target = $region12
      $region11: #{tpu_custom_call.1} parent=5 // pred_region
        %s208 = ssub.s32 %s16, 1
        // Predicated region
        $region13: #{tpu_custom_call.1} parent=11 // pred_check
          %p209 = pneg %p63
        $region14: #{tpu_custom_call.1} parent=11 // pred_check_branch
          %211 = sbr.rel (%p209) target = $region16
        $region15: #{tpu_custom_call.1} parent=11 // pred_region
          _
        $region16: #{tpu_custom_call.1} parent=11 // pred_fallthru
          _
        // Predicated region
        $region17: #{tpu_custom_call.1} parent=11 // pred_check
          %p212 = pneg %p84
        $region18: #{tpu_custom_call.1} parent=11 // pred_check_branch
          %214 = sbr.rel (%p212) target = $region20
        $region19: #{tpu_custom_call.1} parent=11 // pred_region
          _
        $region20: #{tpu_custom_call.1} parent=11 // pred_fallthru
          _
        // Predicated region
        $region21: #{tpu_custom_call.1} parent=11 // pred_check
          %p215 = pneg %p105
        $region22: #{tpu_custom_call.1} parent=11 // pred_check_branch
          %217 = sbr.rel (%p215) target = $region24
        $region23: #{tpu_custom_call.1} parent=11 // pred_region
          _
        $region24: #{tpu_custom_call.1} parent=11 // pred_fallthru
          _
        // Predicated region
        $region25: #{tpu_custom_call.1} parent=11 // pred_check
          %p218 = pneg %p126
        $region26: #{tpu_custom_call.1} parent=11 // pred_check_branch
          %220 = sbr.rel (%p218) target = $region28
        $region27: #{tpu_custom_call.1} parent=11 // pred_region
          _
        $region28: #{tpu_custom_call.1} parent=11 // pred_fallthru
          _
        // Predicated region
        $region29: #{tpu_custom_call.1} parent=11 // pred_check
          %p221 = pneg %p147
        $region30: #{tpu_custom_call.1} parent=11 // pred_check_branch
          %223 = sbr.rel (%p221) target = $region32
        $region31: #{tpu_custom_call.1} parent=11 // pred_region
          _
        $region32: #{tpu_custom_call.1} parent=11 // pred_fallthru
          _
        // Predicated region
        $region33: #{tpu_custom_call.1} parent=11 // pred_check
          %p224 = pneg %p168
        $region34: #{tpu_custom_call.1} parent=11 // pred_check_branch
          %226 = sbr.rel (%p224) target = $region36
        $region35: #{tpu_custom_call.1} parent=11 // pred_region
          _
        $region36: #{tpu_custom_call.1} parent=11 // pred_fallthru
          _
      $region12: #{tpu_custom_call.1} parent=5 // pred_fallthru
        _
      %p227 = scmp.lt.s32.totalorder %s16, 2
      // Predicated region
      $region37: #{tpu_custom_call.1} parent=5 // pred_check
        %p228 = pneg %p227
      $region38: #{tpu_custom_call.1} parent=5 // pred_check_branch
        %230 = sbr.rel (%p228) target = $region40
      $region39: #{tpu_custom_call.1} parent=5 // pred_region
        // Predicated region
        $region41: #{tpu_custom_call.1} parent=39 // pred_check
          %p231 = pneg %p36
        $region42: #{tpu_custom_call.1} parent=39 // pred_check_branch
          %233 = sbr.rel (%p231) target = $region44
        $region43: #{tpu_custom_call.1} parent=39 // pred_region
          %p234 = scmp.lt.s32.totalorder %s16, 1
          %s235 = scalar_select %p234, %s16, 1
          %s236 = smul.addr %s235, 54
          %s237 = smul.addr %s236, 4
          %s238 = scalar_lea.vmem %s0, %s237
        $region44: #{tpu_custom_call.1} parent=39 // pred_fallthru
          _
      $region40: #{tpu_custom_call.1} parent=5 // pred_fallthru
        _
      %p239 = scmp.le.s32.totalorder 1, %s16
      %p240 = scmp.lt.s32.totalorder %s16, 3
      %p241 = pnand %p239, %p240
      %p242 = pneg %p241
      // Predicated region
      $region45: #{tpu_custom_call.1} parent=5 // pred_check
        _
      $region46: #{tpu_custom_call.1} parent=5 // pred_check_branch
        %244 = sbr.rel (%p241) target = $region48
      $region47: #{tpu_custom_call.1} parent=5 // pred_region
        %s245 = ssub.s32 %s16, 1
        %p246 = scmp.lt.s32.totalorder %s21, 1
        %s247 = scalar_select %p246, %s21, 1
        %s248 = smul.addr %s247, 54
        %s249 = smul.addr %s248, 4
        %s250 = scalar_lea.vmem %s0, %s249
        %p251 = pneg %p42
        %p252 = pneg %p39
        %p253 = pneg %p63
        %p254 = pneg %p60
        %p255 = pneg %p84
        %p256 = pneg %p81
        %p257 = pneg %p105
        %p258 = pneg %p102
        %p259 = pneg %p126
        %p260 = pneg %p123
        %p261 = pneg %p147
        %p262 = pneg %p144
        %p263 = pneg %p168
        %p264 = pneg %p165
        %p265 = pneg %p194
        %p266 = pneg %p191
        %s267 = sand.u32 %s181, 1
        %s268 = scalar_lea.sflag [#allocation3], %s267
        %s269 = sand.u32 %s181, 1
        %s270 = smul.addr %s269, 256
        %s271 = scalar_lea.vmem [#allocation2], %s270
        %p272 = scmp.lt.s32.totalorder %s21, 1
        %s273 = scalar_select %p272, %s21, 1
        %s274 = smul.addr %s273, 54
        %s275 = smul.addr %s274, 4
        %s276 = scalar_lea.vmem %s0, %s275
        %v278 = vld [vmem:[%s276] sm:$0xf]
        %v279 = vld [vmem:[%s276 + $0x4] sm:$0xf]
        %v280 = vld [vmem:[%s276 + $0x8] sm:$0x1]
        %v281 = vld [vmem:[%s276 + $0xc] sm:$0xf]
        %v282 = vld [vmem:[%s276 + $0x10] sm:$0xf]
        %v283 = vld [vmem:[%s276 + $0x14] sm:$0x1]
        %v284 = vld [vmem:[%s276 + $0x18] sm:$0xf]
        %v285 = vld [vmem:[%s276 + $0x1c] sm:$0xf]
        %v286 = vld [vmem:[%s276 + $0x20] sm:$0x1]
        %v287 = vld [vmem:[%s276 + $0x24] sm:$0xf]
        %v288 = vld [vmem:[%s276 + $0x28] sm:$0xf]
        %v289 = vld [vmem:[%s276 + $0x2c] sm:$0x1]
        %v290 = vld [vmem:[%s276 + $0x30] sm:$0xf]
        %v291 = vld [vmem:[%s276 + $0x34] sm:$0xf]
        %v292 = vld [vmem:[%s276 + $0x38] sm:$0x1]
        %v293 = vld [vmem:[%s276 + $0x3c] sm:$0xf]
        %v294 = vld [vmem:[%s276 + $0x40] sm:$0xf]
        %v295 = vld [vmem:[%s276 + $0x44] sm:$0x1]
        %v296 = vld [vmem:[%s276 + $0x48] sm:$0xf]
        %v297 = vld [vmem:[%s276 + $0x4c] sm:$0xf]
        %v298 = vld [vmem:[%s276 + $0x50] sm:$0x1]
        %v299 = vld [vmem:[%s276 + $0x54] sm:$0xf]
        %v300 = vld [vmem:[%s276 + $0x58] sm:$0xf]
        %v301 = vld [vmem:[%s276 + $0x5c] sm:$0x1]
        %v302 = vld [vmem:[%s276 + $0x60] sm:$0xf]
        %v303 = vld [vmem:[%s276 + $0x64] sm:$0xf]
        %v304 = vld [vmem:[%s276 + $0x68] sm:$0x1]
        %v305 = vld [vmem:[%s276 + $0x6c] sm:$0xf]
        %v306 = vld [vmem:[%s276 + $0x70] sm:$0xf]
        %v307 = vld [vmem:[%s276 + $0x74] sm:$0x1]
        %v308 = vld [vmem:[%s276 + $0x78] sm:$0xf]
        %v309 = vld [vmem:[%s276 + $0x7c] sm:$0xf]
        %v310 = vld [vmem:[%s276 + $0x80] sm:$0x1]
        %v311 = vld [vmem:[%s276 + $0x84] sm:$0xf]
        %v312 = vld [vmem:[%s276 + $0x88] sm:$0xf]
        %v313 = vld [vmem:[%s276 + $0x8c] sm:$0x1]
        %v314 = vld [vmem:[%s276 + $0x90] sm:$0xf]
        %v315 = vld [vmem:[%s276 + $0x94] sm:$0xf]
        %v316 = vld [vmem:[%s276 + $0x98] sm:$0x1]
        %v317 = vld [vmem:[%s276 + $0x9c] sm:$0xf]
        %v318 = vld [vmem:[%s276 + $0xa0] sm:$0xf]
        %v319 = vld [vmem:[%s276 + $0xa4] sm:$0x1]
        %v320 = vld [vmem:[%s276 + $0xa8] sm:$0xf]
        %v321 = vld [vmem:[%s276 + $0xac] sm:$0xf]
        %v322 = vld [vmem:[%s276 + $0xb0] sm:$0x1]
        %v323 = vld [vmem:[%s276 + $0xb4] sm:$0xf]
        %v324 = vld [vmem:[%s276 + $0xb8] sm:$0xf]
        %v325 = vld [vmem:[%s276 + $0xbc] sm:$0x1]
        %v326 = vld [vmem:[%s276 + $0xc0] sm:$0xf]
        %v327 = vld [vmem:[%s276 + $0xc4] sm:$0xf]
        %v328 = vld [vmem:[%s276 + $0xc8] sm:$0x1]
        %v329 = vld [vmem:[%s276 + $0xcc] sm:$0xf]
        %v330 = vld [vmem:[%s276 + $0xd0] sm:$0xf]
        %v331 = vld [vmem:[%s276 + $0xd4] sm:$0x1]
        %v387 = vunpack.c.l.s4 1966171168
        %v388 = vunpack.c.0.s8 %v387
        %v389 = vlaneseq
        %v390 = vshrl.u32 %v389, 7
        %v391 = vsub.s32 %v388, %v390
        %v392 = vrot.slane %v278, %v391
        %v393 = vcombine.high %v392, %v392
        %v395 = vunpack.c.l.s4 1966171168
        %v396 = vunpack.c.0.s8 %v395
        %v397 = vlaneseq
        %v398 = vshrl.u32 %v397, 7
        %v399 = vsub.s32 %v396, %v398
        %v400 = vrot.slane %v392, %v399
        %v402 = vunpack.c.l.s4 1966171168
        %v403 = vunpack.c.0.s8 %v402
        %v404 = vlaneseq
        %v405 = vshrl.u32 %v404, 7
        %v406 = vsub.s32 %v403, %v405
        %v407 = vrot.slane %v393, %v406
        %v408 = vcombine.high %v400, %v400
        %v409 = vcombine.high %v407, %v407
        %v411 = vunpack.c.l.s4 1966171168
        %v412 = vunpack.c.0.s8 %v411
        %v413 = vlaneseq
        %v414 = vshrl.u32 %v413, 7
        %v415 = vsub.s32 %v412, %v414
        %v416 = vrot.slane %v279, %v415
        %v417 = vcombine.high %v416, %v416
        %v419 = vunpack.c.l.s4 1966171168
        %v420 = vunpack.c.0.s8 %v419
        %v421 = vlaneseq
        %v422 = vshrl.u32 %v421, 7
        %v423 = vsub.s32 %v420, %v422
        %v424 = vrot.slane %v416, %v423
        %v426 = vunpack.c.l.s4 1966171168
        %v427 = vunpack.c.0.s8 %v426
        %v428 = vlaneseq
        %v429 = vshrl.u32 %v428, 7
        %v430 = vsub.s32 %v427, %v429
        %v431 = vrot.slane %v417, %v430
        %v432 = vcombine.high %v424, %v424
        %v433 = vcombine.high %v431, %v431
        %v435 = vunpack.c.l.s4 1966171168
        %v436 = vunpack.c.0.s8 %v435
        %v437 = vlaneseq
        %v438 = vshrl.u32 %v437, 7
        %v439 = vsub.s32 %v436, %v438
        %v440 = vrot.slane %v280, %v439
        %v442 = vunpack.c.l.s4 1966171168
        %v443 = vunpack.c.0.s8 %v442
        %v444 = vlaneseq
        %v445 = vshrl.u32 %v444, 7
        %v446 = vsub.s32 %v443, %v445
        %v447 = vrot.slane %v440, %v446
        %v449 = vunpack.c.l.s4 1966171168
        %v450 = vunpack.c.0.s8 %v449
        %v451 = vlaneseq
        %v452 = vshrl.u32 %v451, 7
        %v453 = vsub.s32 %v450, %v452
        %v454 = vrot.slane %v281, %v453
        %v455 = vcombine.high %v454, %v454
        %v457 = vunpack.c.l.s4 1966171168
        %v458 = vunpack.c.0.s8 %v457
        %v459 = vlaneseq
        %v460 = vshrl.u32 %v459, 7
        %v461 = vsub.s32 %v458, %v460
        %v462 = vrot.slane %v454, %v461
        %v464 = vunpack.c.l.s4 1966171168
        %v465 = vunpack.c.0.s8 %v464
        %v466 = vlaneseq
        %v467 = vshrl.u32 %v466, 7
        %v468 = vsub.s32 %v465, %v467
        %v469 = vrot.slane %v455, %v468
        %v470 = vcombine.high %v462, %v462
        %v471 = vcombine.high %v469, %v469
        %v473 = vunpack.c.l.s4 1966171168
        %v474 = vunpack.c.0.s8 %v473
        %v475 = vlaneseq
        %v476 = vshrl.u32 %v475, 7
        %v477 = vsub.s32 %v474, %v476
        %v478 = vrot.slane %v282, %v477
        %v479 = vcombine.high %v478, %v478
        %v481 = vunpack.c.l.s4 1966171168
        %v482 = vunpack.c.0.s8 %v481
        %v483 = vlaneseq
        %v484 = vshrl.u32 %v483, 7
        %v485 = vsub.s32 %v482, %v484
        %v486 = vrot.slane %v478, %v485
        %v488 = vunpack.c.l.s4 1966171168
        %v489 = vunpack.c.0.s8 %v488
        %v490 = vlaneseq
        %v491 = vshrl.u32 %v490, 7
        %v492 = vsub.s32 %v489, %v491
        %v493 = vrot.slane %v479, %v492
        %v494 = vcombine.high %v486, %v486
        %v495 = vcombine.high %v493, %v493
        %v497 = vunpack.c.l.s4 1966171168
        %v498 = vunpack.c.0.s8 %v497
        %v499 = vlaneseq
        %v500 = vshrl.u32 %v499, 7
        %v501 = vsub.s32 %v498, %v500
        %v502 = vrot.slane %v283, %v501
        %v504 = vunpack.c.l.s4 1966171168
        %v505 = vunpack.c.0.s8 %v504
        %v506 = vlaneseq
        %v507 = vshrl.u32 %v506, 7
        %v508 = vsub.s32 %v505, %v507
        %v509 = vrot.slane %v502, %v508
        %v511 = vunpack.c.l.s4 1966171168
        %v512 = vunpack.c.0.s8 %v511
        %v513 = vlaneseq
        %v514 = vshrl.u32 %v513, 7
        %v515 = vsub.s32 %v512, %v514
        %v516 = vrot.slane %v284, %v515
        %v517 = vcombine.high %v516, %v516
        %v519 = vunpack.c.l.s4 1966171168
        %v520 = vunpack.c.0.s8 %v519
        %v521 = vlaneseq
        %v522 = vshrl.u32 %v521, 7
        %v523 = vsub.s32 %v520, %v522
        %v524 = vrot.slane %v516, %v523
        %v526 = vunpack.c.l.s4 1966171168
        %v527 = vunpack.c.0.s8 %v526
        %v528 = vlaneseq
        %v529 = vshrl.u32 %v528, 7
        %v530 = vsub.s32 %v527, %v529
        %v531 = vrot.slane %v517, %v530
        %v532 = vcombine.high %v524, %v524
        %v533 = vcombine.high %v531, %v531
        %v535 = vunpack.c.l.s4 1966171168
        %v536 = vunpack.c.0.s8 %v535
        %v537 = vlaneseq
        %v538 = vshrl.u32 %v537, 7
        %v539 = vsub.s32 %v536, %v538
        %v540 = vrot.slane %v285, %v539
        %v541 = vcombine.high %v540, %v540
        %v543 = vunpack.c.l.s4 1966171168
        %v544 = vunpack.c.0.s8 %v543
        %v545 = vlaneseq
        %v546 = vshrl.u32 %v545, 7
        %v547 = vsub.s32 %v544, %v546
        %v548 = vrot.slane %v540, %v547
        %v550 = vunpack.c.l.s4 1966171168
        %v551 = vunpack.c.0.s8 %v550
        %v552 = vlaneseq
        %v553 = vshrl.u32 %v552, 7
        %v554 = vsub.s32 %v551, %v553
        %v555 = vrot.slane %v541, %v554
        %v556 = vcombine.high %v548, %v548
        %v557 = vcombine.high %v555, %v555
        %v559 = vunpack.c.l.s4 1966171168
        %v560 = vunpack.c.0.s8 %v559
        %v561 = vlaneseq
        %v562 = vshrl.u32 %v561, 7
        %v563 = vsub.s32 %v560, %v562
        %v564 = vrot.slane %v286, %v563
        %v566 = vunpack.c.l.s4 1966171168
        %v567 = vunpack.c.0.s8 %v566
        %v568 = vlaneseq
        %v569 = vshrl.u32 %v568, 7
        %v570 = vsub.s32 %v567, %v569
        %v571 = vrot.slane %v564, %v570
        %v573 = vunpack.c.l.s4 1966171168
        %v574 = vunpack.c.0.s8 %v573
        %v575 = vlaneseq
        %v576 = vshrl.u32 %v575, 7
        %v577 = vsub.s32 %v574, %v576
        %v578 = vrot.slane %v287, %v577
        %v579 = vcombine.high %v578, %v578
        %v581 = vunpack.c.l.s4 1966171168
        %v582 = vunpack.c.0.s8 %v581
        %v583 = vlaneseq
        %v584 = vshrl.u32 %v583, 7
        %v585 = vsub.s32 %v582, %v584
        %v586 = vrot.slane %v578, %v585
        %v588 = vunpack.c.l.s4 1966171168
        %v589 = vunpack.c.0.s8 %v588
        %v590 = vlaneseq
        %v591 = vshrl.u32 %v590, 7
        %v592 = vsub.s32 %v589, %v591
        %v593 = vrot.slane %v579, %v592
        %v594 = vcombine.high %v586, %v586
        %v595 = vcombine.high %v593, %v593
        %v597 = vunpack.c.l.s4 1966171168
        %v598 = vunpack.c.0.s8 %v597
        %v599 = vlaneseq
        %v600 = vshrl.u32 %v599, 7
        %v601 = vsub.s32 %v598, %v600
        %v602 = vrot.slane %v288, %v601
        %v603 = vcombine.high %v602, %v602
        %v605 = vunpack.c.l.s4 1966171168
        %v606 = vunpack.c.0.s8 %v605
        %v607 = vlaneseq
        %v608 = vshrl.u32 %v607, 7
        %v609 = vsub.s32 %v606, %v608
        %v610 = vrot.slane %v602, %v609
        %v612 = vunpack.c.l.s4 1966171168
        %v613 = vunpack.c.0.s8 %v612
        %v614 = vlaneseq
        %v615 = vshrl.u32 %v614, 7
        %v616 = vsub.s32 %v613, %v615
        %v617 = vrot.slane %v603, %v616
        %v618 = vcombine.high %v610, %v610
        %v619 = vcombine.high %v617, %v617
        %v621 = vunpack.c.l.s4 1966171168
        %v622 = vunpack.c.0.s8 %v621
        %v623 = vlaneseq
        %v624 = vshrl.u32 %v623, 7
        %v625 = vsub.s32 %v622, %v624
        %v626 = vrot.slane %v289, %v625
        %v628 = vunpack.c.l.s4 1966171168
        %v629 = vunpack.c.0.s8 %v628
        %v630 = vlaneseq
        %v631 = vshrl.u32 %v630, 7
        %v632 = vsub.s32 %v629, %v631
        %v633 = vrot.slane %v626, %v632
        %v635 = vunpack.c.l.s4 1966171168
        %v636 = vunpack.c.0.s8 %v635
        %v637 = vlaneseq
        %v638 = vshrl.u32 %v637, 7
        %v639 = vsub.s32 %v636, %v638
        %v640 = vrot.slane %v290, %v639
        %v641 = vcombine.high %v640, %v640
        %v643 = vunpack.c.l.s4 1966171168
        %v644 = vunpack.c.0.s8 %v643
        %v645 = vlaneseq
        %v646 = vshrl.u32 %v645, 7
        %v647 = vsub.s32 %v644, %v646
        %v648 = vrot.slane %v640, %v647
        %v650 = vunpack.c.l.s4 1966171168
        %v651 = vunpack.c.0.s8 %v650
        %v652 = vlaneseq
        %v653 = vshrl.u32 %v652, 7
        %v654 = vsub.s32 %v651, %v653
        %v655 = vrot.slane %v641, %v654
        %v656 = vcombine.high %v648, %v648
        %v657 = vcombine.high %v655, %v655
        %v659 = vunpack.c.l.s4 1966171168
        %v660 = vunpack.c.0.s8 %v659
        %v661 = vlaneseq
        %v662 = vshrl.u32 %v661, 7
        %v663 = vsub.s32 %v660, %v662
        %v664 = vrot.slane %v291, %v663
        %v665 = vcombine.high %v664, %v664
        %v667 = vunpack.c.l.s4 1966171168
        %v668 = vunpack.c.0.s8 %v667
        %v669 = vlaneseq
        %v670 = vshrl.u32 %v669, 7
        %v671 = vsub.s32 %v668, %v670
        %v672 = vrot.slane %v664, %v671
        %v674 = vunpack.c.l.s4 1966171168
        %v675 = vunpack.c.0.s8 %v674
        %v676 = vlaneseq
        %v677 = vshrl.u32 %v676, 7
        %v678 = vsub.s32 %v675, %v677
        %v679 = vrot.slane %v665, %v678
        %v680 = vcombine.high %v672, %v672
        %v681 = vcombine.high %v679, %v679
        %v683 = vunpack.c.l.s4 1966171168
        %v684 = vunpack.c.0.s8 %v683
        %v685 = vlaneseq
        %v686 = vshrl.u32 %v685, 7
        %v687 = vsub.s32 %v684, %v686
        %v688 = vrot.slane %v292, %v687
        %v690 = vunpack.c.l.s4 1966171168
        %v691 = vunpack.c.0.s8 %v690
        %v692 = vlaneseq
        %v693 = vshrl.u32 %v692, 7
        %v694 = vsub.s32 %v691, %v693
        %v695 = vrot.slane %v688, %v694
        %v697 = vunpack.c.l.s4 1966171168
        %v698 = vunpack.c.0.s8 %v697
        %v699 = vlaneseq
        %v700 = vshrl.u32 %v699, 7
        %v701 = vsub.s32 %v698, %v700
        %v702 = vrot.slane %v293, %v701
        %v703 = vcombine.high %v702, %v702
        %v705 = vunpack.c.l.s4 1966171168
        %v706 = vunpack.c.0.s8 %v705
        %v707 = vlaneseq
        %v708 = vshrl.u32 %v707, 7
        %v709 = vsub.s32 %v706, %v708
        %v710 = vrot.slane %v702, %v709
        %v712 = vunpack.c.l.s4 1966171168
        %v713 = vunpack.c.0.s8 %v712
        %v714 = vlaneseq
        %v715 = vshrl.u32 %v714, 7
        %v716 = vsub.s32 %v713, %v715
        %v717 = vrot.slane %v703, %v716
        %v718 = vcombine.high %v710, %v710
        %v719 = vcombine.high %v717, %v717
        %v721 = vunpack.c.l.s4 1966171168
        %v722 = vunpack.c.0.s8 %v721
        %v723 = vlaneseq
        %v724 = vshrl.u32 %v723, 7
        %v725 = vsub.s32 %v722, %v724
        %v726 = vrot.slane %v294, %v725
        %v727 = vcombine.high %v726, %v726
        %v729 = vunpack.c.l.s4 1966171168
        %v730 = vunpack.c.0.s8 %v729
        %v731 = vlaneseq
        %v732 = vshrl.u32 %v731, 7
        %v733 = vsub.s32 %v730, %v732
        %v734 = vrot.slane %v726, %v733
        %v736 = vunpack.c.l.s4 1966171168
        %v737 = vunpack.c.0.s8 %v736
        %v738 = vlaneseq
        %v739 = vshrl.u32 %v738, 7
        %v740 = vsub.s32 %v737, %v739
        %v741 = vrot.slane %v727, %v740
        %v742 = vcombine.high %v734, %v734
        %v743 = vcombine.high %v741, %v741
        %v745 = vunpack.c.l.s4 1966171168
        %v746 = vunpack.c.0.s8 %v745
        %v747 = vlaneseq
        %v748 = vshrl.u32 %v747, 7
        %v749 = vsub.s32 %v746, %v748
        %v750 = vrot.slane %v295, %v749
        %v752 = vunpack.c.l.s4 1966171168
        %v753 = vunpack.c.0.s8 %v752
        %v754 = vlaneseq
        %v755 = vshrl.u32 %v754, 7
        %v756 = vsub.s32 %v753, %v755
        %v757 = vrot.slane %v750, %v756
        %v759 = vunpack.c.l.s4 1966171168
        %v760 = vunpack.c.0.s8 %v759
        %v761 = vlaneseq
        %v762 = vshrl.u32 %v761, 7
        %v763 = vsub.s32 %v760, %v762
        %v764 = vrot.slane %v296, %v763
        %v765 = vcombine.high %v764, %v764
        %v767 = vunpack.c.l.s4 1966171168
        %v768 = vunpack.c.0.s8 %v767
        %v769 = vlaneseq
        %v770 = vshrl.u32 %v769, 7
        %v771 = vsub.s32 %v768, %v770
        %v772 = vrot.slane %v764, %v771
        %v774 = vunpack.c.l.s4 1966171168
        %v775 = vunpack.c.0.s8 %v774
        %v776 = vlaneseq
        %v777 = vshrl.u32 %v776, 7
        %v778 = vsub.s32 %v775, %v777
        %v779 = vrot.slane %v765, %v778
        %v780 = vcombine.high %v772, %v772
        %v781 = vcombine.high %v779, %v779
        %v783 = vunpack.c.l.s4 1966171168
        %v784 = vunpack.c.0.s8 %v783
        %v785 = vlaneseq
        %v786 = vshrl.u32 %v785, 7
        %v787 = vsub.s32 %v784, %v786
        %v788 = vrot.slane %v297, %v787
        %v789 = vcombine.high %v788, %v788
        %v791 = vunpack.c.l.s4 1966171168
        %v792 = vunpack.c.0.s8 %v791
        %v793 = vlaneseq
        %v794 = vshrl.u32 %v793, 7
        %v795 = vsub.s32 %v792, %v794
        %v796 = vrot.slane %v788, %v795
        %v798 = vunpack.c.l.s4 1966171168
        %v799 = vunpack.c.0.s8 %v798
        %v800 = vlaneseq
        %v801 = vshrl.u32 %v800, 7
        %v802 = vsub.s32 %v799, %v801
        %v803 = vrot.slane %v789, %v802
        %v804 = vcombine.high %v796, %v796
        %v805 = vcombine.high %v803, %v803
        %v807 = vunpack.c.l.s4 1966171168
        %v808 = vunpack.c.0.s8 %v807
        %v809 = vlaneseq
        %v810 = vshrl.u32 %v809, 7
        %v811 = vsub.s32 %v808, %v810
        %v812 = vrot.slane %v298, %v811
        %v814 = vunpack.c.l.s4 1966171168
        %v815 = vunpack.c.0.s8 %v814
        %v816 = vlaneseq
        %v817 = vshrl.u32 %v816, 7
        %v818 = vsub.s32 %v815, %v817
        %v819 = vrot.slane %v812, %v818
        %v821 = vunpack.c.l.s4 1966171168
        %v822 = vunpack.c.0.s8 %v821
        %v823 = vlaneseq
        %v824 = vshrl.u32 %v823, 7
        %v825 = vsub.s32 %v822, %v824
        %v826 = vrot.slane %v299, %v825
        %v827 = vcombine.high %v826, %v826
        %v829 = vunpack.c.l.s4 1966171168
        %v830 = vunpack.c.0.s8 %v829
        %v831 = vlaneseq
        %v832 = vshrl.u32 %v831, 7
        %v833 = vsub.s32 %v830, %v832
        %v834 = vrot.slane %v826, %v833
        %v836 = vunpack.c.l.s4 1966171168
        %v837 = vunpack.c.0.s8 %v836
        %v838 = vlaneseq
        %v839 = vshrl.u32 %v838, 7
        %v840 = vsub.s32 %v837, %v839
        %v841 = vrot.slane %v827, %v840
        %v842 = vcombine.high %v834, %v834
        %v843 = vcombine.high %v841, %v841
        %v845 = vunpack.c.l.s4 1966171168
        %v846 = vunpack.c.0.s8 %v845
        %v847 = vlaneseq
        %v848 = vshrl.u32 %v847, 7
        %v849 = vsub.s32 %v846, %v848
        %v850 = vrot.slane %v300, %v849
        %v851 = vcombine.high %v850, %v850
        %v853 = vunpack.c.l.s4 1966171168
        %v854 = vunpack.c.0.s8 %v853
        %v855 = vlaneseq
        %v856 = vshrl.u32 %v855, 7
        %v857 = vsub.s32 %v854, %v856
        %v858 = vrot.slane %v850, %v857
        %v860 = vunpack.c.l.s4 1966171168
        %v861 = vunpack.c.0.s8 %v860
        %v862 = vlaneseq
        %v863 = vshrl.u32 %v862, 7
        %v864 = vsub.s32 %v861, %v863
        %v865 = vrot.slane %v851, %v864
        %v866 = vcombine.high %v858, %v858
        %v867 = vcombine.high %v865, %v865
        %v869 = vunpack.c.l.s4 1966171168
        %v870 = vunpack.c.0.s8 %v869
        %v871 = vlaneseq
        %v872 = vshrl.u32 %v871, 7
        %v873 = vsub.s32 %v870, %v872
        %v874 = vrot.slane %v301, %v873
        %v876 = vunpack.c.l.s4 1966171168
        %v877 = vunpack.c.0.s8 %v876
        %v878 = vlaneseq
        %v879 = vshrl.u32 %v878, 7
        %v880 = vsub.s32 %v877, %v879
        %v881 = vrot.slane %v874, %v880
        %v883 = vunpack.c.l.s4 1966171168
        %v884 = vunpack.c.0.s8 %v883
        %v885 = vlaneseq
        %v886 = vshrl.u32 %v885, 7
        %v887 = vsub.s32 %v884, %v886
        %v888 = vrot.slane %v302, %v887
        %v889 = vcombine.high %v888, %v888
        %v891 = vunpack.c.l.s4 1966171168
        %v892 = vunpack.c.0.s8 %v891
        %v893 = vlaneseq
        %v894 = vshrl.u32 %v893, 7
        %v895 = vsub.s32 %v892, %v894
        %v896 = vrot.slane %v888, %v895
        %v898 = vunpack.c.l.s4 1966171168
        %v899 = vunpack.c.0.s8 %v898
        %v900 = vlaneseq
        %v901 = vshrl.u32 %v900, 7
        %v902 = vsub.s32 %v899, %v901
        %v903 = vrot.slane %v889, %v902
        %v904 = vcombine.high %v896, %v896
        %v905 = vcombine.high %v903, %v903
        %v907 = vunpack.c.l.s4 1966171168
        %v908 = vunpack.c.0.s8 %v907
        %v909 = vlaneseq
        %v910 = vshrl.u32 %v909, 7
        %v911 = vsub.s32 %v908, %v910
        %v912 = vrot.slane %v303, %v911
        %v913 = vcombine.high %v912, %v912
        %v915 = vunpack.c.l.s4 1966171168
        %v916 = vunpack.c.0.s8 %v915
        %v917 = vlaneseq
        %v918 = vshrl.u32 %v917, 7
        %v919 = vsub.s32 %v916, %v918
        %v920 = vrot.slane %v912, %v919
        %v922 = vunpack.c.l.s4 1966171168
        %v923 = vunpack.c.0.s8 %v922
        %v924 = vlaneseq
        %v925 = vshrl.u32 %v924, 7
        %v926 = vsub.s32 %v923, %v925
        %v927 = vrot.slane %v913, %v926
        %v928 = vcombine.high %v920, %v920
        %v929 = vcombine.high %v927, %v927
        %v931 = vunpack.c.l.s4 1966171168
        %v932 = vunpack.c.0.s8 %v931
        %v933 = vlaneseq
        %v934 = vshrl.u32 %v933, 7
        %v935 = vsub.s32 %v932, %v934
        %v936 = vrot.slane %v304, %v935
        %v938 = vunpack.c.l.s4 1966171168
        %v939 = vunpack.c.0.s8 %v938
        %v940 = vlaneseq
        %v941 = vshrl.u32 %v940, 7
        %v942 = vsub.s32 %v939, %v941
        %v943 = vrot.slane %v936, %v942
        %v945 = vunpack.c.l.s4 1966171168
        %v946 = vunpack.c.0.s8 %v945
        %v947 = vlaneseq
        %v948 = vshrl.u32 %v947, 7
        %v949 = vsub.s32 %v946, %v948
        %v950 = vrot.slane %v305, %v949
        %v951 = vcombine.high %v950, %v950
        %v953 = vunpack.c.l.s4 1966171168
        %v954 = vunpack.c.0.s8 %v953
        %v955 = vlaneseq
        %v956 = vshrl.u32 %v955, 7
        %v957 = vsub.s32 %v954, %v956
        %v958 = vrot.slane %v950, %v957
        %v960 = vunpack.c.l.s4 1966171168
        %v961 = vunpack.c.0.s8 %v960
        %v962 = vlaneseq
        %v963 = vshrl.u32 %v962, 7
        %v964 = vsub.s32 %v961, %v963
        %v965 = vrot.slane %v951, %v964
        %v966 = vcombine.high %v958, %v958
        %v967 = vcombine.high %v965, %v965
        %v969 = vunpack.c.l.s4 1966171168
        %v970 = vunpack.c.0.s8 %v969
        %v971 = vlaneseq
        %v972 = vshrl.u32 %v971, 7
        %v973 = vsub.s32 %v970, %v972
        %v974 = vrot.slane %v306, %v973
        %v975 = vcombine.high %v974, %v974
        %v977 = vunpack.c.l.s4 1966171168
        %v978 = vunpack.c.0.s8 %v977
        %v979 = vlaneseq
        %v980 = vshrl.u32 %v979, 7
        %v981 = vsub.s32 %v978, %v980
        %v982 = vrot.slane %v974, %v981
        %v984 = vunpack.c.l.s4 1966171168
        %v985 = vunpack.c.0.s8 %v984
        %v986 = vlaneseq
        %v987 = vshrl.u32 %v986, 7
        %v988 = vsub.s32 %v985, %v987
        %v989 = vrot.slane %v975, %v988
        %v990 = vcombine.high %v982, %v982
        %v991 = vcombine.high %v989, %v989
        %v993 = vunpack.c.l.s4 1966171168
        %v994 = vunpack.c.0.s8 %v993
        %v995 = vlaneseq
        %v996 = vshrl.u32 %v995, 7
        %v997 = vsub.s32 %v994, %v996
        %v998 = vrot.slane %v307, %v997
        %v1000 = vunpack.c.l.s4 1966171168
        %v1001 = vunpack.c.0.s8 %v1000
        %v1002 = vlaneseq
        %v1003 = vshrl.u32 %v1002, 7
        %v1004 = vsub.s32 %v1001, %v1003
        %v1005 = vrot.slane %v998, %v1004
        %v1007 = vunpack.c.l.s4 1966171168
        %v1008 = vunpack.c.0.s8 %v1007
        %v1009 = vlaneseq
        %v1010 = vshrl.u32 %v1009, 7
        %v1011 = vsub.s32 %v1008, %v1010
        %v1012 = vrot.slane %v308, %v1011
        %v1013 = vcombine.high %v1012, %v1012
        %v1015 = vunpack.c.l.s4 1966171168
        %v1016 = vunpack.c.0.s8 %v1015
        %v1017 = vlaneseq
        %v1018 = vshrl.u32 %v1017, 7
        %v1019 = vsub.s32 %v1016, %v1018
        %v1020 = vrot.slane %v1012, %v1019
        %v1022 = vunpack.c.l.s4 1966171168
        %v1023 = vunpack.c.0.s8 %v1022
        %v1024 = vlaneseq
        %v1025 = vshrl.u32 %v1024, 7
        %v1026 = vsub.s32 %v1023, %v1025
        %v1027 = vrot.slane %v1013, %v1026
        %v1028 = vcombine.high %v1020, %v1020
        %v1029 = vcombine.high %v1027, %v1027
        %v1031 = vunpack.c.l.s4 1966171168
        %v1032 = vunpack.c.0.s8 %v1031
        %v1033 = vlaneseq
        %v1034 = vshrl.u32 %v1033, 7
        %v1035 = vsub.s32 %v1032, %v1034
        %v1036 = vrot.slane %v309, %v1035
        %v1037 = vcombine.high %v1036, %v1036
        %v1039 = vunpack.c.l.s4 1966171168
        %v1040 = vunpack.c.0.s8 %v1039
        %v1041 = vlaneseq
        %v1042 = vshrl.u32 %v1041, 7
        %v1043 = vsub.s32 %v1040, %v1042
        %v1044 = vrot.slane %v1036, %v1043
        %v1046 = vunpack.c.l.s4 1966171168
        %v1047 = vunpack.c.0.s8 %v1046
        %v1048 = vlaneseq
        %v1049 = vshrl.u32 %v1048, 7
        %v1050 = vsub.s32 %v1047, %v1049
        %v1051 = vrot.slane %v1037, %v1050
        %v1052 = vcombine.high %v1044, %v1044
        %v1053 = vcombine.high %v1051, %v1051
        %v1055 = vunpack.c.l.s4 1966171168
        %v1056 = vunpack.c.0.s8 %v1055
        %v1057 = vlaneseq
        %v1058 = vshrl.u32 %v1057, 7
        %v1059 = vsub.s32 %v1056, %v1058
        %v1060 = vrot.slane %v310, %v1059
        %v1062 = vunpack.c.l.s4 1966171168
        %v1063 = vunpack.c.0.s8 %v1062
        %v1064 = vlaneseq
        %v1065 = vshrl.u32 %v1064, 7
        %v1066 = vsub.s32 %v1063, %v1065
        %v1067 = vrot.slane %v1060, %v1066
        %v1069 = vunpack.c.l.s4 1966171168
        %v1070 = vunpack.c.0.s8 %v1069
        %v1071 = vlaneseq
        %v1072 = vshrl.u32 %v1071, 7
        %v1073 = vsub.s32 %v1070, %v1072
        %v1074 = vrot.slane %v311, %v1073
        %v1075 = vcombine.high %v1074, %v1074
        %v1077 = vunpack.c.l.s4 1966171168
        %v1078 = vunpack.c.0.s8 %v1077
        %v1079 = vlaneseq
        %v1080 = vshrl.u32 %v1079, 7
        %v1081 = vsub.s32 %v1078, %v1080
        %v1082 = vrot.slane %v1074, %v1081
        %v1084 = vunpack.c.l.s4 1966171168
        %v1085 = vunpack.c.0.s8 %v1084
        %v1086 = vlaneseq
        %v1087 = vshrl.u32 %v1086, 7
        %v1088 = vsub.s32 %v1085, %v1087
        %v1089 = vrot.slane %v1075, %v1088
        %v1090 = vcombine.high %v1082, %v1082
        %v1091 = vcombine.high %v1089, %v1089
        %v1093 = vunpack.c.l.s4 1966171168
        %v1094 = vunpack.c.0.s8 %v1093
        %v1095 = vlaneseq
        %v1096 = vshrl.u32 %v1095, 7
        %v1097 = vsub.s32 %v1094, %v1096
        %v1098 = vrot.slane %v312, %v1097
        %v1099 = vcombine.high %v1098, %v1098
        %v1101 = vunpack.c.l.s4 1966171168
        %v1102 = vunpack.c.0.s8 %v1101
        %v1103 = vlaneseq
        %v1104 = vshrl.u32 %v1103, 7
        %v1105 = vsub.s32 %v1102, %v1104
        %v1106 = vrot.slane %v1098, %v1105
        %v1108 = vunpack.c.l.s4 1966171168
        %v1109 = vunpack.c.0.s8 %v1108
        %v1110 = vlaneseq
        %v1111 = vshrl.u32 %v1110, 7
        %v1112 = vsub.s32 %v1109, %v1111
        %v1113 = vrot.slane %v1099, %v1112
        %v1114 = vcombine.high %v1106, %v1106
        %v1115 = vcombine.high %v1113, %v1113
        %v1117 = vunpack.c.l.s4 1966171168
        %v1118 = vunpack.c.0.s8 %v1117
        %v1119 = vlaneseq
        %v1120 = vshrl.u32 %v1119, 7
        %v1121 = vsub.s32 %v1118, %v1120
        %v1122 = vrot.slane %v313, %v1121
        %v1124 = vunpack.c.l.s4 1966171168
        %v1125 = vunpack.c.0.s8 %v1124
        %v1126 = vlaneseq
        %v1127 = vshrl.u32 %v1126, 7
        %v1128 = vsub.s32 %v1125, %v1127
        %v1129 = vrot.slane %v1122, %v1128
        %v1131 = vunpack.c.l.s4 1966171168
        %v1132 = vunpack.c.0.s8 %v1131
        %v1133 = vlaneseq
        %v1134 = vshrl.u32 %v1133, 7
        %v1135 = vsub.s32 %v1132, %v1134
        %v1136 = vrot.slane %v314, %v1135
        %v1137 = vcombine.high %v1136, %v1136
        %v1139 = vunpack.c.l.s4 1966171168
        %v1140 = vunpack.c.0.s8 %v1139
        %v1141 = vlaneseq
        %v1142 = vshrl.u32 %v1141, 7
        %v1143 = vsub.s32 %v1140, %v1142
        %v1144 = vrot.slane %v1136, %v1143
        %v1146 = vunpack.c.l.s4 1966171168
        %v1147 = vunpack.c.0.s8 %v1146
        %v1148 = vlaneseq
        %v1149 = vshrl.u32 %v1148, 7
        %v1150 = vsub.s32 %v1147, %v1149
        %v1151 = vrot.slane %v1137, %v1150
        %v1152 = vcombine.high %v1144, %v1144
        %v1153 = vcombine.high %v1151, %v1151
        %v1155 = vunpack.c.l.s4 1966171168
        %v1156 = vunpack.c.0.s8 %v1155
        %v1157 = vlaneseq
        %v1158 = vshrl.u32 %v1157, 7
        %v1159 = vsub.s32 %v1156, %v1158
        %v1160 = vrot.slane %v315, %v1159
        %v1161 = vcombine.high %v1160, %v1160
        %v1163 = vunpack.c.l.s4 1966171168
        %v1164 = vunpack.c.0.s8 %v1163
        %v1165 = vlaneseq
        %v1166 = vshrl.u32 %v1165, 7
        %v1167 = vsub.s32 %v1164, %v1166
        %v1168 = vrot.slane %v1160, %v1167
        %v1170 = vunpack.c.l.s4 1966171168
        %v1171 = vunpack.c.0.s8 %v1170
        %v1172 = vlaneseq
        %v1173 = vshrl.u32 %v1172, 7
        %v1174 = vsub.s32 %v1171, %v1173
        %v1175 = vrot.slane %v1161, %v1174
        %v1176 = vcombine.high %v1168, %v1168
        %v1177 = vcombine.high %v1175, %v1175
        %v1179 = vunpack.c.l.s4 1966171168
        %v1180 = vunpack.c.0.s8 %v1179
        %v1181 = vlaneseq
        %v1182 = vshrl.u32 %v1181, 7
        %v1183 = vsub.s32 %v1180, %v1182
        %v1184 = vrot.slane %v316, %v1183
        %v1186 = vunpack.c.l.s4 1966171168
        %v1187 = vunpack.c.0.s8 %v1186
        %v1188 = vlaneseq
        %v1189 = vshrl.u32 %v1188, 7
        %v1190 = vsub.s32 %v1187, %v1189
        %v1191 = vrot.slane %v1184, %v1190
        %v1193 = vunpack.c.l.s4 1966171168
        %v1194 = vunpack.c.0.s8 %v1193
        %v1195 = vlaneseq
        %v1196 = vshrl.u32 %v1195, 7
        %v1197 = vsub.s32 %v1194, %v1196
        %v1198 = vrot.slane %v317, %v1197
        %v1199 = vcombine.high %v1198, %v1198
        %v1201 = vunpack.c.l.s4 1966171168
        %v1202 = vunpack.c.0.s8 %v1201
        %v1203 = vlaneseq
        %v1204 = vshrl.u32 %v1203, 7
        %v1205 = vsub.s32 %v1202, %v1204
        %v1206 = vrot.slane %v1198, %v1205
        %v1208 = vunpack.c.l.s4 1966171168
        %v1209 = vunpack.c.0.s8 %v1208
        %v1210 = vlaneseq
        %v1211 = vshrl.u32 %v1210, 7
        %v1212 = vsub.s32 %v1209, %v1211
        %v1213 = vrot.slane %v1199, %v1212
        %v1214 = vcombine.high %v1206, %v1206
        %v1215 = vcombine.high %v1213, %v1213
        %v1217 = vunpack.c.l.s4 1966171168
        %v1218 = vunpack.c.0.s8 %v1217
        %v1219 = vlaneseq
        %v1220 = vshrl.u32 %v1219, 7
        %v1221 = vsub.s32 %v1218, %v1220
        %v1222 = vrot.slane %v318, %v1221
        %v1223 = vcombine.high %v1222, %v1222
        %v1225 = vunpack.c.l.s4 1966171168
        %v1226 = vunpack.c.0.s8 %v1225
        %v1227 = vlaneseq
        %v1228 = vshrl.u32 %v1227, 7
        %v1229 = vsub.s32 %v1226, %v1228
        %v1230 = vrot.slane %v1222, %v1229
        %v1232 = vunpack.c.l.s4 1966171168
        %v1233 = vunpack.c.0.s8 %v1232
        %v1234 = vlaneseq
        %v1235 = vshrl.u32 %v1234, 7
        %v1236 = vsub.s32 %v1233, %v1235
        %v1237 = vrot.slane %v1223, %v1236
        %v1238 = vcombine.high %v1230, %v1230
        %v1239 = vcombine.high %v1237, %v1237
        %v1241 = vunpack.c.l.s4 1966171168
        %v1242 = vunpack.c.0.s8 %v1241
        %v1243 = vlaneseq
        %v1244 = vshrl.u32 %v1243, 7
        %v1245 = vsub.s32 %v1242, %v1244
        %v1246 = vrot.slane %v319, %v1245
        %v1248 = vunpack.c.l.s4 1966171168
        %v1249 = vunpack.c.0.s8 %v1248
        %v1250 = vlaneseq
        %v1251 = vshrl.u32 %v1250, 7
        %v1252 = vsub.s32 %v1249, %v1251
        %v1253 = vrot.slane %v1246, %v1252
        %v1255 = vunpack.c.l.s4 1966171168
        %v1256 = vunpack.c.0.s8 %v1255
        %v1257 = vlaneseq
        %v1258 = vshrl.u32 %v1257, 7
        %v1259 = vsub.s32 %v1256, %v1258
        %v1260 = vrot.slane %v320, %v1259
        %v1261 = vcombine.high %v1260, %v1260
        %v1263 = vunpack.c.l.s4 1966171168
        %v1264 = vunpack.c.0.s8 %v1263
        %v1265 = vlaneseq
        %v1266 = vshrl.u32 %v1265, 7
        %v1267 = vsub.s32 %v1264, %v1266
        %v1268 = vrot.slane %v1260, %v1267
        %v1270 = vunpack.c.l.s4 1966171168
        %v1271 = vunpack.c.0.s8 %v1270
        %v1272 = vlaneseq
        %v1273 = vshrl.u32 %v1272, 7
        %v1274 = vsub.s32 %v1271, %v1273
        %v1275 = vrot.slane %v1261, %v1274
        %v1276 = vcombine.high %v1268, %v1268
        %v1277 = vcombine.high %v1275, %v1275
        %v1279 = vunpack.c.l.s4 1966171168
        %v1280 = vunpack.c.0.s8 %v1279
        %v1281 = vlaneseq
        %v1282 = vshrl.u32 %v1281, 7
        %v1283 = vsub.s32 %v1280, %v1282
        %v1284 = vrot.slane %v321, %v1283
        %v1285 = vcombine.high %v1284, %v1284
        %v1287 = vunpack.c.l.s4 1966171168
        %v1288 = vunpack.c.0.s8 %v1287
        %v1289 = vlaneseq
        %v1290 = vshrl.u32 %v1289, 7
        %v1291 = vsub.s32 %v1288, %v1290
        %v1292 = vrot.slane %v1284, %v1291
        %v1294 = vunpack.c.l.s4 1966171168
        %v1295 = vunpack.c.0.s8 %v1294
        %v1296 = vlaneseq
        %v1297 = vshrl.u32 %v1296, 7
        %v1298 = vsub.s32 %v1295, %v1297
        %v1299 = vrot.slane %v1285, %v1298
        %v1300 = vcombine.high %v1292, %v1292
        %v1301 = vcombine.high %v1299, %v1299
        %v1303 = vunpack.c.l.s4 1966171168
        %v1304 = vunpack.c.0.s8 %v1303
        %v1305 = vlaneseq
        %v1306 = vshrl.u32 %v1305, 7
        %v1307 = vsub.s32 %v1304, %v1306
        %v1308 = vrot.slane %v322, %v1307
        %v1310 = vunpack.c.l.s4 1966171168
        %v1311 = vunpack.c.0.s8 %v1310
        %v1312 = vlaneseq
        %v1313 = vshrl.u32 %v1312, 7
        %v1314 = vsub.s32 %v1311, %v1313
        %v1315 = vrot.slane %v1308, %v1314
        %v1317 = vunpack.c.l.s4 1966171168
        %v1318 = vunpack.c.0.s8 %v1317
        %v1319 = vlaneseq
        %v1320 = vshrl.u32 %v1319, 7
        %v1321 = vsub.s32 %v1318, %v1320
        %v1322 = vrot.slane %v323, %v1321
        %v1323 = vcombine.high %v1322, %v1322
        %v1325 = vunpack.c.l.s4 1966171168
        %v1326 = vunpack.c.0.s8 %v1325
        %v1327 = vlaneseq
        %v1328 = vshrl.u32 %v1327, 7
        %v1329 = vsub.s32 %v1326, %v1328
        %v1330 = vrot.slane %v1322, %v1329
        %v1332 = vunpack.c.l.s4 1966171168
        %v1333 = vunpack.c.0.s8 %v1332
        %v1334 = vlaneseq
        %v1335 = vshrl.u32 %v1334, 7
        %v1336 = vsub.s32 %v1333, %v1335
        %v1337 = vrot.slane %v1323, %v1336
        %v1338 = vcombine.high %v1330, %v1330
        %v1339 = vcombine.high %v1337, %v1337
        %v1341 = vunpack.c.l.s4 1966171168
        %v1342 = vunpack.c.0.s8 %v1341
        %v1343 = vlaneseq
        %v1344 = vshrl.u32 %v1343, 7
        %v1345 = vsub.s32 %v1342, %v1344
        %v1346 = vrot.slane %v324, %v1345
        %v1347 = vcombine.high %v1346, %v1346
        %v1349 = vunpack.c.l.s4 1966171168
        %v1350 = vunpack.c.0.s8 %v1349
        %v1351 = vlaneseq
        %v1352 = vshrl.u32 %v1351, 7
        %v1353 = vsub.s32 %v1350, %v1352
        %v1354 = vrot.slane %v1346, %v1353
        %v1356 = vunpack.c.l.s4 1966171168
        %v1357 = vunpack.c.0.s8 %v1356
        %v1358 = vlaneseq
        %v1359 = vshrl.u32 %v1358, 7
        %v1360 = vsub.s32 %v1357, %v1359
        %v1361 = vrot.slane %v1347, %v1360
        %v1362 = vcombine.high %v1354, %v1354
        %v1363 = vcombine.high %v1361, %v1361
        %v1365 = vunpack.c.l.s4 1966171168
        %v1366 = vunpack.c.0.s8 %v1365
        %v1367 = vlaneseq
        %v1368 = vshrl.u32 %v1367, 7
        %v1369 = vsub.s32 %v1366, %v1368
        %v1370 = vrot.slane %v325, %v1369
        %v1372 = vunpack.c.l.s4 1966171168
        %v1373 = vunpack.c.0.s8 %v1372
        %v1374 = vlaneseq
        %v1375 = vshrl.u32 %v1374, 7
        %v1376 = vsub.s32 %v1373, %v1375
        %v1377 = vrot.slane %v1370, %v1376
        %v1379 = vunpack.c.l.s4 1966171168
        %v1380 = vunpack.c.0.s8 %v1379
        %v1381 = vlaneseq
        %v1382 = vshrl.u32 %v1381, 7
        %v1383 = vsub.s32 %v1380, %v1382
        %v1384 = vrot.slane %v326, %v1383
        %v1385 = vcombine.high %v1384, %v1384
        %v1387 = vunpack.c.l.s4 1966171168
        %v1388 = vunpack.c.0.s8 %v1387
        %v1389 = vlaneseq
        %v1390 = vshrl.u32 %v1389, 7
        %v1391 = vsub.s32 %v1388, %v1390
        %v1392 = vrot.slane %v1384, %v1391
        %v1394 = vunpack.c.l.s4 1966171168
        %v1395 = vunpack.c.0.s8 %v1394
        %v1396 = vlaneseq
        %v1397 = vshrl.u32 %v1396, 7
        %v1398 = vsub.s32 %v1395, %v1397
        %v1399 = vrot.slane %v1385, %v1398
        %v1400 = vcombine.high %v1392, %v1392
        %v1401 = vcombine.high %v1399, %v1399
        %v1403 = vunpack.c.l.s4 1966171168
        %v1404 = vunpack.c.0.s8 %v1403
        %v1405 = vlaneseq
        %v1406 = vshrl.u32 %v1405, 7
        %v1407 = vsub.s32 %v1404, %v1406
        %v1408 = vrot.slane %v327, %v1407
        %v1409 = vcombine.high %v1408, %v1408
        %v1411 = vunpack.c.l.s4 1966171168
        %v1412 = vunpack.c.0.s8 %v1411
        %v1413 = vlaneseq
        %v1414 = vshrl.u32 %v1413, 7
        %v1415 = vsub.s32 %v1412, %v1414
        %v1416 = vrot.slane %v1408, %v1415
        %v1418 = vunpack.c.l.s4 1966171168
        %v1419 = vunpack.c.0.s8 %v1418
        %v1420 = vlaneseq
        %v1421 = vshrl.u32 %v1420, 7
        %v1422 = vsub.s32 %v1419, %v1421
        %v1423 = vrot.slane %v1409, %v1422
        %v1424 = vcombine.high %v1416, %v1416
        %v1425 = vcombine.high %v1423, %v1423
        %v1427 = vunpack.c.l.s4 1966171168
        %v1428 = vunpack.c.0.s8 %v1427
        %v1429 = vlaneseq
        %v1430 = vshrl.u32 %v1429, 7
        %v1431 = vsub.s32 %v1428, %v1430
        %v1432 = vrot.slane %v328, %v1431
        %v1434 = vunpack.c.l.s4 1966171168
        %v1435 = vunpack.c.0.s8 %v1434
        %v1436 = vlaneseq
        %v1437 = vshrl.u32 %v1436, 7
        %v1438 = vsub.s32 %v1435, %v1437
        %v1439 = vrot.slane %v1432, %v1438
        %v1441 = vunpack.c.l.s4 1966171168
        %v1442 = vunpack.c.0.s8 %v1441
        %v1443 = vlaneseq
        %v1444 = vshrl.u32 %v1443, 7
        %v1445 = vsub.s32 %v1442, %v1444
        %v1446 = vrot.slane %v329, %v1445
        %v1447 = vcombine.high %v1446, %v1446
        %v1449 = vunpack.c.l.s4 1966171168
        %v1450 = vunpack.c.0.s8 %v1449
        %v1451 = vlaneseq
        %v1452 = vshrl.u32 %v1451, 7
        %v1453 = vsub.s32 %v1450, %v1452
        %v1454 = vrot.slane %v1446, %v1453
        %v1456 = vunpack.c.l.s4 1966171168
        %v1457 = vunpack.c.0.s8 %v1456
        %v1458 = vlaneseq
        %v1459 = vshrl.u32 %v1458, 7
        %v1460 = vsub.s32 %v1457, %v1459
        %v1461 = vrot.slane %v1447, %v1460
        %v1462 = vcombine.high %v1454, %v1454
        %v1463 = vcombine.high %v1461, %v1461
        %v1465 = vunpack.c.l.s4 1966171168
        %v1466 = vunpack.c.0.s8 %v1465
        %v1467 = vlaneseq
        %v1468 = vshrl.u32 %v1467, 7
        %v1469 = vsub.s32 %v1466, %v1468
        %v1470 = vrot.slane %v330, %v1469
        %v1471 = vcombine.high %v1470, %v1470
        %v1473 = vunpack.c.l.s4 1966171168
        %v1474 = vunpack.c.0.s8 %v1473
        %v1475 = vlaneseq
        %v1476 = vshrl.u32 %v1475, 7
        %v1477 = vsub.s32 %v1474, %v1476
        %v1478 = vrot.slane %v1470, %v1477
        %v1480 = vunpack.c.l.s4 1966171168
        %v1481 = vunpack.c.0.s8 %v1480
        %v1482 = vlaneseq
        %v1483 = vshrl.u32 %v1482, 7
        %v1484 = vsub.s32 %v1481, %v1483
        %v1485 = vrot.slane %v1471, %v1484
        %v1486 = vcombine.high %v1478, %v1478
        %v1487 = vcombine.high %v1485, %v1485
        %v1489 = vunpack.c.l.s4 1966171168
        %v1490 = vunpack.c.0.s8 %v1489
        %v1491 = vlaneseq
        %v1492 = vshrl.u32 %v1491, 7
        %v1493 = vsub.s32 %v1490, %v1492
        %v1494 = vrot.slane %v331, %v1493
        %v1496 = vunpack.c.l.s4 1966171168
        %v1497 = vunpack.c.0.s8 %v1496
        %v1498 = vlaneseq
        %v1499 = vshrl.u32 %v1498, 7
        %v1500 = vsub.s32 %v1497, %v1499
        %v1501 = vrot.slane %v1494, %v1500
        %v1650 = vld [vmem:[%s1] sm:$0xf]
        %v1651 = vld [vmem:[%s1 + $0x4] sm:$0xf]
        %v1652 = vld [vmem:[%s1 + $0x8] sm:$0xf]
        %v1653 = vld [vmem:[%s1 + $0xc] sm:$0xf]
        %v1654 = vld [vmem:[%s1 + $0x10] sm:$0xf]
        %v1655 = vld [vmem:[%s1 + $0x14] sm:$0xf]
        %v1656 = vld [vmem:[%s1 + $0x18] sm:$0xf]
        %v1657 = vld [vmem:[%s1 + $0x1c] sm:$0xf]
        %v1658 = vld [vmem:[%s1 + $0x20] sm:$0xf]
        %v1659 = vld [vmem:[%s1 + $0x24] sm:$0xf]
        %v1660 = vld [vmem:[%s1 + $0x28] sm:$0xf]
        %v1661 = vld [vmem:[%s1 + $0x2c] sm:$0xf]
        %v1662 = vld [vmem:[%s1 + $0x30] sm:$0xf]
        %v1663 = vld [vmem:[%s1 + $0x34] sm:$0xf]
        %v1664 = vld [vmem:[%s1 + $0x38] sm:$0xf]
        %v1665 = vld [vmem:[%s1 + $0x3c] sm:$0xf]
        %v1666 = vld [vmem:[%s2] sm:$0x1]
        %v1668 = vlaneseq
        %v1669 = vshrl.u32 %v1668, 7
        %v1670 = vsub.s32 0, %v1669
        %v1671 = vrot.slane %v1666, %v1670
        %v1673 = vcombine.low %v400, %v407
        %v1674 = vcombine.low %v408, %v409
        %v1675 = vcombine.low %v424, %v431
        %v1676 = vcombine.low %v432, %v433
        %v1678 = vunpack.c.l.s4 1966171168
        %v1679 = vunpack.c.0.s8 %v1678
        %v1680 = vlaneseq
        %v1681 = vshrl.u32 %v1680, 7
        %v1682 = vsub.s32 %v1679, %v1681
        %v1683 = vrot.slane %v1673, %v1682
        %v1685 = vunpack.c.l.s4 1966171168
        %v1686 = vunpack.c.0.s8 %v1685
        %v1687 = vlaneseq
        %v1688 = vshrl.u32 %v1687, 7
        %v1689 = vsub.s32 %v1686, %v1688
        %v1690 = vrot.slane %v1674, %v1689
        %v1692 = vunpack.c.l.s4 1966171168
        %v1693 = vunpack.c.0.s8 %v1692
        %v1694 = vlaneseq
        %v1695 = vshrl.u32 %v1694, 7
        %v1696 = vsub.s32 %v1693, %v1695
        %v1697 = vrot.slane %v1675, %v1696
        %v1699 = vunpack.c.l.s4 1966171168
        %v1700 = vunpack.c.0.s8 %v1699
        %v1701 = vlaneseq
        %v1702 = vshrl.u32 %v1701, 7
        %v1703 = vsub.s32 %v1700, %v1702
        %v1704 = vrot.slane %v1676, %v1703
        %v1705 = vcombine.low %v1683, %v1690
        %v1706 = vcombine.low %v1697, %v1704
        %v1708 = vunpack.c.l.s4 1966171168
        %v1709 = vunpack.c.0.s8 %v1708
        %v1710 = vlaneseq
        %v1711 = vshrl.u32 %v1710, 7
        %v1712 = vsub.s32 %v1709, %v1711
        %v1713 = vrot.slane %v1705, %v1712
        %v1715 = vunpack.c.l.s4 1966171168
        %v1716 = vunpack.c.0.s8 %v1715
        %v1717 = vlaneseq
        %v1718 = vshrl.u32 %v1717, 7
        %v1719 = vsub.s32 %v1716, %v1718
        %v1720 = vrot.slane %v1706, %v1719
        %v1721 = vcombine.low %v1713, %v1720
        %v1722 = vcombine.low %v447, %v462
        %v1723 = vcombine.low %v469, %v470
        %v1724 = vcombine.low %v471, %v486
        %v1725 = vcombine.low %v493, %v494
        %v1727 = vunpack.c.l.s4 1966171168
        %v1728 = vunpack.c.0.s8 %v1727
        %v1729 = vlaneseq
        %v1730 = vshrl.u32 %v1729, 7
        %v1731 = vsub.s32 %v1728, %v1730
        %v1732 = vrot.slane %v1722, %v1731
        %v1734 = vunpack.c.l.s4 1966171168
        %v1735 = vunpack.c.0.s8 %v1734
        %v1736 = vlaneseq
        %v1737 = vshrl.u32 %v1736, 7
        %v1738 = vsub.s32 %v1735, %v1737
        %v1739 = vrot.slane %v1723, %v1738
        %v1741 = vunpack.c.l.s4 1966171168
        %v1742 = vunpack.c.0.s8 %v1741
        %v1743 = vlaneseq
        %v1744 = vshrl.u32 %v1743, 7
        %v1745 = vsub.s32 %v1742, %v1744
        %v1746 = vrot.slane %v1724, %v1745
        %v1748 = vunpack.c.l.s4 1966171168
        %v1749 = vunpack.c.0.s8 %v1748
        %v1750 = vlaneseq
        %v1751 = vshrl.u32 %v1750, 7
        %v1752 = vsub.s32 %v1749, %v1751
        %v1753 = vrot.slane %v1725, %v1752
        %v1754 = vcombine.low %v1732, %v1739
        %v1755 = vcombine.low %v1746, %v1753
        %v1757 = vunpack.c.l.s4 1966171168
        %v1758 = vunpack.c.0.s8 %v1757
        %v1759 = vlaneseq
        %v1760 = vshrl.u32 %v1759, 7
        %v1761 = vsub.s32 %v1758, %v1760
        %v1762 = vrot.slane %v1754, %v1761
        %v1764 = vunpack.c.l.s4 1966171168
        %v1765 = vunpack.c.0.s8 %v1764
        %v1766 = vlaneseq
        %v1767 = vshrl.u32 %v1766, 7
        %v1768 = vsub.s32 %v1765, %v1767
        %v1769 = vrot.slane %v1755, %v1768
        %v1770 = vcombine.low %v1762, %v1769
        %v1771 = vcombine.low %v495, %v509
        %v1772 = vcombine.low %v524, %v531
        %v1773 = vcombine.low %v532, %v533
        %v1774 = vcombine.low %v548, %v555
        %v1776 = vunpack.c.l.s4 1966171168
        %v1777 = vunpack.c.0.s8 %v1776
        %v1778 = vlaneseq
        %v1779 = vshrl.u32 %v1778, 7
        %v1780 = vsub.s32 %v1777, %v1779
        %v1781 = vrot.slane %v1771, %v1780
        %v1783 = vunpack.c.l.s4 1966171168
        %v1784 = vunpack.c.0.s8 %v1783
        %v1785 = vlaneseq
        %v1786 = vshrl.u32 %v1785, 7
        %v1787 = vsub.s32 %v1784, %v1786
        %v1788 = vrot.slane %v1772, %v1787
        %v1790 = vunpack.c.l.s4 1966171168
        %v1791 = vunpack.c.0.s8 %v1790
        %v1792 = vlaneseq
        %v1793 = vshrl.u32 %v1792, 7
        %v1794 = vsub.s32 %v1791, %v1793
        %v1795 = vrot.slane %v1773, %v1794
        %v1797 = vunpack.c.l.s4 1966171168
        %v1798 = vunpack.c.0.s8 %v1797
        %v1799 = vlaneseq
        %v1800 = vshrl.u32 %v1799, 7
        %v1801 = vsub.s32 %v1798, %v1800
        %v1802 = vrot.slane %v1774, %v1801
        %v1803 = vcombine.low %v1781, %v1788
        %v1804 = vcombine.low %v1795, %v1802
        %v1806 = vunpack.c.l.s4 1966171168
        %v1807 = vunpack.c.0.s8 %v1806
        %v1808 = vlaneseq
        %v1809 = vshrl.u32 %v1808, 7
        %v1810 = vsub.s32 %v1807, %v1809
        %v1811 = vrot.slane %v1803, %v1810
        %v1813 = vunpack.c.l.s4 1966171168
        %v1814 = vunpack.c.0.s8 %v1813
        %v1815 = vlaneseq
        %v1816 = vshrl.u32 %v1815, 7
        %v1817 = vsub.s32 %v1814, %v1816
        %v1818 = vrot.slane %v1804, %v1817
        %v1819 = vcombine.low %v1811, %v1818
        %v1820 = vcombine.low %v556, %v557
        %v1821 = vcombine.low %v571, %v586
        %v1822 = vcombine.low %v593, %v594
        %v1823 = vcombine.low %v595, %v610
        %v1825 = vunpack.c.l.s4 1966171168
        %v1826 = vunpack.c.0.s8 %v1825
        %v1827 = vlaneseq
        %v1828 = vshrl.u32 %v1827, 7
        %v1829 = vsub.s32 %v1826, %v1828
        %v1830 = vrot.slane %v1820, %v1829
        %v1832 = vunpack.c.l.s4 1966171168
        %v1833 = vunpack.c.0.s8 %v1832
        %v1834 = vlaneseq
        %v1835 = vshrl.u32 %v1834, 7
        %v1836 = vsub.s32 %v1833, %v1835
        %v1837 = vrot.slane %v1821, %v1836
        %v1839 = vunpack.c.l.s4 1966171168
        %v1840 = vunpack.c.0.s8 %v1839
        %v1841 = vlaneseq
        %v1842 = vshrl.u32 %v1841, 7
        %v1843 = vsub.s32 %v1840, %v1842
        %v1844 = vrot.slane %v1822, %v1843
        %v1846 = vunpack.c.l.s4 1966171168
        %v1847 = vunpack.c.0.s8 %v1846
        %v1848 = vlaneseq
        %v1849 = vshrl.u32 %v1848, 7
        %v1850 = vsub.s32 %v1847, %v1849
        %v1851 = vrot.slane %v1823, %v1850
        %v1852 = vcombine.low %v1830, %v1837
        %v1853 = vcombine.low %v1844, %v1851
        %v1855 = vunpack.c.l.s4 1966171168
        %v1856 = vunpack.c.0.s8 %v1855
        %v1857 = vlaneseq
        %v1858 = vshrl.u32 %v1857, 7
        %v1859 = vsub.s32 %v1856, %v1858
        %v1860 = vrot.slane %v1852, %v1859
        %v1862 = vunpack.c.l.s4 1966171168
        %v1863 = vunpack.c.0.s8 %v1862
        %v1864 = vlaneseq
        %v1865 = vshrl.u32 %v1864, 7
        %v1866 = vsub.s32 %v1863, %v1865
        %v1867 = vrot.slane %v1853, %v1866
        %v1868 = vcombine.low %v1860, %v1867
        %v1869 = vcombine.low %v617, %v618
        %v1870 = vcombine.low %v619, %v633
        %v1871 = vcombine.low %v648, %v655
        %v1872 = vcombine.low %v656, %v657
        %v1874 = vunpack.c.l.s4 1966171168
        %v1875 = vunpack.c.0.s8 %v1874
        %v1876 = vlaneseq
        %v1877 = vshrl.u32 %v1876, 7
        %v1878 = vsub.s32 %v1875, %v1877
        %v1879 = vrot.slane %v1869, %v1878
        %v1881 = vunpack.c.l.s4 1966171168
        %v1882 = vunpack.c.0.s8 %v1881
        %v1883 = vlaneseq
        %v1884 = vshrl.u32 %v1883, 7
        %v1885 = vsub.s32 %v1882, %v1884
        %v1886 = vrot.slane %v1870, %v1885
        %v1888 = vunpack.c.l.s4 1966171168
        %v1889 = vunpack.c.0.s8 %v1888
        %v1890 = vlaneseq
        %v1891 = vshrl.u32 %v1890, 7
        %v1892 = vsub.s32 %v1889, %v1891
        %v1893 = vrot.slane %v1871, %v1892
        %v1895 = vunpack.c.l.s4 1966171168
        %v1896 = vunpack.c.0.s8 %v1895
        %v1897 = vlaneseq
        %v1898 = vshrl.u32 %v1897, 7
        %v1899 = vsub.s32 %v1896, %v1898
        %v1900 = vrot.slane %v1872, %v1899
        %v1901 = vcombine.low %v1879, %v1886
        %v1902 = vcombine.low %v1893, %v1900
        %v1904 = vunpack.c.l.s4 1966171168
        %v1905 = vunpack.c.0.s8 %v1904
        %v1906 = vlaneseq
        %v1907 = vshrl.u32 %v1906, 7
        %v1908 = vsub.s32 %v1905, %v1907
        %v1909 = vrot.slane %v1901, %v1908
        %v1911 = vunpack.c.l.s4 1966171168
        %v1912 = vunpack.c.0.s8 %v1911
        %v1913 = vlaneseq
        %v1914 = vshrl.u32 %v1913, 7
        %v1915 = vsub.s32 %v1912, %v1914
        %v1916 = vrot.slane %v1902, %v1915
        %v1917 = vcombine.low %v1909, %v1916
        %v1918 = vcombine.low %v672, %v679
        %v1919 = vcombine.low %v680, %v681
        %v1920 = vcombine.low %v695, %v710
        %v1921 = vcombine.low %v717, %v718
        %v1923 = vunpack.c.l.s4 1966171168
        %v1924 = vunpack.c.0.s8 %v1923
        %v1925 = vlaneseq
        %v1926 = vshrl.u32 %v1925, 7
        %v1927 = vsub.s32 %v1924, %v1926
        %v1928 = vrot.slane %v1918, %v1927
        %v1930 = vunpack.c.l.s4 1966171168
        %v1931 = vunpack.c.0.s8 %v1930
        %v1932 = vlaneseq
        %v1933 = vshrl.u32 %v1932, 7
        %v1934 = vsub.s32 %v1931, %v1933
        %v1935 = vrot.slane %v1919, %v1934
        %v1937 = vunpack.c.l.s4 1966171168
        %v1938 = vunpack.c.0.s8 %v1937
        %v1939 = vlaneseq
        %v1940 = vshrl.u32 %v1939, 7
        %v1941 = vsub.s32 %v1938, %v1940
        %v1942 = vrot.slane %v1920, %v1941
        %v1944 = vunpack.c.l.s4 1966171168
        %v1945 = vunpack.c.0.s8 %v1944
        %v1946 = vlaneseq
        %v1947 = vshrl.u32 %v1946, 7
        %v1948 = vsub.s32 %v1945, %v1947
        %v1949 = vrot.slane %v1921, %v1948
        %v1950 = vcombine.low %v1928, %v1935
        %v1951 = vcombine.low %v1942, %v1949
        %v1953 = vunpack.c.l.s4 1966171168
        %v1954 = vunpack.c.0.s8 %v1953
        %v1955 = vlaneseq
        %v1956 = vshrl.u32 %v1955, 7
        %v1957 = vsub.s32 %v1954, %v1956
        %v1958 = vrot.slane %v1950, %v1957
        %v1960 = vunpack.c.l.s4 1966171168
        %v1961 = vunpack.c.0.s8 %v1960
        %v1962 = vlaneseq
        %v1963 = vshrl.u32 %v1962, 7
        %v1964 = vsub.s32 %v1961, %v1963
        %v1965 = vrot.slane %v1951, %v1964
        %v1966 = vcombine.low %v1958, %v1965
        %v1967 = vcombine.low %v719, %v734
        %v1968 = vcombine.low %v741, %v742
        %v1969 = vcombine.low %v743, %v757
        %v1970 = vcombine.low %v772, %v779
        %v1972 = vunpack.c.l.s4 1966171168
        %v1973 = vunpack.c.0.s8 %v1972
        %v1974 = vlaneseq
        %v1975 = vshrl.u32 %v1974, 7
        %v1976 = vsub.s32 %v1973, %v1975
        %v1977 = vrot.slane %v1967, %v1976
        %v1979 = vunpack.c.l.s4 1966171168
        %v1980 = vunpack.c.0.s8 %v1979
        %v1981 = vlaneseq
        %v1982 = vshrl.u32 %v1981, 7
        %v1983 = vsub.s32 %v1980, %v1982
        %v1984 = vrot.slane %v1968, %v1983
        %v1986 = vunpack.c.l.s4 1966171168
        %v1987 = vunpack.c.0.s8 %v1986
        %v1988 = vlaneseq
        %v1989 = vshrl.u32 %v1988, 7
        %v1990 = vsub.s32 %v1987, %v1989
        %v1991 = vrot.slane %v1969, %v1990
        %v1993 = vunpack.c.l.s4 1966171168
        %v1994 = vunpack.c.0.s8 %v1993
        %v1995 = vlaneseq
        %v1996 = vshrl.u32 %v1995, 7
        %v1997 = vsub.s32 %v1994, %v1996
        %v1998 = vrot.slane %v1970, %v1997
        %v1999 = vcombine.low %v1977, %v1984
        %v2000 = vcombine.low %v1991, %v1998
        %v2002 = vunpack.c.l.s4 1966171168
        %v2003 = vunpack.c.0.s8 %v2002
        %v2004 = vlaneseq
        %v2005 = vshrl.u32 %v2004, 7
        %v2006 = vsub.s32 %v2003, %v2005
        %v2007 = vrot.slane %v1999, %v2006
        %v2009 = vunpack.c.l.s4 1966171168
        %v2010 = vunpack.c.0.s8 %v2009
        %v2011 = vlaneseq
        %v2012 = vshrl.u32 %v2011, 7
        %v2013 = vsub.s32 %v2010, %v2012
        %v2014 = vrot.slane %v2000, %v2013
        %v2015 = vcombine.low %v2007, %v2014
        %v2016 = vcombine.low %v780, %v781
        %v2017 = vcombine.low %v796, %v803
        %v2018 = vcombine.low %v804, %v805
        %v2019 = vcombine.low %v819, %v834
        %v2021 = vunpack.c.l.s4 1966171168
        %v2022 = vunpack.c.0.s8 %v2021
        %v2023 = vlaneseq
        %v2024 = vshrl.u32 %v2023, 7
        %v2025 = vsub.s32 %v2022, %v2024
        %v2026 = vrot.slane %v2016, %v2025
        %v2028 = vunpack.c.l.s4 1966171168
        %v2029 = vunpack.c.0.s8 %v2028
        %v2030 = vlaneseq
        %v2031 = vshrl.u32 %v2030, 7
        %v2032 = vsub.s32 %v2029, %v2031
        %v2033 = vrot.slane %v2017, %v2032
        %v2035 = vunpack.c.l.s4 1966171168
        %v2036 = vunpack.c.0.s8 %v2035
        %v2037 = vlaneseq
        %v2038 = vshrl.u32 %v2037, 7
        %v2039 = vsub.s32 %v2036, %v2038
        %v2040 = vrot.slane %v2018, %v2039
        %v2042 = vunpack.c.l.s4 1966171168
        %v2043 = vunpack.c.0.s8 %v2042
        %v2044 = vlaneseq
        %v2045 = vshrl.u32 %v2044, 7
        %v2046 = vsub.s32 %v2043, %v2045
        %v2047 = vrot.slane %v2019, %v2046
        %v2048 = vcombine.low %v2026, %v2033
        %v2049 = vcombine.low %v2040, %v2047
        %v2051 = vunpack.c.l.s4 1966171168
        %v2052 = vunpack.c.0.s8 %v2051
        %v2053 = vlaneseq
        %v2054 = vshrl.u32 %v2053, 7
        %v2055 = vsub.s32 %v2052, %v2054
        %v2056 = vrot.slane %v2048, %v2055
        %v2058 = vunpack.c.l.s4 1966171168
        %v2059 = vunpack.c.0.s8 %v2058
        %v2060 = vlaneseq
        %v2061 = vshrl.u32 %v2060, 7
        %v2062 = vsub.s32 %v2059, %v2061
        %v2063 = vrot.slane %v2049, %v2062
        %v2064 = vcombine.low %v2056, %v2063
        %v2065 = vcombine.low %v841, %v842
        %v2066 = vcombine.low %v843, %v858
        %v2067 = vcombine.low %v865, %v866
        %v2068 = vcombine.low %v867, %v881
        %v2070 = vunpack.c.l.s4 1966171168
        %v2071 = vunpack.c.0.s8 %v2070
        %v2072 = vlaneseq
        %v2073 = vshrl.u32 %v2072, 7
        %v2074 = vsub.s32 %v2071, %v2073
        %v2075 = vrot.slane %v2065, %v2074
        %v2077 = vunpack.c.l.s4 1966171168
        %v2078 = vunpack.c.0.s8 %v2077
        %v2079 = vlaneseq
        %v2080 = vshrl.u32 %v2079, 7
        %v2081 = vsub.s32 %v2078, %v2080
        %v2082 = vrot.slane %v2066, %v2081
        %v2084 = vunpack.c.l.s4 1966171168
        %v2085 = vunpack.c.0.s8 %v2084
        %v2086 = vlaneseq
        %v2087 = vshrl.u32 %v2086, 7
        %v2088 = vsub.s32 %v2085, %v2087
        %v2089 = vrot.slane %v2067, %v2088
        %v2091 = vunpack.c.l.s4 1966171168
        %v2092 = vunpack.c.0.s8 %v2091
        %v2093 = vlaneseq
        %v2094 = vshrl.u32 %v2093, 7
        %v2095 = vsub.s32 %v2092, %v2094
        %v2096 = vrot.slane %v2068, %v2095
        %v2097 = vcombine.low %v2075, %v2082
        %v2098 = vcombine.low %v2089, %v2096
        %v2100 = vunpack.c.l.s4 1966171168
        %v2101 = vunpack.c.0.s8 %v2100
        %v2102 = vlaneseq
        %v2103 = vshrl.u32 %v2102, 7
        %v2104 = vsub.s32 %v2101, %v2103
        %v2105 = vrot.slane %v2097, %v2104
        %v2107 = vunpack.c.l.s4 1966171168
        %v2108 = vunpack.c.0.s8 %v2107
        %v2109 = vlaneseq
        %v2110 = vshrl.u32 %v2109, 7
        %v2111 = vsub.s32 %v2108, %v2110
        %v2112 = vrot.slane %v2098, %v2111
        %v2113 = vcombine.low %v2105, %v2112
        %v2114 = vcombine.low %v896, %v903
        %v2115 = vcombine.low %v904, %v905
        %v2116 = vcombine.low %v920, %v927
        %v2117 = vcombine.low %v928, %v929
        %v2119 = vunpack.c.l.s4 1966171168
        %v2120 = vunpack.c.0.s8 %v2119
        %v2121 = vlaneseq
        %v2122 = vshrl.u32 %v2121, 7
        %v2123 = vsub.s32 %v2120, %v2122
        %v2124 = vrot.slane %v2114, %v2123
        %v2126 = vunpack.c.l.s4 1966171168
        %v2127 = vunpack.c.0.s8 %v2126
        %v2128 = vlaneseq
        %v2129 = vshrl.u32 %v2128, 7
        %v2130 = vsub.s32 %v2127, %v2129
        %v2131 = vrot.slane %v2115, %v2130
        %v2133 = vunpack.c.l.s4 1966171168
        %v2134 = vunpack.c.0.s8 %v2133
        %v2135 = vlaneseq
        %v2136 = vshrl.u32 %v2135, 7
        %v2137 = vsub.s32 %v2134, %v2136
        %v2138 = vrot.slane %v2116, %v2137
        %v2140 = vunpack.c.l.s4 1966171168
        %v2141 = vunpack.c.0.s8 %v2140
        %v2142 = vlaneseq
        %v2143 = vshrl.u32 %v2142, 7
        %v2144 = vsub.s32 %v2141, %v2143
        %v2145 = vrot.slane %v2117, %v2144
        %v2146 = vcombine.low %v2124, %v2131
        %v2147 = vcombine.low %v2138, %v2145
        %v2149 = vunpack.c.l.s4 1966171168
        %v2150 = vunpack.c.0.s8 %v2149
        %v2151 = vlaneseq
        %v2152 = vshrl.u32 %v2151, 7
        %v2153 = vsub.s32 %v2150, %v2152
        %v2154 = vrot.slane %v2146, %v2153
        %v2156 = vunpack.c.l.s4 1966171168
        %v2157 = vunpack.c.0.s8 %v2156
        %v2158 = vlaneseq
        %v2159 = vshrl.u32 %v2158, 7
        %v2160 = vsub.s32 %v2157, %v2159
        %v2161 = vrot.slane %v2147, %v2160
        %v2162 = vcombine.low %v2154, %v2161
        %v2163 = vcombine.low %v943, %v958
        %v2164 = vcombine.low %v965, %v966
        %v2165 = vcombine.low %v967, %v982
        %v2166 = vcombine.low %v989, %v990
        %v2168 = vunpack.c.l.s4 1966171168
        %v2169 = vunpack.c.0.s8 %v2168
        %v2170 = vlaneseq
        %v2171 = vshrl.u32 %v2170, 7
        %v2172 = vsub.s32 %v2169, %v2171
        %v2173 = vrot.slane %v2163, %v2172
        %v2175 = vunpack.c.l.s4 1966171168
        %v2176 = vunpack.c.0.s8 %v2175
        %v2177 = vlaneseq
        %v2178 = vshrl.u32 %v2177, 7
        %v2179 = vsub.s32 %v2176, %v2178
        %v2180 = vrot.slane %v2164, %v2179
        %v2182 = vunpack.c.l.s4 1966171168
        %v2183 = vunpack.c.0.s8 %v2182
        %v2184 = vlaneseq
        %v2185 = vshrl.u32 %v2184, 7
        %v2186 = vsub.s32 %v2183, %v2185
        %v2187 = vrot.slane %v2165, %v2186
        %v2189 = vunpack.c.l.s4 1966171168
        %v2190 = vunpack.c.0.s8 %v2189
        %v2191 = vlaneseq
        %v2192 = vshrl.u32 %v2191, 7
        %v2193 = vsub.s32 %v2190, %v2192
        %v2194 = vrot.slane %v2166, %v2193
        %v2195 = vcombine.low %v2173, %v2180
        %v2196 = vcombine.low %v2187, %v2194
        %v2198 = vunpack.c.l.s4 1966171168
        %v2199 = vunpack.c.0.s8 %v2198
        %v2200 = vlaneseq
        %v2201 = vshrl.u32 %v2200, 7
        %v2202 = vsub.s32 %v2199, %v2201
        %v2203 = vrot.slane %v2195, %v2202
        %v2205 = vunpack.c.l.s4 1966171168
        %v2206 = vunpack.c.0.s8 %v2205
        %v2207 = vlaneseq
        %v2208 = vshrl.u32 %v2207, 7
        %v2209 = vsub.s32 %v2206, %v2208
        %v2210 = vrot.slane %v2196, %v2209
        %v2211 = vcombine.low %v2203, %v2210
        %v2212 = vcombine.low %v991, %v1005
        %v2213 = vcombine.low %v1020, %v1027
        %v2214 = vcombine.low %v1028, %v1029
        %v2215 = vcombine.low %v1044, %v1051
        %v2217 = vunpack.c.l.s4 1966171168
        %v2218 = vunpack.c.0.s8 %v2217
        %v2219 = vlaneseq
        %v2220 = vshrl.u32 %v2219, 7
        %v2221 = vsub.s32 %v2218, %v2220
        %v2222 = vrot.slane %v2212, %v2221
        %v2224 = vunpack.c.l.s4 1966171168
        %v2225 = vunpack.c.0.s8 %v2224
        %v2226 = vlaneseq
        %v2227 = vshrl.u32 %v2226, 7
        %v2228 = vsub.s32 %v2225, %v2227
        %v2229 = vrot.slane %v2213, %v2228
        %v2231 = vunpack.c.l.s4 1966171168
        %v2232 = vunpack.c.0.s8 %v2231
        %v2233 = vlaneseq
        %v2234 = vshrl.u32 %v2233, 7
        %v2235 = vsub.s32 %v2232, %v2234
        %v2236 = vrot.slane %v2214, %v2235
        %v2238 = vunpack.c.l.s4 1966171168
        %v2239 = vunpack.c.0.s8 %v2238
        %v2240 = vlaneseq
        %v2241 = vshrl.u32 %v2240, 7
        %v2242 = vsub.s32 %v2239, %v2241
        %v2243 = vrot.slane %v2215, %v2242
        %v2244 = vcombine.low %v2222, %v2229
        %v2245 = vcombine.low %v2236, %v2243
        %v2247 = vunpack.c.l.s4 1966171168
        %v2248 = vunpack.c.0.s8 %v2247
        %v2249 = vlaneseq
        %v2250 = vshrl.u32 %v2249, 7
        %v2251 = vsub.s32 %v2248, %v2250
        %v2252 = vrot.slane %v2244, %v2251
        %v2254 = vunpack.c.l.s4 1966171168
        %v2255 = vunpack.c.0.s8 %v2254
        %v2256 = vlaneseq
        %v2257 = vshrl.u32 %v2256, 7
        %v2258 = vsub.s32 %v2255, %v2257
        %v2259 = vrot.slane %v2245, %v2258
        %v2260 = vcombine.low %v2252, %v2259
        %v2261 = vcombine.low %v1052, %v1053
        %v2262 = vcombine.low %v1067, %v1082
        %v2263 = vcombine.low %v1089, %v1090
        %v2264 = vcombine.low %v1091, %v1106
        %v2266 = vunpack.c.l.s4 1966171168
        %v2267 = vunpack.c.0.s8 %v2266
        %v2268 = vlaneseq
        %v2269 = vshrl.u32 %v2268, 7
        %v2270 = vsub.s32 %v2267, %v2269
        %v2271 = vrot.slane %v2261, %v2270
        %v2273 = vunpack.c.l.s4 1966171168
        %v2274 = vunpack.c.0.s8 %v2273
        %v2275 = vlaneseq
        %v2276 = vshrl.u32 %v2275, 7
        %v2277 = vsub.s32 %v2274, %v2276
        %v2278 = vrot.slane %v2262, %v2277
        %v2280 = vunpack.c.l.s4 1966171168
        %v2281 = vunpack.c.0.s8 %v2280
        %v2282 = vlaneseq
        %v2283 = vshrl.u32 %v2282, 7
        %v2284 = vsub.s32 %v2281, %v2283
        %v2285 = vrot.slane %v2263, %v2284
        %v2287 = vunpack.c.l.s4 1966171168
        %v2288 = vunpack.c.0.s8 %v2287
        %v2289 = vlaneseq
        %v2290 = vshrl.u32 %v2289, 7
        %v2291 = vsub.s32 %v2288, %v2290
        %v2292 = vrot.slane %v2264, %v2291
        %v2293 = vcombine.low %v2271, %v2278
        %v2294 = vcombine.low %v2285, %v2292
        %v2296 = vunpack.c.l.s4 1966171168
        %v2297 = vunpack.c.0.s8 %v2296
        %v2298 = vlaneseq
        %v2299 = vshrl.u32 %v2298, 7
        %v2300 = vsub.s32 %v2297, %v2299
        %v2301 = vrot.slane %v2293, %v2300
        %v2303 = vunpack.c.l.s4 1966171168
        %v2304 = vunpack.c.0.s8 %v2303
        %v2305 = vlaneseq
        %v2306 = vshrl.u32 %v2305, 7
        %v2307 = vsub.s32 %v2304, %v2306
        %v2308 = vrot.slane %v2294, %v2307
        %v2309 = vcombine.low %v2301, %v2308
        %v2310 = vcombine.low %v1113, %v1114
        %v2311 = vcombine.low %v1115, %v1129
        %v2312 = vcombine.low %v1144, %v1151
        %v2313 = vcombine.low %v1152, %v1153
        %v2315 = vunpack.c.l.s4 1966171168
        %v2316 = vunpack.c.0.s8 %v2315
        %v2317 = vlaneseq
        %v2318 = vshrl.u32 %v2317, 7
        %v2319 = vsub.s32 %v2316, %v2318
        %v2320 = vrot.slane %v2310, %v2319
        %v2322 = vunpack.c.l.s4 1966171168
        %v2323 = vunpack.c.0.s8 %v2322
        %v2324 = vlaneseq
        %v2325 = vshrl.u32 %v2324, 7
        %v2326 = vsub.s32 %v2323, %v2325
        %v2327 = vrot.slane %v2311, %v2326
        %v2329 = vunpack.c.l.s4 1966171168
        %v2330 = vunpack.c.0.s8 %v2329
        %v2331 = vlaneseq
        %v2332 = vshrl.u32 %v2331, 7
        %v2333 = vsub.s32 %v2330, %v2332
        %v2334 = vrot.slane %v2312, %v2333
        %v2336 = vunpack.c.l.s4 1966171168
        %v2337 = vunpack.c.0.s8 %v2336
        %v2338 = vlaneseq
        %v2339 = vshrl.u32 %v2338, 7
        %v2340 = vsub.s32 %v2337, %v2339
        %v2341 = vrot.slane %v2313, %v2340
        %v2342 = vcombine.low %v2320, %v2327
        %v2343 = vcombine.low %v2334, %v2341
        %v2345 = vunpack.c.l.s4 1966171168
        %v2346 = vunpack.c.0.s8 %v2345
        %v2347 = vlaneseq
        %v2348 = vshrl.u32 %v2347, 7
        %v2349 = vsub.s32 %v2346, %v2348
        %v2350 = vrot.slane %v2342, %v2349
        %v2352 = vunpack.c.l.s4 1966171168
        %v2353 = vunpack.c.0.s8 %v2352
        %v2354 = vlaneseq
        %v2355 = vshrl.u32 %v2354, 7
        %v2356 = vsub.s32 %v2353, %v2355
        %v2357 = vrot.slane %v2343, %v2356
        %v2358 = vcombine.low %v2350, %v2357
        %v2359 = vcombine.low %v1168, %v1175
        %v2360 = vcombine.low %v1176, %v1177
        %v2361 = vcombine.low %v1191, %v1206
        %v2362 = vcombine.low %v1213, %v1214
        %v2364 = vunpack.c.l.s4 1966171168
        %v2365 = vunpack.c.0.s8 %v2364
        %v2366 = vlaneseq
        %v2367 = vshrl.u32 %v2366, 7
        %v2368 = vsub.s32 %v2365, %v2367
        %v2369 = vrot.slane %v2359, %v2368
        %v2371 = vunpack.c.l.s4 1966171168
        %v2372 = vunpack.c.0.s8 %v2371
        %v2373 = vlaneseq
        %v2374 = vshrl.u32 %v2373, 7
        %v2375 = vsub.s32 %v2372, %v2374
        %v2376 = vrot.slane %v2360, %v2375
        %v2378 = vunpack.c.l.s4 1966171168
        %v2379 = vunpack.c.0.s8 %v2378
        %v2380 = vlaneseq
        %v2381 = vshrl.u32 %v2380, 7
        %v2382 = vsub.s32 %v2379, %v2381
        %v2383 = vrot.slane %v2361, %v2382
        %v2385 = vunpack.c.l.s4 1966171168
        %v2386 = vunpack.c.0.s8 %v2385
        %v2387 = vlaneseq
        %v2388 = vshrl.u32 %v2387, 7
        %v2389 = vsub.s32 %v2386, %v2388
        %v2390 = vrot.slane %v2362, %v2389
        %v2391 = vcombine.low %v2369, %v2376
        %v2392 = vcombine.low %v2383, %v2390
        %v2394 = vunpack.c.l.s4 1966171168
        %v2395 = vunpack.c.0.s8 %v2394
        %v2396 = vlaneseq
        %v2397 = vshrl.u32 %v2396, 7
        %v2398 = vsub.s32 %v2395, %v2397
        %v2399 = vrot.slane %v2391, %v2398
        %v2401 = vunpack.c.l.s4 1966171168
        %v2402 = vunpack.c.0.s8 %v2401
        %v2403 = vlaneseq
        %v2404 = vshrl.u32 %v2403, 7
        %v2405 = vsub.s32 %v2402, %v2404
        %v2406 = vrot.slane %v2392, %v2405
        %v2407 = vcombine.low %v2399, %v2406
        %v2408 = vcombine.low %v1215, %v1230
        %v2409 = vcombine.low %v1237, %v1238
        %v2410 = vcombine.low %v1239, %v1253
        %v2411 = vcombine.low %v1268, %v1275
        %v2413 = vunpack.c.l.s4 1966171168
        %v2414 = vunpack.c.0.s8 %v2413
        %v2415 = vlaneseq
        %v2416 = vshrl.u32 %v2415, 7
        %v2417 = vsub.s32 %v2414, %v2416
        %v2418 = vrot.slane %v2408, %v2417
        %v2420 = vunpack.c.l.s4 1966171168
        %v2421 = vunpack.c.0.s8 %v2420
        %v2422 = vlaneseq
        %v2423 = vshrl.u32 %v2422, 7
        %v2424 = vsub.s32 %v2421, %v2423
        %v2425 = vrot.slane %v2409, %v2424
        %v2427 = vunpack.c.l.s4 1966171168
        %v2428 = vunpack.c.0.s8 %v2427
        %v2429 = vlaneseq
        %v2430 = vshrl.u32 %v2429, 7
        %v2431 = vsub.s32 %v2428, %v2430
        %v2432 = vrot.slane %v2410, %v2431
        %v2434 = vunpack.c.l.s4 1966171168
        %v2435 = vunpack.c.0.s8 %v2434
        %v2436 = vlaneseq
        %v2437 = vshrl.u32 %v2436, 7
        %v2438 = vsub.s32 %v2435, %v2437
        %v2439 = vrot.slane %v2411, %v2438
        %v2440 = vcombine.low %v2418, %v2425
        %v2441 = vcombine.low %v2432, %v2439
        %v2443 = vunpack.c.l.s4 1966171168
        %v2444 = vunpack.c.0.s8 %v2443
        %v2445 = vlaneseq
        %v2446 = vshrl.u32 %v2445, 7
        %v2447 = vsub.s32 %v2444, %v2446
        %v2448 = vrot.slane %v2440, %v2447
        %v2450 = vunpack.c.l.s4 1966171168
        %v2451 = vunpack.c.0.s8 %v2450
        %v2452 = vlaneseq
        %v2453 = vshrl.u32 %v2452, 7
        %v2454 = vsub.s32 %v2451, %v2453
        %v2455 = vrot.slane %v2441, %v2454
        %v2456 = vcombine.low %v2448, %v2455
        %v2457 = vcombine.low %v1276, %v1277
        %v2458 = vcombine.low %v1292, %v1299
        %v2459 = vcombine.low %v1300, %v1301
        %v2460 = vcombine.low %v1315, %v1330
        %v2462 = vunpack.c.l.s4 1966171168
        %v2463 = vunpack.c.0.s8 %v2462
        %v2464 = vlaneseq
        %v2465 = vshrl.u32 %v2464, 7
        %v2466 = vsub.s32 %v2463, %v2465
        %v2467 = vrot.slane %v2457, %v2466
        %v2469 = vunpack.c.l.s4 1966171168
        %v2470 = vunpack.c.0.s8 %v2469
        %v2471 = vlaneseq
        %v2472 = vshrl.u32 %v2471, 7
        %v2473 = vsub.s32 %v2470, %v2472
        %v2474 = vrot.slane %v2458, %v2473
        %v2476 = vunpack.c.l.s4 1966171168
        %v2477 = vunpack.c.0.s8 %v2476
        %v2478 = vlaneseq
        %v2479 = vshrl.u32 %v2478, 7
        %v2480 = vsub.s32 %v2477, %v2479
        %v2481 = vrot.slane %v2459, %v2480
        %v2483 = vunpack.c.l.s4 1966171168
        %v2484 = vunpack.c.0.s8 %v2483
        %v2485 = vlaneseq
        %v2486 = vshrl.u32 %v2485, 7
        %v2487 = vsub.s32 %v2484, %v2486
        %v2488 = vrot.slane %v2460, %v2487
        %v2489 = vcombine.low %v2467, %v2474
        %v2490 = vcombine.low %v2481, %v2488
        %v2492 = vunpack.c.l.s4 1966171168
        %v2493 = vunpack.c.0.s8 %v2492
        %v2494 = vlaneseq
        %v2495 = vshrl.u32 %v2494, 7
        %v2496 = vsub.s32 %v2493, %v2495
        %v2497 = vrot.slane %v2489, %v2496
        %v2499 = vunpack.c.l.s4 1966171168
        %v2500 = vunpack.c.0.s8 %v2499
        %v2501 = vlaneseq
        %v2502 = vshrl.u32 %v2501, 7
        %v2503 = vsub.s32 %v2500, %v2502
        %v2504 = vrot.slane %v2490, %v2503
        %v2505 = vcombine.low %v2497, %v2504
        %v2506 = vcombine.low %v1337, %v1338
        %v2507 = vcombine.low %v1339, %v1354
        %v2508 = vcombine.low %v1361, %v1362
        %v2509 = vcombine.low %v1363, %v1377
        %v2511 = vunpack.c.l.s4 1966171168
        %v2512 = vunpack.c.0.s8 %v2511
        %v2513 = vlaneseq
        %v2514 = vshrl.u32 %v2513, 7
        %v2515 = vsub.s32 %v2512, %v2514
        %v2516 = vrot.slane %v2506, %v2515
        %v2518 = vunpack.c.l.s4 1966171168
        %v2519 = vunpack.c.0.s8 %v2518
        %v2520 = vlaneseq
        %v2521 = vshrl.u32 %v2520, 7
        %v2522 = vsub.s32 %v2519, %v2521
        %v2523 = vrot.slane %v2507, %v2522
        %v2525 = vunpack.c.l.s4 1966171168
        %v2526 = vunpack.c.0.s8 %v2525
        %v2527 = vlaneseq
        %v2528 = vshrl.u32 %v2527, 7
        %v2529 = vsub.s32 %v2526, %v2528
        %v2530 = vrot.slane %v2508, %v2529
        %v2532 = vunpack.c.l.s4 1966171168
        %v2533 = vunpack.c.0.s8 %v2532
        %v2534 = vlaneseq
        %v2535 = vshrl.u32 %v2534, 7
        %v2536 = vsub.s32 %v2533, %v2535
        %v2537 = vrot.slane %v2509, %v2536
        %v2538 = vcombine.low %v2516, %v2523
        %v2539 = vcombine.low %v2530, %v2537
        %v2541 = vunpack.c.l.s4 1966171168
        %v2542 = vunpack.c.0.s8 %v2541
        %v2543 = vlaneseq
        %v2544 = vshrl.u32 %v2543, 7
        %v2545 = vsub.s32 %v2542, %v2544
        %v2546 = vrot.slane %v2538, %v2545
        %v2548 = vunpack.c.l.s4 1966171168
        %v2549 = vunpack.c.0.s8 %v2548
        %v2550 = vlaneseq
        %v2551 = vshrl.u32 %v2550, 7
        %v2552 = vsub.s32 %v2549, %v2551
        %v2553 = vrot.slane %v2539, %v2552
        %v2554 = vcombine.low %v2546, %v2553
        %v2555 = vcombine.low %v1392, %v1399
        %v2556 = vcombine.low %v1400, %v1401
        %v2557 = vcombine.low %v1416, %v1423
        %v2558 = vcombine.low %v1424, %v1425
        %v2560 = vunpack.c.l.s4 1966171168
        %v2561 = vunpack.c.0.s8 %v2560
        %v2562 = vlaneseq
        %v2563 = vshrl.u32 %v2562, 7
        %v2564 = vsub.s32 %v2561, %v2563
        %v2565 = vrot.slane %v2555, %v2564
        %v2567 = vunpack.c.l.s4 1966171168
        %v2568 = vunpack.c.0.s8 %v2567
        %v2569 = vlaneseq
        %v2570 = vshrl.u32 %v2569, 7
        %v2571 = vsub.s32 %v2568, %v2570
        %v2572 = vrot.slane %v2556, %v2571
        %v2574 = vunpack.c.l.s4 1966171168
        %v2575 = vunpack.c.0.s8 %v2574
        %v2576 = vlaneseq
        %v2577 = vshrl.u32 %v2576, 7
        %v2578 = vsub.s32 %v2575, %v2577
        %v2579 = vrot.slane %v2557, %v2578
        %v2581 = vunpack.c.l.s4 1966171168
        %v2582 = vunpack.c.0.s8 %v2581
        %v2583 = vlaneseq
        %v2584 = vshrl.u32 %v2583, 7
        %v2585 = vsub.s32 %v2582, %v2584
        %v2586 = vrot.slane %v2558, %v2585
        %v2587 = vcombine.low %v2565, %v2572
        %v2588 = vcombine.low %v2579, %v2586
        %v2590 = vunpack.c.l.s4 1966171168
        %v2591 = vunpack.c.0.s8 %v2590
        %v2592 = vlaneseq
        %v2593 = vshrl.u32 %v2592, 7
        %v2594 = vsub.s32 %v2591, %v2593
        %v2595 = vrot.slane %v2587, %v2594
        %v2597 = vunpack.c.l.s4 1966171168
        %v2598 = vunpack.c.0.s8 %v2597
        %v2599 = vlaneseq
        %v2600 = vshrl.u32 %v2599, 7
        %v2601 = vsub.s32 %v2598, %v2600
        %v2602 = vrot.slane %v2588, %v2601
        %v2603 = vcombine.low %v2595, %v2602
        %v2604 = vcombine.low %v1439, %v1454
        %v2605 = vcombine.low %v1461, %v1462
        %v2606 = vcombine.low %v1463, %v1478
        %v2607 = vcombine.low %v1485, %v1486
        %v2609 = vunpack.c.l.s4 1966171168
        %v2610 = vunpack.c.0.s8 %v2609
        %v2611 = vlaneseq
        %v2612 = vshrl.u32 %v2611, 7
        %v2613 = vsub.s32 %v2610, %v2612
        %v2614 = vrot.slane %v2604, %v2613
        %v2616 = vunpack.c.l.s4 1966171168
        %v2617 = vunpack.c.0.s8 %v2616
        %v2618 = vlaneseq
        %v2619 = vshrl.u32 %v2618, 7
        %v2620 = vsub.s32 %v2617, %v2619
        %v2621 = vrot.slane %v2605, %v2620
        %v2623 = vunpack.c.l.s4 1966171168
        %v2624 = vunpack.c.0.s8 %v2623
        %v2625 = vlaneseq
        %v2626 = vshrl.u32 %v2625, 7
        %v2627 = vsub.s32 %v2624, %v2626
        %v2628 = vrot.slane %v2606, %v2627
        %v2630 = vunpack.c.l.s4 1966171168
        %v2631 = vunpack.c.0.s8 %v2630
        %v2632 = vlaneseq
        %v2633 = vshrl.u32 %v2632, 7
        %v2634 = vsub.s32 %v2631, %v2633
        %v2635 = vrot.slane %v2607, %v2634
        %v2636 = vcombine.low %v2614, %v2621
        %v2637 = vcombine.low %v2628, %v2635
        %v2639 = vunpack.c.l.s4 1966171168
        %v2640 = vunpack.c.0.s8 %v2639
        %v2641 = vlaneseq
        %v2642 = vshrl.u32 %v2641, 7
        %v2643 = vsub.s32 %v2640, %v2642
        %v2644 = vrot.slane %v2636, %v2643
        %v2646 = vunpack.c.l.s4 1966171168
        %v2647 = vunpack.c.0.s8 %v2646
        %v2648 = vlaneseq
        %v2649 = vshrl.u32 %v2648, 7
        %v2650 = vsub.s32 %v2647, %v2649
        %v2651 = vrot.slane %v2637, %v2650
        %v2652 = vcombine.low %v2644, %v2651
        %v2653 = vcombine.low %v1487, %v1501
        %v2655 = vunpack.c.l.s4 1966171168
        %v2656 = vunpack.c.0.s8 %v2655
        %v2657 = vlaneseq
        %v2658 = vshrl.u32 %v2657, 7
        %v2659 = vsub.s32 %v2656, %v2658
        %v2660 = vrot.slane %v2653, %v2659
        %v2662 = vunpack.c.l.s4 1966171168
        %v2663 = vunpack.c.0.s8 %v2662
        %v2664 = vlaneseq
        %v2665 = vshrl.u32 %v2664, 7
        %v2666 = vsub.s32 %v2663, %v2665
        %v2667 = vrot.slane %v2660, %v2666
        %v2705 = vunpack.c.l.b16 %v1650
        %v2706 = vunpack.c.l.b16 %v1651
        %v2707 = vunpack.c.l.b16 %v1652
        %v2708 = vunpack.c.l.b16 %v1653
        %v2709 = vunpack.c.l.b16 %v1654
        %v2710 = vunpack.c.l.b16 %v1655
        %v2711 = vunpack.c.l.b16 %v1656
        %v2712 = vunpack.c.l.b16 %v1657
        %v2713 = vunpack.c.l.b16 %v1658
        %v2714 = vunpack.c.l.b16 %v1659
        %v2715 = vunpack.c.l.b16 %v1660
        %v2716 = vunpack.c.l.b16 %v1661
        %v2717 = vunpack.c.l.b16 %v1662
        %v2718 = vunpack.c.l.b16 %v1663
        %v2719 = vunpack.c.l.b16 %v1664
        %v2720 = vunpack.c.l.b16 %v1665
        %v2721 = vpack.c.b16 %v2706, %v2705
        %v2722 = vpack.c.b16 %v2708, %v2707
        %v2723 = vpack.c.b16 %v2710, %v2709
        %v2724 = vpack.c.b16 %v2712, %v2711
        %v2725 = vpack.c.b16 %v2714, %v2713
        %v2726 = vpack.c.b16 %v2716, %v2715
        %v2727 = vpack.c.b16 %v2718, %v2717
        %v2728 = vpack.c.b16 %v2720, %v2719
        %2737 = vmatprep.subr.bf16.mxu0 0
        %2738 = vmatpush1.bf16.msra.mxu0 %v2721
        %2739 = vmatprep.subr.bf16.mxu0 0
        %2740 = vmatpush1.bf16.msra.mxu0 %v2722
        %2741 = vmatprep.subr.bf16.mxu0 0
        %2742 = vmatpush1.bf16.msra.mxu0 %v2723
        %2743 = vmatprep.subr.bf16.mxu0 0
        %2744 = vmatpush1.bf16.msra.mxu0 %v2724
        %2745 = vmatprep.subr.bf16.mxu0 0
        %2746 = vmatpush1.bf16.msra.mxu0 %v2725
        %2747 = vmatprep.subr.bf16.mxu0 0
        %2748 = vmatpush1.bf16.msra.mxu0 %v2726
        %2749 = vmatprep.subr.bf16.mxu0 0
        %2750 = vmatpush1.bf16.msra.mxu0 %v2727
        %2751 = vmatprep.subr.bf16.mxu0 0
        %2752 = vmatpush1.bf16.msra.mxu0 %v2728
        %2753 = vmatprep.subr.bf16.mxu0 0
        %2754 = vmatpush1.bf16.msra.mxu0 0
        %2755 = vmatprep.subr.bf16.mxu0 0
        %2756 = vmatpush1.bf16.msra.mxu0 0
        %2757 = vmatprep.subr.bf16.mxu0 0
        %2758 = vmatpush1.bf16.msra.mxu0 0
        %2759 = vmatprep.subr.bf16.mxu0 0
        %2760 = vmatpush1.bf16.msra.mxu0 0
        %2761 = vmatprep.subr.bf16.mxu0 0
        %2762 = vmatpush1.bf16.msra.mxu0 0
        %2763 = vmatprep.subr.bf16.mxu0 0
        %2764 = vmatpush1.bf16.msra.mxu0 0
        %2765 = vmatprep.subr.bf16.mxu0 0
        %2766 = vmatpush1.bf16.msra.mxu0 0
        %2767 = vmatprep.subr.bf16.mxu0 0
        %2768 = vmatpush1.bf16.msra.mxu0 0
        %2769 = vmatprep.mubr.bf16.mxu0 0
        %2770 = vmatmul.mubr.bf16.gmra.mrb[0].mxu0 %v1721
        %v2771 = vpop.f32.mrb[0].mxu0
        %v2772 = vadd.f32 %v1671, %v2771
        %v2773 = vpop.f32.mrb[0].mxu0
        %v2774 = vpop.f32.mrb[0].mxu0
        %v2775 = vadd.f32 %v1671, %v2774
        %v2776 = vpop.f32.mrb[0].mxu0
        %2777 = vmatprep.mubr.bf16.mxu0 0
        %2778 = vmatmul.mubr.bf16.gmra.mrb[0].mxu0 %v1770
        %v2779 = vpop.f32.mrb[0].mxu0
        %v2780 = vadd.f32 %v1671, %v2779
        %v2781 = vpop.f32.mrb[0].mxu0
        %v2782 = vpop.f32.mrb[0].mxu0
        %v2783 = vadd.f32 %v1671, %v2782
        %v2784 = vpop.f32.mrb[0].mxu0
        %2785 = vmatprep.mubr.bf16.mxu0 0
        %2786 = vmatmul.mubr.bf16.gmra.mrb[0].mxu0 %v1819
        %v2787 = vpop.f32.mrb[0].mxu0
        %v2788 = vadd.f32 %v1671, %v2787
        %v2789 = vpop.f32.mrb[0].mxu0
        %v2790 = vpop.f32.mrb[0].mxu0
        %v2791 = vadd.f32 %v1671, %v2790
        %v2792 = vpop.f32.mrb[0].mxu0
        %2793 = vmatprep.mubr.bf16.mxu0 0
        %2794 = vmatmul.mubr.bf16.gmra.mrb[0].mxu0 %v1868
        %v2795 = vpop.f32.mrb[0].mxu0
        %v2796 = vadd.f32 %v1671, %v2795
        %v2797 = vpop.f32.mrb[0].mxu0
        %v2798 = vpop.f32.mrb[0].mxu0
        %v2799 = vadd.f32 %v1671, %v2798
        %v2800 = vpop.f32.mrb[0].mxu0
        %2801 = vmatprep.mubr.bf16.mxu0 0
        %2802 = vmatmul.mubr.bf16.gmra.mrb[0].mxu0 %v1917
        %v2803 = vpop.f32.mrb[0].mxu0
        %v2804 = vadd.f32 %v1671, %v2803
        %v2805 = vpop.f32.mrb[0].mxu0
        %v2806 = vpop.f32.mrb[0].mxu0
        %v2807 = vadd.f32 %v1671, %v2806
        %v2808 = vpop.f32.mrb[0].mxu0
        %2809 = vmatprep.mubr.bf16.mxu0 0
        %2810 = vmatmul.mubr.bf16.gmra.mrb[0].mxu0 %v1966
        %v2811 = vpop.f32.mrb[0].mxu0
        %v2812 = vadd.f32 %v1671, %v2811
        %v2813 = vpop.f32.mrb[0].mxu0
        %v2814 = vpop.f32.mrb[0].mxu0
        %v2815 = vadd.f32 %v1671, %v2814
        %v2816 = vpop.f32.mrb[0].mxu0
        %2817 = vmatprep.mubr.bf16.mxu0 0
        %2818 = vmatmul.mubr.bf16.gmra.mrb[0].mxu0 %v2015
        %v2819 = vpop.f32.mrb[0].mxu0
        %v2820 = vadd.f32 %v1671, %v2819
        %v2821 = vpop.f32.mrb[0].mxu0
        %v2822 = vpop.f32.mrb[0].mxu0
        %v2823 = vadd.f32 %v1671, %v2822
        %v2824 = vpop.f32.mrb[0].mxu0
        %2825 = vmatprep.mubr.bf16.mxu0 0
        %2826 = vmatmul.mubr.bf16.gmra.mrb[0].mxu0 %v2064
        %v2827 = vpop.f32.mrb[0].mxu0
        %v2828 = vadd.f32 %v1671, %v2827
        %v2829 = vpop.f32.mrb[0].mxu0
        %v2830 = vpop.f32.mrb[0].mxu0
        %v2831 = vadd.f32 %v1671, %v2830
        %v2832 = vpop.f32.mrb[0].mxu0
        %2833 = vmatprep.mubr.bf16.mxu0 0
        %2834 = vmatmul.mubr.bf16.gmra.mrb[0].mxu0 %v2113
        %v2835 = vpop.f32.mrb[0].mxu0
        %v2836 = vadd.f32 %v1671, %v2835
        %v2837 = vpop.f32.mrb[0].mxu0
        %v2838 = vpop.f32.mrb[0].mxu0
        %v2839 = vadd.f32 %v1671, %v2838
        %v2840 = vpop.f32.mrb[0].mxu0
        %2841 = vmatprep.mubr.bf16.mxu0 0
        %2842 = vmatmul.mubr.bf16.gmra.mrb[0].mxu0 %v2162
        %v2843 = vpop.f32.mrb[0].mxu0
        %v2844 = vadd.f32 %v1671, %v2843
        %v2845 = vpop.f32.mrb[0].mxu0
        %v2846 = vpop.f32.mrb[0].mxu0
        %v2847 = vadd.f32 %v1671, %v2846
        %v2848 = vpop.f32.mrb[0].mxu0
        %2849 = vmatprep.mubr.bf16.mxu0 0
        %2850 = vmatmul.mubr.bf16.gmra.mrb[0].mxu0 %v2211
        %v2851 = vpop.f32.mrb[0].mxu0
        %v2852 = vadd.f32 %v1671, %v2851
        %v2853 = vpop.f32.mrb[0].mxu0
        %v2854 = vpop.f32.mrb[0].mxu0
        %v2855 = vadd.f32 %v1671, %v2854
        %v2856 = vpop.f32.mrb[0].mxu0
        %2857 = vmatprep.mubr.bf16.mxu0 0
        %2858 = vmatmul.mubr.bf16.gmra.mrb[0].mxu0 %v2260
        %v2859 = vpop.f32.mrb[0].mxu0
        %v2860 = vadd.f32 %v1671, %v2859
        %v2861 = vpop.f32.mrb[0].mxu0
        %v2862 = vpop.f32.mrb[0].mxu0
        %v2863 = vadd.f32 %v1671, %v2862
        %v2864 = vpop.f32.mrb[0].mxu0
        %2865 = vmatprep.mubr.bf16.mxu0 0
        %2866 = vmatmul.mubr.bf16.gmra.mrb[0].mxu0 %v2309
        %v2867 = vpop.f32.mrb[0].mxu0
        %v2868 = vadd.f32 %v1671, %v2867
        %v2869 = vpop.f32.mrb[0].mxu0
        %v2870 = vpop.f32.mrb[0].mxu0
        %v2871 = vadd.f32 %v1671, %v2870
        %v2872 = vpop.f32.mrb[0].mxu0
        %2873 = vmatprep.mubr.bf16.mxu0 0
        %2874 = vmatmul.mubr.bf16.gmra.mrb[0].mxu0 %v2358
        %v2875 = vpop.f32.mrb[0].mxu0
        %v2876 = vadd.f32 %v1671, %v2875
        %v2877 = vpop.f32.mrb[0].mxu0
        %v2878 = vpop.f32.mrb[0].mxu0
        %v2879 = vadd.f32 %v1671, %v2878
        %v2880 = vpop.f32.mrb[0].mxu0
        %2881 = vmatprep.mubr.bf16.mxu0 0
        %2882 = vmatmul.mubr.bf16.gmra.mrb[0].mxu0 %v2407
        %v2883 = vpop.f32.mrb[0].mxu0
        %v2884 = vadd.f32 %v1671, %v2883
        %v2885 = vpop.f32.mrb[0].mxu0
        %v2886 = vpop.f32.mrb[0].mxu0
        %v2887 = vadd.f32 %v1671, %v2886
        %v2888 = vpop.f32.mrb[0].mxu0
        %2889 = vmatprep.mubr.bf16.mxu0 0
        %2890 = vmatmul.mubr.bf16.gmra.mrb[0].mxu0 %v2456
        %v2891 = vpop.f32.mrb[0].mxu0
        %v2892 = vadd.f32 %v1671, %v2891
        %v2893 = vpop.f32.mrb[0].mxu0
        %v2894 = vpop.f32.mrb[0].mxu0
        %v2895 = vadd.f32 %v1671, %v2894
        %v2896 = vpop.f32.mrb[0].mxu0
        %2897 = vmatprep.mubr.bf16.mxu0 0
        %2898 = vmatmul.mubr.bf16.gmra.mrb[0].mxu0 %v2505
        %v2899 = vpop.f32.mrb[0].mxu0
        %v2900 = vadd.f32 %v1671, %v2899
        %v2901 = vpop.f32.mrb[0].mxu0
        %v2902 = vpop.f32.mrb[0].mxu0
        %v2903 = vadd.f32 %v1671, %v2902
        %v2904 = vpop.f32.mrb[0].mxu0
        %2905 = vmatprep.mubr.bf16.mxu0 0
        %2906 = vmatmul.mubr.bf16.gmra.mrb[0].mxu0 %v2554
        %v2907 = vpop.f32.mrb[0].mxu0
        %v2908 = vadd.f32 %v1671, %v2907
        %v2909 = vpop.f32.mrb[0].mxu0
        %v2910 = vpop.f32.mrb[0].mxu0
        %v2911 = vadd.f32 %v1671, %v2910
        %v2912 = vpop.f32.mrb[0].mxu0
        %2913 = vmatprep.mubr.bf16.mxu0 0
        %2914 = vmatmul.mubr.bf16.gmra.mrb[0].mxu0 %v2603
        %v2915 = vpop.f32.mrb[0].mxu0
        %v2916 = vadd.f32 %v1671, %v2915
        %v2917 = vpop.f32.mrb[0].mxu0
        %v2918 = vpop.f32.mrb[0].mxu0
        %v2919 = vadd.f32 %v1671, %v2918
        %v2920 = vpop.f32.mrb[0].mxu0
        %2921 = vmatprep.mubr.bf16.mxu0 0
        %2922 = vmatmul.mubr.bf16.gmra.mrb[0].mxu0 %v2652
        %v2923 = vpop.f32.mrb[0].mxu0
        %v2924 = vadd.f32 %v1671, %v2923
        %v2925 = vpop.f32.mrb[0].mxu0
        %v2926 = vpop.f32.mrb[0].mxu0
        %v2927 = vadd.f32 %v1671, %v2926
        %v2928 = vpop.f32.mrb[0].mxu0
        %2929 = vmatprep.mubr.bf16.mxu0 0
        %2930 = vmatmul.mubr.bf16.gmra.mrb[0].mxu0 %v2667
        %v2931 = vpop.f32.mrb[0].mxu0
        %v2932 = vadd.f32 %v1671, %v2931
        %v2933 = vpop.f32.mrb[0].mxu0
        %v2934 = vpop.f32.mrb[0].mxu0
        %v2935 = vpop.f32.mrb[0].mxu0
        %2936 = vdwg.mxu0
        %v2937 = vmax.f32 %v2772, 0.0
        %v2938 = vmax.f32 %v2775, 0.0
        %v2939 = vmax.f32 %v2780, 0.0
        %v2940 = vmax.f32 %v2783, 0.0
        %v2941 = vmax.f32 %v2788, 0.0
        %v2942 = vmax.f32 %v2791, 0.0
        %v2943 = vmax.f32 %v2796, 0.0
        %v2944 = vmax.f32 %v2799, 0.0
        %v2945 = vmax.f32 %v2804, 0.0
        %v2946 = vmax.f32 %v2807, 0.0
        %v2947 = vmax.f32 %v2812, 0.0
        %v2948 = vmax.f32 %v2815, 0.0
        %v2949 = vmax.f32 %v2820, 0.0
        %v2950 = vmax.f32 %v2823, 0.0
        %v2951 = vmax.f32 %v2828, 0.0
        %v2952 = vmax.f32 %v2831, 0.0
        %v2953 = vmax.f32 %v2836, 0.0
        %v2954 = vmax.f32 %v2839, 0.0
        %v2955 = vmax.f32 %v2844, 0.0
        %v2956 = vmax.f32 %v2847, 0.0
        %v2957 = vmax.f32 %v2852, 0.0
        %v2958 = vmax.f32 %v2855, 0.0
        %v2959 = vmax.f32 %v2860, 0.0
        %v2960 = vmax.f32 %v2863, 0.0
        %v2961 = vmax.f32 %v2868, 0.0
        %v2962 = vmax.f32 %v2871, 0.0
        %v2963 = vmax.f32 %v2876, 0.0
        %v2964 = vmax.f32 %v2879, 0.0
        %v2965 = vmax.f32 %v2884, 0.0
        %v2966 = vmax.f32 %v2887, 0.0
        %v2967 = vmax.f32 %v2892, 0.0
        %v2968 = vmax.f32 %v2895, 0.0
        %v2969 = vmax.f32 %v2900, 0.0
        %v2970 = vmax.f32 %v2903, 0.0
        %v2971 = vmax.f32 %v2908, 0.0
        %v2972 = vmax.f32 %v2911, 0.0
        %v2973 = vmax.f32 %v2916, 0.0
        %v2974 = vmax.f32 %v2919, 0.0
        %v2975 = vmax.f32 %v2924, 0.0
        %v2976 = vmax.f32 %v2927, 0.0
        %v2977 = vmax.f32 %v2932, 0.0
        %v2978 = vpack.c.bf16 %v2938, %v2937
        %v2979 = vpack.c.bf16 %v2940, %v2939
        %v2980 = vpack.c.bf16 %v2942, %v2941
        %v2981 = vpack.c.bf16 %v2944, %v2943
        %v2982 = vpack.c.bf16 %v2946, %v2945
        %v2983 = vpack.c.bf16 %v2948, %v2947
        %v2984 = vpack.c.bf16 %v2950, %v2949
        %v2985 = vpack.c.bf16 %v2952, %v2951
        %v2986 = vpack.c.bf16 %v2954, %v2953
        %v2987 = vpack.c.bf16 %v2956, %v2955
        %v2988 = vpack.c.bf16 %v2958, %v2957
        %v2989 = vpack.c.bf16 %v2960, %v2959
        %v2990 = vpack.c.bf16 %v2962, %v2961
        %v2991 = vpack.c.bf16 %v2964, %v2963
        %v2992 = vpack.c.bf16 %v2966, %v2965
        %v2993 = vpack.c.bf16 %v2968, %v2967
        %v2994 = vpack.c.bf16 %v2970, %v2969
        %v2995 = vpack.c.bf16 %v2972, %v2971
        %v2996 = vpack.c.bf16 %v2974, %v2973
        %v2997 = vpack.c.bf16 %v2976, %v2975
        %v2998 = vpack.c.bf16 %v2977, %v2977
        %vm3001 = vcmask 1046528
        %v3002 = vrot.slane %v2997, 1
        %v3003 = vrot.slane %v2998, 1
        %v3004 = vsel %vm3001, %v3002, %v3003
        %vm3024 = vcmask 1040384
        %v3025 = vrot.slane %v2978, 7
        %v3026 = vrot.slane %v2979, 7
        %v3027 = vsel %vm3024, %v3025, %v3026
        %v3028 = vrot.slane %v2980, 7
        %v3029 = vsel %vm3024, %v3026, %v3028
        %v3030 = vrot.slane %v2981, 7
        %v3031 = vsel %vm3024, %v3028, %v3030
        %v3032 = vrot.slane %v2982, 7
        %v3033 = vsel %vm3024, %v3030, %v3032
        %v3034 = vrot.slane %v2983, 7
        %v3035 = vsel %vm3024, %v3032, %v3034
        %v3036 = vrot.slane %v2984, 7
        %v3037 = vsel %vm3024, %v3034, %v3036
        %v3038 = vrot.slane %v2985, 7
        %v3039 = vsel %vm3024, %v3036, %v3038
        %v3040 = vrot.slane %v2986, 7
        %v3041 = vsel %vm3024, %v3038, %v3040
        %v3042 = vrot.slane %v2987, 7
        %v3043 = vsel %vm3024, %v3040, %v3042
        %v3044 = vrot.slane %v2988, 7
        %v3045 = vsel %vm3024, %v3042, %v3044
        %v3046 = vrot.slane %v2989, 7
        %v3047 = vsel %vm3024, %v3044, %v3046
        %v3048 = vrot.slane %v2990, 7
        %v3049 = vsel %vm3024, %v3046, %v3048
        %v3050 = vrot.slane %v2991, 7
        %v3051 = vsel %vm3024, %v3048, %v3050
        %v3052 = vrot.slane %v2992, 7
        %v3053 = vsel %vm3024, %v3050, %v3052
        %v3054 = vrot.slane %v2993, 7
        %v3055 = vsel %vm3024, %v3052, %v3054
        %v3056 = vrot.slane %v2994, 7
        %v3057 = vsel %vm3024, %v3054, %v3056
        %v3058 = vrot.slane %v2995, 7
        %v3059 = vsel %vm3024, %v3056, %v3058
        %v3060 = vrot.slane %v2996, 7
        %v3061 = vsel %vm3024, %v3058, %v3060
        %v3062 = vrot.slane %v2997, 7
        %v3063 = vsel %vm3024, %v3060, %v3062
        %vm3064 = vcmask 1040384
        %v3067 = vsel %vm3064, %v3003, %v3025
        %v3068 = vrot.slane %v2979, 1
        %v3069 = vrot.slane %v2980, 1
        %v3070 = vsel %vm3001, %v3068, %v3069
        %v3071 = vrot.slane %v2981, 1
        %v3072 = vsel %vm3001, %v3069, %v3071
        %v3073 = vrot.slane %v2982, 1
        %v3074 = vsel %vm3001, %v3071, %v3073
        %v3075 = vrot.slane %v2983, 1
        %v3076 = vsel %vm3001, %v3073, %v3075
        %v3077 = vrot.slane %v2984, 1
        %v3078 = vsel %vm3001, %v3075, %v3077
        %v3079 = vrot.slane %v2985, 1
        %v3080 = vsel %vm3001, %v3077, %v3079
        %v3081 = vrot.slane %v2986, 1
        %v3082 = vsel %vm3001, %v3079, %v3081
        %v3083 = vrot.slane %v2987, 1
        %v3084 = vsel %vm3001, %v3081, %v3083
        %v3085 = vrot.slane %v2988, 1
        %v3086 = vsel %vm3001, %v3083, %v3085
        %v3087 = vrot.slane %v2989, 1
        %v3088 = vsel %vm3001, %v3085, %v3087
        %v3089 = vrot.slane %v2990, 1
        %v3090 = vsel %vm3001, %v3087, %v3089
        %v3091 = vrot.slane %v2991, 1
        %v3092 = vsel %vm3001, %v3089, %v3091
        %v3093 = vrot.slane %v2992, 1
        %v3094 = vsel %vm3001, %v3091, %v3093
        %v3095 = vrot.slane %v2993, 1
        %v3096 = vsel %vm3001, %v3093, %v3095
        %v3097 = vrot.slane %v2994, 1
        %v3098 = vsel %vm3001, %v3095, %v3097
        %v3099 = vrot.slane %v2995, 1
        %v3100 = vsel %vm3001, %v3097, %v3099
        %v3101 = vrot.slane %v2996, 1
        %v3102 = vsel %vm3001, %v3099, %v3101
        %v3103 = vsel %vm3001, %v3101, %v3002
        %3104 = vrot.lane.b32.xlu0 %v2978, 32
        %v3105 = vpop.permute.xlu0 %3104
        %3106 = vrot.lane.b32.xlu0 %v2979, 32
        %v3107 = vpop.permute.xlu0 %3106
        %3108 = vrot.lane.b32.xlu0 %v2980, 32
        %v3109 = vpop.permute.xlu0 %3108
        %3110 = vrot.lane.b32.xlu0 %v2981, 32
        %v3111 = vpop.permute.xlu0 %3110
        %3112 = vrot.lane.b32.xlu0 %v2982, 32
        %v3113 = vpop.permute.xlu0 %3112
        %3114 = vrot.lane.b32.xlu0 %v2983, 32
        %v3115 = vpop.permute.xlu0 %3114
        %3116 = vrot.lane.b32.xlu0 %v2984, 32
        %v3117 = vpop.permute.xlu0 %3116
        %3118 = vrot.lane.b32.xlu0 %v2985, 32
        %v3119 = vpop.permute.xlu0 %3118
        %3120 = vrot.lane.b32.xlu0 %v2986, 32
        %v3121 = vpop.permute.xlu0 %3120
        %3122 = vrot.lane.b32.xlu0 %v2987, 32
        %v3123 = vpop.permute.xlu0 %3122
        %3124 = vrot.lane.b32.xlu0 %v2988, 32
        %v3125 = vpop.permute.xlu0 %3124
        %3126 = vrot.lane.b32.xlu0 %v2989, 32
        %v3127 = vpop.permute.xlu0 %3126
        %3128 = vrot.lane.b32.xlu0 %v2990, 32
        %v3129 = vpop.permute.xlu0 %3128
        %3130 = vrot.lane.b32.xlu0 %v2991, 32
        %v3131 = vpop.permute.xlu0 %3130
        %3132 = vrot.lane.b32.xlu0 %v2992, 32
        %v3133 = vpop.permute.xlu0 %3132
        %3134 = vrot.lane.b32.xlu0 %v2993, 32
        %v3135 = vpop.permute.xlu0 %3134
        %3136 = vrot.lane.b32.xlu0 %v2994, 32
        %v3137 = vpop.permute.xlu0 %3136
        %3138 = vrot.lane.b32.xlu0 %v2995, 32
        %v3139 = vpop.permute.xlu0 %3138
        %3140 = vrot.lane.b32.xlu0 %v2996, 32
        %v3141 = vpop.permute.xlu0 %3140
        %3142 = vrot.lane.b32.xlu0 %v2997, 32
        %v3143 = vpop.permute.xlu0 %3142
        %3144 = vrot.lane.b32.xlu0 %v2998, 32
        %v3145 = vpop.permute.xlu0 %3144
        %3147 = vrot.lane.b32.xlu0 %v3070, 64
        %v3148 = vpop.permute.xlu0 %3147
        %3149 = vrot.lane.b32.xlu0 %v3072, 64
        %v3150 = vpop.permute.xlu0 %3149
        %3151 = vrot.lane.b32.xlu0 %v3074, 64
        %v3152 = vpop.permute.xlu0 %3151
        %3153 = vrot.lane.b32.xlu0 %v3076, 64
        %v3154 = vpop.permute.xlu0 %3153
        %3155 = vrot.lane.b32.xlu0 %v3078, 64
        %v3156 = vpop.permute.xlu0 %3155
        %3157 = vrot.lane.b32.xlu0 %v3080, 64
        %v3158 = vpop.permute.xlu0 %3157
        %3159 = vrot.lane.b32.xlu0 %v3082, 64
        %v3160 = vpop.permute.xlu0 %3159
        %3161 = vrot.lane.b32.xlu0 %v3084, 64
        %v3162 = vpop.permute.xlu0 %3161
        %3163 = vrot.lane.b32.xlu0 %v3086, 64
        %v3164 = vpop.permute.xlu0 %3163
        %3165 = vrot.lane.b32.xlu0 %v3088, 64
        %v3166 = vpop.permute.xlu0 %3165
        %3167 = vrot.lane.b32.xlu0 %v3090, 64
        %v3168 = vpop.permute.xlu0 %3167
        %3169 = vrot.lane.b32.xlu0 %v3092, 64
        %v3170 = vpop.permute.xlu0 %3169
        %3171 = vrot.lane.b32.xlu0 %v3094, 64
        %v3172 = vpop.permute.xlu0 %3171
        %3173 = vrot.lane.b32.xlu0 %v3096, 64
        %v3174 = vpop.permute.xlu0 %3173
        %3175 = vrot.lane.b32.xlu0 %v3098, 64
        %v3176 = vpop.permute.xlu0 %3175
        %3177 = vrot.lane.b32.xlu0 %v3100, 64
        %v3178 = vpop.permute.xlu0 %3177
        %3179 = vrot.lane.b32.xlu0 %v3102, 64
        %v3180 = vpop.permute.xlu0 %3179
        %3181 = vrot.lane.b32.xlu0 %v3103, 64
        %v3182 = vpop.permute.xlu0 %3181
        %3183 = vrot.lane.b32.xlu0 %v3004, 64
        %v3184 = vpop.permute.xlu0 %3183
        %3185 = vrot.lane.b32.xlu0 %v3067, 64
        %v3186 = vpop.permute.xlu0 %3185
        %3187 = vrot.lane.b32.xlu0 %v3027, 64
        %v3188 = vpop.permute.xlu0 %3187
        %vm3189 = vcmask 261120
        %v3192 = vsel %vm3189, %v3004, %v3105
        %v3194 = vsel %vm3189, %v3067, %v3107
        %v3197 = vsel %vm3189, %v3027, %v3109
        %v3200 = vsel %vm3189, %v3029, %v3111
        %v3203 = vsel %vm3189, %v3031, %v3113
        %v3206 = vsel %vm3189, %v3033, %v3115
        %v3209 = vsel %vm3189, %v3035, %v3117
        %v3212 = vsel %vm3189, %v3037, %v3119
        %v3215 = vsel %vm3189, %v3039, %v3121
        %v3218 = vsel %vm3189, %v3041, %v3123
        %v3221 = vsel %vm3189, %v3043, %v3125
        %v3224 = vsel %vm3189, %v3045, %v3127
        %v3227 = vsel %vm3189, %v3047, %v3129
        %v3230 = vsel %vm3189, %v3049, %v3131
        %v3233 = vsel %vm3189, %v3051, %v3133
        %v3236 = vsel %vm3189, %v3053, %v3135
        %v3239 = vsel %vm3189, %v3055, %v3137
        %v3242 = vsel %vm3189, %v3057, %v3139
        %v3245 = vsel %vm3189, %v3059, %v3141
        %v3248 = vsel %vm3189, %v3061, %v3143
        %v3251 = vsel %vm3189, %v3063, %v3145
        %vm3252 = vcmask 523264
        %v3254 = vsel %vm3252, %v3192, %v3148
        %v3256 = vsel %vm3252, %v3194, %v3150
        %v3258 = vsel %vm3252, %v3197, %v3152
        %v3260 = vsel %vm3252, %v3200, %v3154
        %v3262 = vsel %vm3252, %v3203, %v3156
        %v3264 = vsel %vm3252, %v3206, %v3158
        %v3266 = vsel %vm3252, %v3209, %v3160
        %v3268 = vsel %vm3252, %v3212, %v3162
        %v3270 = vsel %vm3252, %v3215, %v3164
        %v3272 = vsel %vm3252, %v3218, %v3166
        %v3274 = vsel %vm3252, %v3221, %v3168
        %v3276 = vsel %vm3252, %v3224, %v3170
        %v3278 = vsel %vm3252, %v3227, %v3172
        %v3280 = vsel %vm3252, %v3230, %v3174
        %v3282 = vsel %vm3252, %v3233, %v3176
        %v3284 = vsel %vm3252, %v3236, %v3178
        %v3286 = vsel %vm3252, %v3239, %v3180
        %v3288 = vsel %vm3252, %v3242, %v3182
        %v3290 = vsel %vm3252, %v3245, %v3184
        %v3292 = vsel %vm3252, %v3248, %v3186
        %v3294 = vsel %vm3252, %v3251, %v3188
        %v3295 = vld [vmem:[%s3] sm:$0xf]
        %v3296 = vld [vmem:[%s3 + $0x4] sm:$0xf]
        %v3297 = vld [vmem:[%s3 + $0x8] sm:$0xf]
        %v3298 = vld [vmem:[%s3 + $0xc] sm:$0xf]
        %v3299 = vld [vmem:[%s3 + $0x10] sm:$0xf]
        %v3300 = vld [vmem:[%s3 + $0x14] sm:$0xf]
        %v3301 = vld [vmem:[%s3 + $0x18] sm:$0xf]
        %v3302 = vld [vmem:[%s3 + $0x1c] sm:$0xf]
        %v3303 = vld [vmem:[%s3 + $0x20] sm:$0xf]
        %v3304 = vld [vmem:[%s3 + $0x24] sm:$0xf]
        %v3305 = vld [vmem:[%s3 + $0x28] sm:$0xf]
        %v3306 = vld [vmem:[%s3 + $0x2c] sm:$0xf]
        %v3319 = vunpack.c.l.b16 %v3295
        %v3320 = vunpack.c.l.b16 %v3296
        %v3321 = vunpack.c.l.b16 %v3297
        %v3322 = vunpack.c.l.b16 %v3298
        %v3323 = vunpack.c.l.b16 %v3299
        %v3324 = vunpack.c.l.b16 %v3300
        %v3325 = vunpack.c.l.b16 %v3301
        %v3326 = vunpack.c.l.b16 %v3302
        %v3327 = vunpack.c.l.b16 %v3303
        %v3328 = vunpack.c.l.b16 %v3304
        %v3329 = vunpack.c.l.b16 %v3305
        %v3330 = vunpack.c.l.b16 %v3306
        %v3331 = vpack.c.b16 %v3320, %v3319
        %v3332 = vpack.c.b16 %v3322, %v3321
        %v3333 = vpack.c.b16 %v3324, %v3323
        %v3334 = vpack.c.b16 %v3326, %v3325
        %v3335 = vpack.c.b16 %v3328, %v3327
        %v3336 = vpack.c.b16 %v3330, %v3329
        %vm3343 = vcmask 785408
        %v3344 = vsel %vm3343, %v3254, 0
        %v3346 = vsel %vm3343, %v3256, 0
        %v3348 = vsel %vm3343, %v3258, 0
        %v3350 = vsel %vm3343, %v3260, 0
        %v3352 = vsel %vm3343, %v3262, 0
        %v3354 = vsel %vm3343, %v3264, 0
        %v3356 = vsel %vm3343, %v3266, 0
        %v3358 = vsel %vm3343, %v3268, 0
        %v3360 = vsel %vm3343, %v3270, 0
        %v3362 = vsel %vm3343, %v3272, 0
        %v3364 = vsel %vm3343, %v3274, 0
        %v3366 = vsel %vm3343, %v3276, 0
        %v3368 = vsel %vm3343, %v3278, 0
        %v3370 = vsel %vm3343, %v3280, 0
        %v3372 = vsel %vm3343, %v3282, 0
        %v3374 = vsel %vm3343, %v3284, 0
        %v3376 = vsel %vm3343, %v3286, 0
        %v3378 = vsel %vm3343, %v3288, 0
        %v3380 = vsel %vm3343, %v3290, 0
        %v3382 = vsel %vm3343, %v3292, 0
        %v3384 = vsel %vm3343, %v3294, 0
        %3386 = vmatprep.subr.bf16.mxu0 0
        %3387 = vmatpush1.bf16.msra.mxu0 %v3331
        %3388 = vmatprep.subr.bf16.mxu0 0
        %3389 = vmatpush1.bf16.msra.mxu0 %v3332
        %3390 = vmatprep.subr.bf16.mxu0 0
        %3391 = vmatpush1.bf16.msra.mxu0 %v3333
        %3392 = vmatprep.subr.bf16.mxu0 0
        %3393 = vmatpush1.bf16.msra.mxu0 %v3334
        %3394 = vmatprep.subr.bf16.mxu0 0
        %3395 = vmatpush1.bf16.msra.mxu0 %v3335
        %3396 = vmatprep.subr.bf16.mxu0 0
        %3397 = vmatpush1.bf16.msra.mxu0 %v3336
        %3398 = vmatprep.subr.bf16.mxu0 0
        %3399 = vmatpush1.bf16.msra.mxu0 0
        %3400 = vmatprep.subr.bf16.mxu0 0
        %3401 = vmatpush1.bf16.msra.mxu0 0
        %3402 = vmatprep.subr.bf16.mxu0 0
        %3403 = vmatpush1.bf16.msra.mxu0 0
        %3404 = vmatprep.subr.bf16.mxu0 0
        %3405 = vmatpush1.bf16.msra.mxu0 0
        %3406 = vmatprep.subr.bf16.mxu0 0
        %3407 = vmatpush1.bf16.msra.mxu0 0
        %3408 = vmatprep.subr.bf16.mxu0 0
        %3409 = vmatpush1.bf16.msra.mxu0 0
        %3410 = vmatprep.subr.bf16.mxu0 0
        %3411 = vmatpush1.bf16.msra.mxu0 0
        %3412 = vmatprep.subr.bf16.mxu0 0
        %3413 = vmatpush1.bf16.msra.mxu0 0
        %3414 = vmatprep.subr.bf16.mxu0 0
        %3415 = vmatpush1.bf16.msra.mxu0 0
        %3416 = vmatprep.subr.bf16.mxu0 0
        %3417 = vmatpush1.bf16.msra.mxu0 0
        %3418 = vmatprep.mubr.bf16.mxu0 0
        %3419 = vmatmul.mubr.bf16.gmra.mrb[0].mxu0 %v3344
        %v3420 = vpop.f32.mrb[0].mxu0
        %v3421 = vadd.f32 0.0, %v3420
        %v3422 = vpop.f32.mrb[0].mxu0
        %v3423 = vpop.f32.mrb[0].mxu0
        %v3424 = vadd.f32 0.0, %v3423
        %v3425 = vpop.f32.mrb[0].mxu0
        %3426 = vmatprep.mubr.bf16.mxu0 0
        %3427 = vmatmul.mubr.bf16.gmra.mrb[0].mxu0 %v3346
        %v3428 = vpop.f32.mrb[0].mxu0
        %v3429 = vadd.f32 0.0, %v3428
        %v3430 = vpop.f32.mrb[0].mxu0
        %v3431 = vpop.f32.mrb[0].mxu0
        %v3432 = vadd.f32 0.0, %v3431
        %v3433 = vpop.f32.mrb[0].mxu0
        %3434 = vmatprep.mubr.bf16.mxu0 0
        %3435 = vmatmul.mubr.bf16.gmra.mrb[0].mxu0 %v3348
        %v3436 = vpop.f32.mrb[0].mxu0
        %v3437 = vadd.f32 0.0, %v3436
        %v3438 = vpop.f32.mrb[0].mxu0
        %v3439 = vpop.f32.mrb[0].mxu0
        %v3440 = vadd.f32 0.0, %v3439
        %v3441 = vpop.f32.mrb[0].mxu0
        %3442 = vmatprep.mubr.bf16.mxu0 0
        %3443 = vmatmul.mubr.bf16.gmra.mrb[0].mxu0 %v3350
        %v3444 = vpop.f32.mrb[0].mxu0
        %v3445 = vadd.f32 0.0, %v3444
        %v3446 = vpop.f32.mrb[0].mxu0
        %v3447 = vpop.f32.mrb[0].mxu0
        %v3448 = vadd.f32 0.0, %v3447
        %v3449 = vpop.f32.mrb[0].mxu0
        %3450 = vmatprep.mubr.bf16.mxu0 0
        %3451 = vmatmul.mubr.bf16.gmra.mrb[0].mxu0 %v3352
        %v3452 = vpop.f32.mrb[0].mxu0
        %v3453 = vadd.f32 0.0, %v3452
        %v3454 = vpop.f32.mrb[0].mxu0
        %v3455 = vpop.f32.mrb[0].mxu0
        %v3456 = vadd.f32 0.0, %v3455
        %v3457 = vpop.f32.mrb[0].mxu0
        %3458 = vmatprep.mubr.bf16.mxu0 0
        %3459 = vmatmul.mubr.bf16.gmra.mrb[0].mxu0 %v3354
        %v3460 = vpop.f32.mrb[0].mxu0
        %v3461 = vadd.f32 0.0, %v3460
        %v3462 = vpop.f32.mrb[0].mxu0
        %v3463 = vpop.f32.mrb[0].mxu0
        %v3464 = vadd.f32 0.0, %v3463
        %v3465 = vpop.f32.mrb[0].mxu0
        %3466 = vmatprep.mubr.bf16.mxu0 0
        %3467 = vmatmul.mubr.bf16.gmra.mrb[0].mxu0 %v3356
        %v3468 = vpop.f32.mrb[0].mxu0
        %v3469 = vadd.f32 0.0, %v3468
        %v3470 = vpop.f32.mrb[0].mxu0
        %v3471 = vpop.f32.mrb[0].mxu0
        %v3472 = vadd.f32 0.0, %v3471
        %v3473 = vpop.f32.mrb[0].mxu0
        %3474 = vmatprep.mubr.bf16.mxu0 0
        %3475 = vmatmul.mubr.bf16.gmra.mrb[0].mxu0 %v3358
        %v3476 = vpop.f32.mrb[0].mxu0
        %v3477 = vadd.f32 0.0, %v3476
        %v3478 = vpop.f32.mrb[0].mxu0
        %v3479 = vpop.f32.mrb[0].mxu0
        %v3480 = vadd.f32 0.0, %v3479
        %v3481 = vpop.f32.mrb[0].mxu0
        %3482 = vmatprep.mubr.bf16.mxu0 0
        %3483 = vmatmul.mubr.bf16.gmra.mrb[0].mxu0 %v3360
        %v3484 = vpop.f32.mrb[0].mxu0
        %v3485 = vadd.f32 0.0, %v3484
        %v3486 = vpop.f32.mrb[0].mxu0
        %v3487 = vpop.f32.mrb[0].mxu0
        %v3488 = vadd.f32 0.0, %v3487
        %v3489 = vpop.f32.mrb[0].mxu0
        %3490 = vmatprep.mubr.bf16.mxu0 0
        %3491 = vmatmul.mubr.bf16.gmra.mrb[0].mxu0 %v3362
        %v3492 = vpop.f32.mrb[0].mxu0
        %v3493 = vadd.f32 0.0, %v3492
        %v3494 = vpop.f32.mrb[0].mxu0
        %v3495 = vpop.f32.mrb[0].mxu0
        %v3496 = vadd.f32 0.0, %v3495
        %v3497 = vpop.f32.mrb[0].mxu0
        %3498 = vmatprep.mubr.bf16.mxu0 0
        %3499 = vmatmul.mubr.bf16.gmra.mrb[0].mxu0 %v3364
        %v3500 = vpop.f32.mrb[0].mxu0
        %v3501 = vadd.f32 0.0, %v3500
        %v3502 = vpop.f32.mrb[0].mxu0
        %v3503 = vpop.f32.mrb[0].mxu0
        %v3504 = vadd.f32 0.0, %v3503
        %v3505 = vpop.f32.mrb[0].mxu0
        %3506 = vmatprep.mubr.bf16.mxu0 0
        %3507 = vmatmul.mubr.bf16.gmra.mrb[0].mxu0 %v3366
        %v3508 = vpop.f32.mrb[0].mxu0
        %v3509 = vadd.f32 0.0, %v3508
        %v3510 = vpop.f32.mrb[0].mxu0
        %v3511 = vpop.f32.mrb[0].mxu0
        %v3512 = vadd.f32 0.0, %v3511
        %v3513 = vpop.f32.mrb[0].mxu0
        %3514 = vmatprep.mubr.bf16.mxu0 0
        %3515 = vmatmul.mubr.bf16.gmra.mrb[0].mxu0 %v3368
        %v3516 = vpop.f32.mrb[0].mxu0
        %v3517 = vadd.f32 0.0, %v3516
        %v3518 = vpop.f32.mrb[0].mxu0
        %v3519 = vpop.f32.mrb[0].mxu0
        %v3520 = vadd.f32 0.0, %v3519
        %v3521 = vpop.f32.mrb[0].mxu0
        %3522 = vmatprep.mubr.bf16.mxu0 0
        %3523 = vmatmul.mubr.bf16.gmra.mrb[0].mxu0 %v3370
        %v3524 = vpop.f32.mrb[0].mxu0
        %v3525 = vadd.f32 0.0, %v3524
        %v3526 = vpop.f32.mrb[0].mxu0
        %v3527 = vpop.f32.mrb[0].mxu0
        %v3528 = vadd.f32 0.0, %v3527
        %v3529 = vpop.f32.mrb[0].mxu0
        %3530 = vmatprep.mubr.bf16.mxu0 0
        %3531 = vmatmul.mubr.bf16.gmra.mrb[0].mxu0 %v3372
        %v3532 = vpop.f32.mrb[0].mxu0
        %v3533 = vadd.f32 0.0, %v3532
        %v3534 = vpop.f32.mrb[0].mxu0
        %v3535 = vpop.f32.mrb[0].mxu0
        %v3536 = vadd.f32 0.0, %v3535
        %v3537 = vpop.f32.mrb[0].mxu0
        %3538 = vmatprep.mubr.bf16.mxu0 0
        %3539 = vmatmul.mubr.bf16.gmra.mrb[0].mxu0 %v3374
        %v3540 = vpop.f32.mrb[0].mxu0
        %v3541 = vadd.f32 0.0, %v3540
        %v3542 = vpop.f32.mrb[0].mxu0
        %v3543 = vpop.f32.mrb[0].mxu0
        %v3544 = vadd.f32 0.0, %v3543
        %v3545 = vpop.f32.mrb[0].mxu0
        %3546 = vmatprep.mubr.bf16.mxu0 0
        %3547 = vmatmul.mubr.bf16.gmra.mrb[0].mxu0 %v3376
        %v3548 = vpop.f32.mrb[0].mxu0
        %v3549 = vadd.f32 0.0, %v3548
        %v3550 = vpop.f32.mrb[0].mxu0
        %v3551 = vpop.f32.mrb[0].mxu0
        %v3552 = vadd.f32 0.0, %v3551
        %v3553 = vpop.f32.mrb[0].mxu0
        %3554 = vmatprep.mubr.bf16.mxu0 0
        %3555 = vmatmul.mubr.bf16.gmra.mrb[0].mxu0 %v3378
        %v3556 = vpop.f32.mrb[0].mxu0
        %v3557 = vadd.f32 0.0, %v3556
        %v3558 = vpop.f32.mrb[0].mxu0
        %v3559 = vpop.f32.mrb[0].mxu0
        %v3560 = vadd.f32 0.0, %v3559
        %v3561 = vpop.f32.mrb[0].mxu0
        %3562 = vmatprep.mubr.bf16.mxu0 0
        %3563 = vmatmul.mubr.bf16.gmra.mrb[0].mxu0 %v3380
        %v3564 = vpop.f32.mrb[0].mxu0
        %v3565 = vadd.f32 0.0, %v3564
        %v3566 = vpop.f32.mrb[0].mxu0
        %v3567 = vpop.f32.mrb[0].mxu0
        %v3568 = vadd.f32 0.0, %v3567
        %v3569 = vpop.f32.mrb[0].mxu0
        %3570 = vmatprep.mubr.bf16.mxu0 0
        %3571 = vmatmul.mubr.bf16.gmra.mrb[0].mxu0 %v3382
        %v3572 = vpop.f32.mrb[0].mxu0
        %v3573 = vadd.f32 0.0, %v3572
        %v3574 = vpop.f32.mrb[0].mxu0
        %v3575 = vpop.f32.mrb[0].mxu0
        %v3576 = vadd.f32 0.0, %v3575
        %v3577 = vpop.f32.mrb[0].mxu0
        %3578 = vmatprep.mubr.bf16.mxu0 0
        %3579 = vmatmul.mubr.bf16.gmra.mrb[0].mxu0 %v3384
        %v3580 = vpop.f32.mrb[0].mxu0
        %v3581 = vadd.f32 0.0, %v3580
        %v3582 = vpop.f32.mrb[0].mxu0
        %v3583 = vpop.f32.mrb[0].mxu0
        %v3584 = vpop.f32.mrb[0].mxu0
        %3585 = vdwg.mxu0
        %s3586 = scalar_lea.vmem %s3, 48
        %v3587 = vld [vmem:[%s3586] sm:$0xf]
        %v3588 = vld [vmem:[%s3586 + $0x4] sm:$0xf]
        %v3589 = vld [vmem:[%s3586 + $0x8] sm:$0xf]
        %v3590 = vld [vmem:[%s3586 + $0xc] sm:$0xf]
        %v3591 = vld [vmem:[%s3586 + $0x10] sm:$0xf]
        %v3592 = vld [vmem:[%s3586 + $0x14] sm:$0xf]
        %v3593 = vld [vmem:[%s3586 + $0x18] sm:$0xf]
        %v3594 = vld [vmem:[%s3586 + $0x1c] sm:$0xf]
        %v3595 = vld [vmem:[%s3586 + $0x20] sm:$0xf]
        %v3596 = vld [vmem:[%s3586 + $0x24] sm:$0xf]
        %v3597 = vld [vmem:[%s3586 + $0x28] sm:$0xf]
        %v3598 = vld [vmem:[%s3586 + $0x2c] sm:$0xf]
        %v3611 = vunpack.c.l.b16 %v3587
        %v3612 = vunpack.c.l.b16 %v3588
        %v3613 = vunpack.c.l.b16 %v3589
        %v3614 = vunpack.c.l.b16 %v3590
        %v3615 = vunpack.c.l.b16 %v3591
        %v3616 = vunpack.c.l.b16 %v3592
        %v3617 = vunpack.c.l.b16 %v3593
        %v3618 = vunpack.c.l.b16 %v3594
        %v3619 = vunpack.c.l.b16 %v3595
        %v3620 = vunpack.c.l.b16 %v3596
        %v3621 = vunpack.c.l.b16 %v3597
        %v3622 = vunpack.c.l.b16 %v3598
        %v3623 = vpack.c.b16 %v3612, %v3611
        %v3624 = vpack.c.b16 %v3614, %v3613
        %v3625 = vpack.c.b16 %v3616, %v3615
        %v3626 = vpack.c.b16 %v3618, %v3617
        %v3627 = vpack.c.b16 %v3620, %v3619
        %v3628 = vpack.c.b16 %v3622, %v3621
        %3635 = vmatprep.subr.bf16.mxu0 0
        %3636 = vmatpush1.bf16.msra.mxu0 %v3623
        %3637 = vmatprep.subr.bf16.mxu0 0
        %3638 = vmatpush1.bf16.msra.mxu0 %v3624
        %3639 = vmatprep.subr.bf16.mxu0 0
        %3640 = vmatpush1.bf16.msra.mxu0 %v3625
        %3641 = vmatprep.subr.bf16.mxu0 0
        %3642 = vmatpush1.bf16.msra.mxu0 %v3626
        %3643 = vmatprep.subr.bf16.mxu0 0
        %3644 = vmatpush1.bf16.msra.mxu0 %v3627
        %3645 = vmatprep.subr.bf16.mxu0 0
        %3646 = vmatpush1.bf16.msra.mxu0 %v3628
        %3647 = vmatprep.subr.bf16.mxu0 0
        %3648 = vmatpush1.bf16.msra.mxu0 0
        %3649 = vmatprep.subr.bf16.mxu0 0
        %3650 = vmatpush1.bf16.msra.mxu0 0
        %3651 = vmatprep.subr.bf16.mxu0 0
        %3652 = vmatpush1.bf16.msra.mxu0 0
        %3653 = vmatprep.subr.bf16.mxu0 0
        %3654 = vmatpush1.bf16.msra.mxu0 0
        %3655 = vmatprep.subr.bf16.mxu0 0
        %3656 = vmatpush1.bf16.msra.mxu0 0
        %3657 = vmatprep.subr.bf16.mxu0 0
        %3658 = vmatpush1.bf16.msra.mxu0 0
        %3659 = vmatprep.subr.bf16.mxu0 0
        %3660 = vmatpush1.bf16.msra.mxu0 0
        %3661 = vmatprep.subr.bf16.mxu0 0
        %3662 = vmatpush1.bf16.msra.mxu0 0
        %3663 = vmatprep.subr.bf16.mxu0 0
        %3664 = vmatpush1.bf16.msra.mxu0 0
        %3665 = vmatprep.subr.bf16.mxu0 0
        %3666 = vmatpush1.bf16.msra.mxu0 0
        %3667 = vmatprep.mubr.bf16.mxu0 0
        %3668 = vmatmul.mubr.bf16.gmra.mrb[0].mxu0 %v3344
        %v3669 = vpop.f32.mrb[0].mxu0
        %v3670 = vadd.f32 0.0, %v3669
        %v3671 = vpop.f32.mrb[0].mxu0
        %v3672 = vpop.f32.mrb[0].mxu0
        %v3673 = vadd.f32 0.0, %v3672
        %v3674 = vpop.f32.mrb[0].mxu0
        %3675 = vmatprep.mubr.bf16.mxu0 0
        %3676 = vmatmul.mubr.bf16.gmra.mrb[0].mxu0 %v3346
        %v3677 = vpop.f32.mrb[0].mxu0
        %v3678 = vadd.f32 0.0, %v3677
        %v3679 = vpop.f32.mrb[0].mxu0
        %v3680 = vpop.f32.mrb[0].mxu0
        %v3681 = vadd.f32 0.0, %v3680
        %v3682 = vpop.f32.mrb[0].mxu0
        %3683 = vmatprep.mubr.bf16.mxu0 0
        %3684 = vmatmul.mubr.bf16.gmra.mrb[0].mxu0 %v3348
        %v3685 = vpop.f32.mrb[0].mxu0
        %v3686 = vadd.f32 0.0, %v3685
        %v3687 = vpop.f32.mrb[0].mxu0
        %v3688 = vpop.f32.mrb[0].mxu0
        %v3689 = vadd.f32 0.0, %v3688
        %v3690 = vpop.f32.mrb[0].mxu0
        %3691 = vmatprep.mubr.bf16.mxu0 0
        %3692 = vmatmul.mubr.bf16.gmra.mrb[0].mxu0 %v3350
        %v3693 = vpop.f32.mrb[0].mxu0
        %v3694 = vadd.f32 0.0, %v3693
        %v3695 = vpop.f32.mrb[0].mxu0
        %v3696 = vpop.f32.mrb[0].mxu0
        %v3697 = vadd.f32 0.0, %v3696
        %v3698 = vpop.f32.mrb[0].mxu0
        %3699 = vmatprep.mubr.bf16.mxu0 0
        %3700 = vmatmul.mubr.bf16.gmra.mrb[0].mxu0 %v3352
        %v3701 = vpop.f32.mrb[0].mxu0
        %v3702 = vadd.f32 0.0, %v3701
        %v3703 = vpop.f32.mrb[0].mxu0
        %v3704 = vpop.f32.mrb[0].mxu0
        %v3705 = vadd.f32 0.0, %v3704
        %v3706 = vpop.f32.mrb[0].mxu0
        %3707 = vmatprep.mubr.bf16.mxu0 0
        %3708 = vmatmul.mubr.bf16.gmra.mrb[0].mxu0 %v3354
        %v3709 = vpop.f32.mrb[0].mxu0
        %v3710 = vadd.f32 0.0, %v3709
        %v3711 = vpop.f32.mrb[0].mxu0
        %v3712 = vpop.f32.mrb[0].mxu0
        %v3713 = vadd.f32 0.0, %v3712
        %v3714 = vpop.f32.mrb[0].mxu0
        %3715 = vmatprep.mubr.bf16.mxu0 0
        %3716 = vmatmul.mubr.bf16.gmra.mrb[0].mxu0 %v3356
        %v3717 = vpop.f32.mrb[0].mxu0
        %v3718 = vadd.f32 0.0, %v3717
        %v3719 = vpop.f32.mrb[0].mxu0
        %v3720 = vpop.f32.mrb[0].mxu0
        %v3721 = vadd.f32 0.0, %v3720
        %v3722 = vpop.f32.mrb[0].mxu0
        %3723 = vmatprep.mubr.bf16.mxu0 0
        %3724 = vmatmul.mubr.bf16.gmra.mrb[0].mxu0 %v3358
        %v3725 = vpop.f32.mrb[0].mxu0
        %v3726 = vadd.f32 0.0, %v3725
        %v3727 = vpop.f32.mrb[0].mxu0
        %v3728 = vpop.f32.mrb[0].mxu0
        %v3729 = vadd.f32 0.0, %v3728
        %v3730 = vpop.f32.mrb[0].mxu0
        %3731 = vmatprep.mubr.bf16.mxu0 0
        %3732 = vmatmul.mubr.bf16.gmra.mrb[0].mxu0 %v3360
        %v3733 = vpop.f32.mrb[0].mxu0
        %v3734 = vadd.f32 0.0, %v3733
        %v3735 = vpop.f32.mrb[0].mxu0
        %v3736 = vpop.f32.mrb[0].mxu0
        %v3737 = vadd.f32 0.0, %v3736
        %v3738 = vpop.f32.mrb[0].mxu0
        %3739 = vmatprep.mubr.bf16.mxu0 0
        %3740 = vmatmul.mubr.bf16.gmra.mrb[0].mxu0 %v3362
        %v3741 = vpop.f32.mrb[0].mxu0
        %v3742 = vadd.f32 0.0, %v3741
        %v3743 = vpop.f32.mrb[0].mxu0
        %v3744 = vpop.f32.mrb[0].mxu0
        %v3745 = vadd.f32 0.0, %v3744
        %v3746 = vpop.f32.mrb[0].mxu0
        %3747 = vmatprep.mubr.bf16.mxu0 0
        %3748 = vmatmul.mubr.bf16.gmra.mrb[0].mxu0 %v3364
        %v3749 = vpop.f32.mrb[0].mxu0
        %v3750 = vadd.f32 0.0, %v3749
        %v3751 = vpop.f32.mrb[0].mxu0
        %v3752 = vpop.f32.mrb[0].mxu0
        %v3753 = vadd.f32 0.0, %v3752
        %v3754 = vpop.f32.mrb[0].mxu0
        %3755 = vmatprep.mubr.bf16.mxu0 0
        %3756 = vmatmul.mubr.bf16.gmra.mrb[0].mxu0 %v3366
        %v3757 = vpop.f32.mrb[0].mxu0
        %v3758 = vadd.f32 0.0, %v3757
        %v3759 = vpop.f32.mrb[0].mxu0
        %v3760 = vpop.f32.mrb[0].mxu0
        %v3761 = vadd.f32 0.0, %v3760
        %v3762 = vpop.f32.mrb[0].mxu0
        %3763 = vmatprep.mubr.bf16.mxu0 0
        %3764 = vmatmul.mubr.bf16.gmra.mrb[0].mxu0 %v3368
        %v3765 = vpop.f32.mrb[0].mxu0
        %v3766 = vadd.f32 0.0, %v3765
        %v3767 = vpop.f32.mrb[0].mxu0
        %v3768 = vpop.f32.mrb[0].mxu0
        %v3769 = vadd.f32 0.0, %v3768
        %v3770 = vpop.f32.mrb[0].mxu0
        %3771 = vmatprep.mubr.bf16.mxu0 0
        %3772 = vmatmul.mubr.bf16.gmra.mrb[0].mxu0 %v3370
        %v3773 = vpop.f32.mrb[0].mxu0
        %v3774 = vadd.f32 0.0, %v3773
        %v3775 = vpop.f32.mrb[0].mxu0
        %v3776 = vpop.f32.mrb[0].mxu0
        %v3777 = vadd.f32 0.0, %v3776
        %v3778 = vpop.f32.mrb[0].mxu0
        %3779 = vmatprep.mubr.bf16.mxu0 0
        %3780 = vmatmul.mubr.bf16.gmra.mrb[0].mxu0 %v3372
        %v3781 = vpop.f32.mrb[0].mxu0
        %v3782 = vadd.f32 0.0, %v3781
        %v3783 = vpop.f32.mrb[0].mxu0
        %v3784 = vpop.f32.mrb[0].mxu0
        %v3785 = vadd.f32 0.0, %v3784
        %v3786 = vpop.f32.mrb[0].mxu0
        %3787 = vmatprep.mubr.bf16.mxu0 0
        %3788 = vmatmul.mubr.bf16.gmra.mrb[0].mxu0 %v3374
        %v3789 = vpop.f32.mrb[0].mxu0
        %v3790 = vadd.f32 0.0, %v3789
        %v3791 = vpop.f32.mrb[0].mxu0
        %v3792 = vpop.f32.mrb[0].mxu0
        %v3793 = vadd.f32 0.0, %v3792
        %v3794 = vpop.f32.mrb[0].mxu0
        %3795 = vmatprep.mubr.bf16.mxu0 0
        %3796 = vmatmul.mubr.bf16.gmra.mrb[0].mxu0 %v3376
        %v3797 = vpop.f32.mrb[0].mxu0
        %v3798 = vadd.f32 0.0, %v3797
        %v3799 = vpop.f32.mrb[0].mxu0
        %v3800 = vpop.f32.mrb[0].mxu0
        %v3801 = vadd.f32 0.0, %v3800
        %v3802 = vpop.f32.mrb[0].mxu0
        %3803 = vmatprep.mubr.bf16.mxu0 0
        %3804 = vmatmul.mubr.bf16.gmra.mrb[0].mxu0 %v3378
        %v3805 = vpop.f32.mrb[0].mxu0
        %v3806 = vadd.f32 0.0, %v3805
        %v3807 = vpop.f32.mrb[0].mxu0
        %v3808 = vpop.f32.mrb[0].mxu0
        %v3809 = vadd.f32 0.0, %v3808
        %v3810 = vpop.f32.mrb[0].mxu0
        %3811 = vmatprep.mubr.bf16.mxu0 0
        %3812 = vmatmul.mubr.bf16.gmra.mrb[0].mxu0 %v3380
        %v3813 = vpop.f32.mrb[0].mxu0
        %v3814 = vadd.f32 0.0, %v3813
        %v3815 = vpop.f32.mrb[0].mxu0
        %v3816 = vpop.f32.mrb[0].mxu0
        %v3817 = vadd.f32 0.0, %v3816
        %v3818 = vpop.f32.mrb[0].mxu0
        %3819 = vmatprep.mubr.bf16.mxu0 0
        %3820 = vmatmul.mubr.bf16.gmra.mrb[0].mxu0 %v3382
        %v3821 = vpop.f32.mrb[0].mxu0
        %v3822 = vadd.f32 0.0, %v3821
        %v3823 = vpop.f32.mrb[0].mxu0
        %v3824 = vpop.f32.mrb[0].mxu0
        %v3825 = vadd.f32 0.0, %v3824
        %v3826 = vpop.f32.mrb[0].mxu0
        %3827 = vmatprep.mubr.bf16.mxu0 0
        %3828 = vmatmul.mubr.bf16.gmra.mrb[0].mxu0 %v3384
        %v3829 = vpop.f32.mrb[0].mxu0
        %v3830 = vadd.f32 0.0, %v3829
        %v3831 = vpop.f32.mrb[0].mxu0
        %v3832 = vpop.f32.mrb[0].mxu0
        %v3833 = vpop.f32.mrb[0].mxu0
        %3834 = vdwg.mxu0
        %s3835 = scalar_lea.vmem %s3, 96
        %v3836 = vld [vmem:[%s3835] sm:$0xf]
        %v3837 = vld [vmem:[%s3835 + $0x4] sm:$0xf]
        %v3838 = vld [vmem:[%s3835 + $0x8] sm:$0xf]
        %v3839 = vld [vmem:[%s3835 + $0xc] sm:$0xf]
        %v3840 = vld [vmem:[%s3835 + $0x10] sm:$0xf]
        %v3841 = vld [vmem:[%s3835 + $0x14] sm:$0xf]
        %v3842 = vld [vmem:[%s3835 + $0x18] sm:$0xf]
        %v3843 = vld [vmem:[%s3835 + $0x1c] sm:$0xf]
        %v3844 = vld [vmem:[%s3835 + $0x20] sm:$0xf]
        %v3845 = vld [vmem:[%s3835 + $0x24] sm:$0xf]
        %v3846 = vld [vmem:[%s3835 + $0x28] sm:$0xf]
        %v3847 = vld [vmem:[%s3835 + $0x2c] sm:$0xf]
        %v3860 = vunpack.c.l.b16 %v3836
        %v3861 = vunpack.c.l.b16 %v3837
        %v3862 = vunpack.c.l.b16 %v3838
        %v3863 = vunpack.c.l.b16 %v3839
        %v3864 = vunpack.c.l.b16 %v3840
        %v3865 = vunpack.c.l.b16 %v3841
        %v3866 = vunpack.c.l.b16 %v3842
        %v3867 = vunpack.c.l.b16 %v3843
        %v3868 = vunpack.c.l.b16 %v3844
        %v3869 = vunpack.c.l.b16 %v3845
        %v3870 = vunpack.c.l.b16 %v3846
        %v3871 = vunpack.c.l.b16 %v3847
        %v3872 = vpack.c.b16 %v3861, %v3860
        %v3873 = vpack.c.b16 %v3863, %v3862
        %v3874 = vpack.c.b16 %v3865, %v3864
        %v3875 = vpack.c.b16 %v3867, %v3866
        %v3876 = vpack.c.b16 %v3869, %v3868
        %v3877 = vpack.c.b16 %v3871, %v3870
        %3884 = vmatprep.subr.bf16.mxu0 0
        %3885 = vmatpush1.bf16.msra.mxu0 %v3872
        %3886 = vmatprep.subr.bf16.mxu0 0
        %3887 = vmatpush1.bf16.msra.mxu0 %v3873
        %3888 = vmatprep.subr.bf16.mxu0 0
        %3889 = vmatpush1.bf16.msra.mxu0 %v3874
        %3890 = vmatprep.subr.bf16.mxu0 0
        %3891 = vmatpush1.bf16.msra.mxu0 %v3875
        %3892 = vmatprep.subr.bf16.mxu0 0
        %3893 = vmatpush1.bf16.msra.mxu0 %v3876
        %3894 = vmatprep.subr.bf16.mxu0 0
        %3895 = vmatpush1.bf16.msra.mxu0 %v3877
        %3896 = vmatprep.subr.bf16.mxu0 0
        %3897 = vmatpush1.bf16.msra.mxu0 0
        %3898 = vmatprep.subr.bf16.mxu0 0
        %3899 = vmatpush1.bf16.msra.mxu0 0
        %3900 = vmatprep.subr.bf16.mxu0 0
        %3901 = vmatpush1.bf16.msra.mxu0 0
        %3902 = vmatprep.subr.bf16.mxu0 0
        %3903 = vmatpush1.bf16.msra.mxu0 0
        %3904 = vmatprep.subr.bf16.mxu0 0
        %3905 = vmatpush1.bf16.msra.mxu0 0
        %3906 = vmatprep.subr.bf16.mxu0 0
        %3907 = vmatpush1.bf16.msra.mxu0 0
        %3908 = vmatprep.subr.bf16.mxu0 0
        %3909 = vmatpush1.bf16.msra.mxu0 0
        %3910 = vmatprep.subr.bf16.mxu0 0
        %3911 = vmatpush1.bf16.msra.mxu0 0
        %3912 = vmatprep.subr.bf16.mxu0 0
        %3913 = vmatpush1.bf16.msra.mxu0 0
        %3914 = vmatprep.subr.bf16.mxu0 0
        %3915 = vmatpush1.bf16.msra.mxu0 0
        %3916 = vmatprep.mubr.bf16.mxu0 0
        %3917 = vmatmul.mubr.bf16.gmra.mrb[0].mxu0 %v3344
        %v3918 = vpop.f32.mrb[0].mxu0
        %v3919 = vadd.f32 0.0, %v3918
        %v3920 = vpop.f32.mrb[0].mxu0
        %v3921 = vpop.f32.mrb[0].mxu0
        %v3922 = vadd.f32 0.0, %v3921
        %v3923 = vpop.f32.mrb[0].mxu0
        %3924 = vmatprep.mubr.bf16.mxu0 0
        %3925 = vmatmul.mubr.bf16.gmra.mrb[0].mxu0 %v3346
        %v3926 = vpop.f32.mrb[0].mxu0
        %v3927 = vadd.f32 0.0, %v3926
        %v3928 = vpop.f32.mrb[0].mxu0
        %v3929 = vpop.f32.mrb[0].mxu0
        %v3930 = vadd.f32 0.0, %v3929
        %v3931 = vpop.f32.mrb[0].mxu0
        %3932 = vmatprep.mubr.bf16.mxu0 0
        %3933 = vmatmul.mubr.bf16.gmra.mrb[0].mxu0 %v3348
        %v3934 = vpop.f32.mrb[0].mxu0
        %v3935 = vadd.f32 0.0, %v3934
        %v3936 = vpop.f32.mrb[0].mxu0
        %v3937 = vpop.f32.mrb[0].mxu0
        %v3938 = vadd.f32 0.0, %v3937
        %v3939 = vpop.f32.mrb[0].mxu0
        %3940 = vmatprep.mubr.bf16.mxu0 0
        %3941 = vmatmul.mubr.bf16.gmra.mrb[0].mxu0 %v3350
        %v3942 = vpop.f32.mrb[0].mxu0
        %v3943 = vadd.f32 0.0, %v3942
        %v3944 = vpop.f32.mrb[0].mxu0
        %v3945 = vpop.f32.mrb[0].mxu0
        %v3946 = vadd.f32 0.0, %v3945
        %v3947 = vpop.f32.mrb[0].mxu0
        %3948 = vmatprep.mubr.bf16.mxu0 0
        %3949 = vmatmul.mubr.bf16.gmra.mrb[0].mxu0 %v3352
        %v3950 = vpop.f32.mrb[0].mxu0
        %v3951 = vadd.f32 0.0, %v3950
        %v3952 = vpop.f32.mrb[0].mxu0
        %v3953 = vpop.f32.mrb[0].mxu0
        %v3954 = vadd.f32 0.0, %v3953
        %v3955 = vpop.f32.mrb[0].mxu0
        %3956 = vmatprep.mubr.bf16.mxu0 0
        %3957 = vmatmul.mubr.bf16.gmra.mrb[0].mxu0 %v3354
        %v3958 = vpop.f32.mrb[0].mxu0
        %v3959 = vadd.f32 0.0, %v3958
        %v3960 = vpop.f32.mrb[0].mxu0
        %v3961 = vpop.f32.mrb[0].mxu0
        %v3962 = vadd.f32 0.0, %v3961
        %v3963 = vpop.f32.mrb[0].mxu0
        %3964 = vmatprep.mubr.bf16.mxu0 0
        %3965 = vmatmul.mubr.bf16.gmra.mrb[0].mxu0 %v3356
        %v3966 = vpop.f32.mrb[0].mxu0
        %v3967 = vadd.f32 0.0, %v3966
        %v3968 = vpop.f32.mrb[0].mxu0
        %v3969 = vpop.f32.mrb[0].mxu0
        %v3970 = vadd.f32 0.0, %v3969
        %v3971 = vpop.f32.mrb[0].mxu0
        %3972 = vmatprep.mubr.bf16.mxu0 0
        %3973 = vmatmul.mubr.bf16.gmra.mrb[0].mxu0 %v3358
        %v3974 = vpop.f32.mrb[0].mxu0
        %v3975 = vadd.f32 0.0, %v3974
        %v3976 = vpop.f32.mrb[0].mxu0
        %v3977 = vpop.f32.mrb[0].mxu0
        %v3978 = vadd.f32 0.0, %v3977
        %v3979 = vpop.f32.mrb[0].mxu0
        %3980 = vmatprep.mubr.bf16.mxu0 0
        %3981 = vmatmul.mubr.bf16.gmra.mrb[0].mxu0 %v3360
        %v3982 = vpop.f32.mrb[0].mxu0
        %v3983 = vadd.f32 0.0, %v3982
        %v3984 = vpop.f32.mrb[0].mxu0
        %v3985 = vpop.f32.mrb[0].mxu0
        %v3986 = vadd.f32 0.0, %v3985
        %v3987 = vpop.f32.mrb[0].mxu0
        %3988 = vmatprep.mubr.bf16.mxu0 0
        %3989 = vmatmul.mubr.bf16.gmra.mrb[0].mxu0 %v3362
        %v3990 = vpop.f32.mrb[0].mxu0
        %v3991 = vadd.f32 0.0, %v3990
        %v3992 = vpop.f32.mrb[0].mxu0
        %v3993 = vpop.f32.mrb[0].mxu0
        %v3994 = vadd.f32 0.0, %v3993
        %v3995 = vpop.f32.mrb[0].mxu0
        %3996 = vmatprep.mubr.bf16.mxu0 0
        %3997 = vmatmul.mubr.bf16.gmra.mrb[0].mxu0 %v3364
        %v3998 = vpop.f32.mrb[0].mxu0
        %v3999 = vadd.f32 0.0, %v3998
        %v4000 = vpop.f32.mrb[0].mxu0
        %v4001 = vpop.f32.mrb[0].mxu0
        %v4002 = vadd.f32 0.0, %v4001
        %v4003 = vpop.f32.mrb[0].mxu0
        %4004 = vmatprep.mubr.bf16.mxu0 0
        %4005 = vmatmul.mubr.bf16.gmra.mrb[0].mxu0 %v3366
        %v4006 = vpop.f32.mrb[0].mxu0
        %v4007 = vadd.f32 0.0, %v4006
        %v4008 = vpop.f32.mrb[0].mxu0
        %v4009 = vpop.f32.mrb[0].mxu0
        %v4010 = vadd.f32 0.0, %v4009
        %v4011 = vpop.f32.mrb[0].mxu0
        %4012 = vmatprep.mubr.bf16.mxu0 0
        %4013 = vmatmul.mubr.bf16.gmra.mrb[0].mxu0 %v3368
        %v4014 = vpop.f32.mrb[0].mxu0
        %v4015 = vadd.f32 0.0, %v4014
        %v4016 = vpop.f32.mrb[0].mxu0
        %v4017 = vpop.f32.mrb[0].mxu0
        %v4018 = vadd.f32 0.0, %v4017
        %v4019 = vpop.f32.mrb[0].mxu0
        %4020 = vmatprep.mubr.bf16.mxu0 0
        %4021 = vmatmul.mubr.bf16.gmra.mrb[0].mxu0 %v3370
        %v4022 = vpop.f32.mrb[0].mxu0
        %v4023 = vadd.f32 0.0, %v4022
        %v4024 = vpop.f32.mrb[0].mxu0
        %v4025 = vpop.f32.mrb[0].mxu0
        %v4026 = vadd.f32 0.0, %v4025
        %v4027 = vpop.f32.mrb[0].mxu0
        %4028 = vmatprep.mubr.bf16.mxu0 0
        %4029 = vmatmul.mubr.bf16.gmra.mrb[0].mxu0 %v3372
        %v4030 = vpop.f32.mrb[0].mxu0
        %v4031 = vadd.f32 0.0, %v4030
        %v4032 = vpop.f32.mrb[0].mxu0
        %v4033 = vpop.f32.mrb[0].mxu0
        %v4034 = vadd.f32 0.0, %v4033
        %v4035 = vpop.f32.mrb[0].mxu0
        %4036 = vmatprep.mubr.bf16.mxu0 0
        %4037 = vmatmul.mubr.bf16.gmra.mrb[0].mxu0 %v3374
        %v4038 = vpop.f32.mrb[0].mxu0
        %v4039 = vadd.f32 0.0, %v4038
        %v4040 = vpop.f32.mrb[0].mxu0
        %v4041 = vpop.f32.mrb[0].mxu0
        %v4042 = vadd.f32 0.0, %v4041
        %v4043 = vpop.f32.mrb[0].mxu0
        %4044 = vmatprep.mubr.bf16.mxu0 0
        %4045 = vmatmul.mubr.bf16.gmra.mrb[0].mxu0 %v3376
        %v4046 = vpop.f32.mrb[0].mxu0
        %v4047 = vadd.f32 0.0, %v4046
        %v4048 = vpop.f32.mrb[0].mxu0
        %v4049 = vpop.f32.mrb[0].mxu0
        %v4050 = vadd.f32 0.0, %v4049
        %v4051 = vpop.f32.mrb[0].mxu0
        %4052 = vmatprep.mubr.bf16.mxu0 0
        %4053 = vmatmul.mubr.bf16.gmra.mrb[0].mxu0 %v3378
        %v4054 = vpop.f32.mrb[0].mxu0
        %v4055 = vadd.f32 0.0, %v4054
        %v4056 = vpop.f32.mrb[0].mxu0
        %v4057 = vpop.f32.mrb[0].mxu0
        %v4058 = vadd.f32 0.0, %v4057
        %v4059 = vpop.f32.mrb[0].mxu0
        %4060 = vmatprep.mubr.bf16.mxu0 0
        %4061 = vmatmul.mubr.bf16.gmra.mrb[0].mxu0 %v3380
        %v4062 = vpop.f32.mrb[0].mxu0
        %v4063 = vadd.f32 0.0, %v4062
        %v4064 = vpop.f32.mrb[0].mxu0
        %v4065 = vpop.f32.mrb[0].mxu0
        %v4066 = vadd.f32 0.0, %v4065
        %v4067 = vpop.f32.mrb[0].mxu0
        %4068 = vmatprep.mubr.bf16.mxu0 0
        %4069 = vmatmul.mubr.bf16.gmra.mrb[0].mxu0 %v3382
        %v4070 = vpop.f32.mrb[0].mxu0
        %v4071 = vadd.f32 0.0, %v4070
        %v4072 = vpop.f32.mrb[0].mxu0
        %v4073 = vpop.f32.mrb[0].mxu0
        %v4074 = vadd.f32 0.0, %v4073
        %v4075 = vpop.f32.mrb[0].mxu0
        %4076 = vmatprep.mubr.bf16.mxu0 0
        %4077 = vmatmul.mubr.bf16.gmra.mrb[0].mxu0 %v3384
        %v4078 = vpop.f32.mrb[0].mxu0
        %v4079 = vadd.f32 0.0, %v4078
        %v4080 = vpop.f32.mrb[0].mxu0
        %v4081 = vpop.f32.mrb[0].mxu0
        %v4082 = vpop.f32.mrb[0].mxu0
        %4083 = vdwg.mxu0
        %v4085 = vrot.slane %v3581, 3
        %v4127 = vrot.slane %v3421, 7
        %v4128 = vrot.slane %v3424, 7
        %v4129 = vsel %vm3064, %v4127, %v4128
        %v4130 = vrot.slane %v3429, 7
        %v4131 = vsel %vm3064, %v4128, %v4130
        %v4132 = vrot.slane %v3432, 7
        %v4133 = vsel %vm3064, %v4130, %v4132
        %v4134 = vrot.slane %v3437, 7
        %v4135 = vsel %vm3064, %v4132, %v4134
        %v4136 = vrot.slane %v3440, 7
        %v4137 = vsel %vm3064, %v4134, %v4136
        %v4138 = vrot.slane %v3445, 7
        %v4139 = vsel %vm3064, %v4136, %v4138
        %v4140 = vrot.slane %v3448, 7
        %v4141 = vsel %vm3064, %v4138, %v4140
        %v4142 = vrot.slane %v3453, 7
        %v4143 = vsel %vm3064, %v4140, %v4142
        %v4144 = vrot.slane %v3456, 7
        %v4145 = vsel %vm3064, %v4142, %v4144
        %v4146 = vrot.slane %v3461, 7
        %v4147 = vsel %vm3064, %v4144, %v4146
        %v4148 = vrot.slane %v3464, 7
        %v4149 = vsel %vm3064, %v4146, %v4148
        %v4150 = vrot.slane %v3469, 7
        %v4151 = vsel %vm3064, %v4148, %v4150
        %v4152 = vrot.slane %v3472, 7
        %v4153 = vsel %vm3064, %v4150, %v4152
        %v4154 = vrot.slane %v3477, 7
        %v4155 = vsel %vm3064, %v4152, %v4154
        %v4156 = vrot.slane %v3480, 7
        %v4157 = vsel %vm3064, %v4154, %v4156
        %v4158 = vrot.slane %v3485, 7
        %v4159 = vsel %vm3064, %v4156, %v4158
        %v4160 = vrot.slane %v3488, 7
        %v4161 = vsel %vm3064, %v4158, %v4160
        %v4162 = vrot.slane %v3493, 7
        %v4163 = vsel %vm3064, %v4160, %v4162
        %v4164 = vrot.slane %v3496, 7
        %v4165 = vsel %vm3064, %v4162, %v4164
        %v4166 = vrot.slane %v3501, 7
        %v4167 = vsel %vm3064, %v4164, %v4166
        %v4168 = vrot.slane %v3504, 7
        %v4169 = vsel %vm3064, %v4166, %v4168
        %v4170 = vrot.slane %v3509, 7
        %v4171 = vsel %vm3064, %v4168, %v4170
        %v4172 = vrot.slane %v3512, 7
        %v4173 = vsel %vm3064, %v4170, %v4172
        %v4174 = vrot.slane %v3517, 7
        %v4175 = vsel %vm3064, %v4172, %v4174
        %v4176 = vrot.slane %v3520, 7
        %v4177 = vsel %vm3064, %v4174, %v4176
        %v4178 = vrot.slane %v3525, 7
        %v4179 = vsel %vm3064, %v4176, %v4178
        %v4180 = vrot.slane %v3528, 7
        %v4181 = vsel %vm3064, %v4178, %v4180
        %v4182 = vrot.slane %v3533, 7
        %v4183 = vsel %vm3064, %v4180, %v4182
        %v4184 = vrot.slane %v3536, 7
        %v4185 = vsel %vm3064, %v4182, %v4184
        %v4186 = vrot.slane %v3541, 7
        %v4187 = vsel %vm3064, %v4184, %v4186
        %v4188 = vrot.slane %v3544, 7
        %v4189 = vsel %vm3064, %v4186, %v4188
        %v4190 = vrot.slane %v3549, 7
        %v4191 = vsel %vm3064, %v4188, %v4190
        %v4192 = vrot.slane %v3552, 7
        %v4193 = vsel %vm3064, %v4190, %v4192
        %v4194 = vrot.slane %v3557, 7
        %v4195 = vsel %vm3064, %v4192, %v4194
        %v4196 = vrot.slane %v3560, 7
        %v4197 = vsel %vm3064, %v4194, %v4196
        %v4198 = vrot.slane %v3565, 7
        %v4199 = vsel %vm3064, %v4196, %v4198
        %v4200 = vrot.slane %v3568, 7
        %v4201 = vsel %vm3064, %v4198, %v4200
        %v4202 = vrot.slane %v3573, 7
        %v4203 = vsel %vm3064, %v4200, %v4202
        %v4204 = vrot.slane %v3576, 7
        %v4205 = vsel %vm3064, %v4202, %v4204
        %v4206 = vrot.slane %v3581, 7
        %v4207 = vsel %vm3064, %v4204, %v4206
        %v4249 = vsel %vm3064, %v4085, %v4127
        %v4250 = vadd.f32 %v4249, %v3670
        %v4251 = vadd.f32 %v4129, %v3673
        %v4252 = vadd.f32 %v4131, %v3678
        %v4253 = vadd.f32 %v4133, %v3681
        %v4254 = vadd.f32 %v4135, %v3686
        %v4255 = vadd.f32 %v4137, %v3689
        %v4256 = vadd.f32 %v4139, %v3694
        %v4257 = vadd.f32 %v4141, %v3697
        %v4258 = vadd.f32 %v4143, %v3702
        %v4259 = vadd.f32 %v4145, %v3705
        %v4260 = vadd.f32 %v4147, %v3710
        %v4261 = vadd.f32 %v4149, %v3713
        %v4262 = vadd.f32 %v4151, %v3718
        %v4263 = vadd.f32 %v4153, %v3721
        %v4264 = vadd.f32 %v4155, %v3726
        %v4265 = vadd.f32 %v4157, %v3729
        %v4266 = vadd.f32 %v4159, %v3734
        %v4267 = vadd.f32 %v4161, %v3737
        %v4268 = vadd.f32 %v4163, %v3742
        %v4269 = vadd.f32 %v4165, %v3745
        %v4270 = vadd.f32 %v4167, %v3750
        %v4271 = vadd.f32 %v4169, %v3753
        %v4272 = vadd.f32 %v4171, %v3758
        %v4273 = vadd.f32 %v4173, %v3761
        %v4274 = vadd.f32 %v4175, %v3766
        %v4275 = vadd.f32 %v4177, %v3769
        %v4276 = vadd.f32 %v4179, %v3774
        %v4277 = vadd.f32 %v4181, %v3777
        %v4278 = vadd.f32 %v4183, %v3782
        %v4279 = vadd.f32 %v4185, %v3785
        %v4280 = vadd.f32 %v4187, %v3790
        %v4281 = vadd.f32 %v4189, %v3793
        %v4282 = vadd.f32 %v4191, %v3798
        %v4283 = vadd.f32 %v4193, %v3801
        %v4284 = vadd.f32 %v4195, %v3806
        %v4285 = vadd.f32 %v4197, %v3809
        %v4286 = vadd.f32 %v4199, %v3814
        %v4287 = vadd.f32 %v4201, %v3817
        %v4288 = vadd.f32 %v4203, %v3822
        %v4289 = vadd.f32 %v4205, %v3825
        %v4290 = vadd.f32 %v4207, %v3830
        %vm4332 = vcmask 1046528
        %v4333 = vrot.slane %v3919, 1
        %v4334 = vrot.slane %v3922, 1
        %v4335 = vsel %vm4332, %v4333, %v4334
        %v4336 = vrot.slane %v3927, 1
        %v4337 = vsel %vm4332, %v4334, %v4336
        %v4338 = vrot.slane %v3930, 1
        %v4339 = vsel %vm4332, %v4336, %v4338
        %v4340 = vrot.slane %v3935, 1
        %v4341 = vsel %vm4332, %v4338, %v4340
        %v4342 = vrot.slane %v3938, 1
        %v4343 = vsel %vm4332, %v4340, %v4342
        %v4344 = vrot.slane %v3943, 1
        %v4345 = vsel %vm4332, %v4342, %v4344
        %v4346 = vrot.slane %v3946, 1
        %v4347 = vsel %vm4332, %v4344, %v4346
        %v4348 = vrot.slane %v3951, 1
        %v4349 = vsel %vm4332, %v4346, %v4348
        %v4350 = vrot.slane %v3954, 1
        %v4351 = vsel %vm4332, %v4348, %v4350
        %v4352 = vrot.slane %v3959, 1
        %v4353 = vsel %vm4332, %v4350, %v4352
        %v4354 = vrot.slane %v3962, 1
        %v4355 = vsel %vm4332, %v4352, %v4354
        %v4356 = vrot.slane %v3967, 1
        %v4357 = vsel %vm4332, %v4354, %v4356
        %v4358 = vrot.slane %v3970, 1
        %v4359 = vsel %vm4332, %v4356, %v4358
        %v4360 = vrot.slane %v3975, 1
        %v4361 = vsel %vm4332, %v4358, %v4360
        %v4362 = vrot.slane %v3978, 1
        %v4363 = vsel %vm4332, %v4360, %v4362
        %v4364 = vrot.slane %v3983, 1
        %v4365 = vsel %vm4332, %v4362, %v4364
        %v4366 = vrot.slane %v3986, 1
        %v4367 = vsel %vm4332, %v4364, %v4366
        %v4368 = vrot.slane %v3991, 1
        %v4369 = vsel %vm4332, %v4366, %v4368
        %v4370 = vrot.slane %v3994, 1
        %v4371 = vsel %vm4332, %v4368, %v4370
        %v4372 = vrot.slane %v3999, 1
        %v4373 = vsel %vm4332, %v4370, %v4372
        %v4374 = vrot.slane %v4002, 1
        %v4375 = vsel %vm4332, %v4372, %v4374
        %v4376 = vrot.slane %v4007, 1
        %v4377 = vsel %vm4332, %v4374, %v4376
        %v4378 = vrot.slane %v4010, 1
        %v4379 = vsel %vm4332, %v4376, %v4378
        %v4380 = vrot.slane %v4015, 1
        %v4381 = vsel %vm4332, %v4378, %v4380
        %v4382 = vrot.slane %v4018, 1
        %v4383 = vsel %vm4332, %v4380, %v4382
        %v4384 = vrot.slane %v4023, 1
        %v4385 = vsel %vm4332, %v4382, %v4384
        %v4386 = vrot.slane %v4026, 1
        %v4387 = vsel %vm4332, %v4384, %v4386
        %v4388 = vrot.slane %v4031, 1
        %v4389 = vsel %vm4332, %v4386, %v4388
        %v4390 = vrot.slane %v4034, 1
        %v4391 = vsel %vm4332, %v4388, %v4390
        %v4392 = vrot.slane %v4039, 1
        %v4393 = vsel %vm4332, %v4390, %v4392
        %v4394 = vrot.slane %v4042, 1
        %v4395 = vsel %vm4332, %v4392, %v4394
        %v4396 = vrot.slane %v4047, 1
        %v4397 = vsel %vm4332, %v4394, %v4396
        %v4398 = vrot.slane %v4050, 1
        %v4399 = vsel %vm4332, %v4396, %v4398
        %v4400 = vrot.slane %v4055, 1
        %v4401 = vsel %vm4332, %v4398, %v4400
        %v4402 = vrot.slane %v4058, 1
        %v4403 = vsel %vm4332, %v4400, %v4402
        %v4404 = vrot.slane %v4063, 1
        %v4405 = vsel %vm4332, %v4402, %v4404
        %v4406 = vrot.slane %v4066, 1
        %v4407 = vsel %vm4332, %v4404, %v4406
        %v4408 = vrot.slane %v4071, 1
        %v4409 = vsel %vm4332, %v4406, %v4408
        %v4410 = vrot.slane %v4074, 1
        %v4411 = vsel %vm4332, %v4408, %v4410
        %v4412 = vrot.slane %v4079, 1
        %v4413 = vsel %vm4332, %v4410, %v4412
        %v4455 = vrot.slane %v3919, 5
        %vm4457 = vcmask 1042432
        %v4458 = vsel %vm4457, %v4412, %v4455
        %v4459 = vadd.f32 %v4250, %v4335
        %v4460 = vadd.f32 %v4251, %v4337
        %v4461 = vadd.f32 %v4252, %v4339
        %v4462 = vadd.f32 %v4253, %v4341
        %v4463 = vadd.f32 %v4254, %v4343
        %v4464 = vadd.f32 %v4255, %v4345
        %v4465 = vadd.f32 %v4256, %v4347
        %v4466 = vadd.f32 %v4257, %v4349
        %v4467 = vadd.f32 %v4258, %v4351
        %v4468 = vadd.f32 %v4259, %v4353
        %v4469 = vadd.f32 %v4260, %v4355
        %v4470 = vadd.f32 %v4261, %v4357
        %v4471 = vadd.f32 %v4262, %v4359
        %v4472 = vadd.f32 %v4263, %v4361
        %v4473 = vadd.f32 %v4264, %v4363
        %v4474 = vadd.f32 %v4265, %v4365
        %v4475 = vadd.f32 %v4266, %v4367
        %v4476 = vadd.f32 %v4267, %v4369
        %v4477 = vadd.f32 %v4268, %v4371
        %v4478 = vadd.f32 %v4269, %v4373
        %v4479 = vadd.f32 %v4270, %v4375
        %v4480 = vadd.f32 %v4271, %v4377
        %v4481 = vadd.f32 %v4272, %v4379
        %v4482 = vadd.f32 %v4273, %v4381
        %v4483 = vadd.f32 %v4274, %v4383
        %v4484 = vadd.f32 %v4275, %v4385
        %v4485 = vadd.f32 %v4276, %v4387
        %v4486 = vadd.f32 %v4277, %v4389
        %v4487 = vadd.f32 %v4278, %v4391
        %v4488 = vadd.f32 %v4279, %v4393
        %v4489 = vadd.f32 %v4280, %v4395
        %v4490 = vadd.f32 %v4281, %v4397
        %v4491 = vadd.f32 %v4282, %v4399
        %v4492 = vadd.f32 %v4283, %v4401
        %v4493 = vadd.f32 %v4284, %v4403
        %v4494 = vadd.f32 %v4285, %v4405
        %v4495 = vadd.f32 %v4286, %v4407
        %v4496 = vadd.f32 %v4287, %v4409
        %v4497 = vadd.f32 %v4288, %v4411
        %v4498 = vadd.f32 %v4289, %v4413
        %v4499 = vadd.f32 %v4290, %v4458
        %v4500 = vld [vmem:[%s4] sm:$0x1]
        %v4502 = vlaneseq
        %v4503 = vshrl.u32 %v4502, 7
        %v4504 = vsub.s32 0, %v4503
        %v4505 = vrot.slane %v4500, %v4504
        %v4507 = vadd.f32 %v4459, %v4505
        %v4508 = vadd.f32 %v4460, %v4505
        %v4509 = vadd.f32 %v4461, %v4505
        %v4510 = vadd.f32 %v4462, %v4505
        %v4511 = vadd.f32 %v4463, %v4505
        %v4512 = vadd.f32 %v4464, %v4505
        %v4513 = vadd.f32 %v4465, %v4505
        %v4514 = vadd.f32 %v4466, %v4505
        %v4515 = vadd.f32 %v4467, %v4505
        %v4516 = vadd.f32 %v4468, %v4505
        %v4517 = vadd.f32 %v4469, %v4505
        %v4518 = vadd.f32 %v4470, %v4505
        %v4519 = vadd.f32 %v4471, %v4505
        %v4520 = vadd.f32 %v4472, %v4505
        %v4521 = vadd.f32 %v4473, %v4505
        %v4522 = vadd.f32 %v4474, %v4505
        %v4523 = vadd.f32 %v4475, %v4505
        %v4524 = vadd.f32 %v4476, %v4505
        %v4525 = vadd.f32 %v4477, %v4505
        %v4526 = vadd.f32 %v4478, %v4505
        %v4527 = vadd.f32 %v4479, %v4505
        %v4528 = vadd.f32 %v4480, %v4505
        %v4529 = vadd.f32 %v4481, %v4505
        %v4530 = vadd.f32 %v4482, %v4505
        %v4531 = vadd.f32 %v4483, %v4505
        %v4532 = vadd.f32 %v4484, %v4505
        %v4533 = vadd.f32 %v4485, %v4505
        %v4534 = vadd.f32 %v4486, %v4505
        %v4535 = vadd.f32 %v4487, %v4505
        %v4536 = vadd.f32 %v4488, %v4505
        %v4537 = vadd.f32 %v4489, %v4505
        %v4538 = vadd.f32 %v4490, %v4505
        %v4539 = vadd.f32 %v4491, %v4505
        %v4540 = vadd.f32 %v4492, %v4505
        %v4541 = vadd.f32 %v4493, %v4505
        %v4542 = vadd.f32 %v4494, %v4505
        %v4543 = vadd.f32 %v4495, %v4505
        %v4544 = vadd.f32 %v4496, %v4505
        %v4545 = vadd.f32 %v4497, %v4505
        %v4546 = vadd.f32 %v4498, %v4505
        %v4547 = vadd.f32 %v4499, %v4505
        %v4548 = vmax.f32 %v4507, 0.0
        %v4549 = vmax.f32 %v4508, 0.0
        %v4550 = vmax.f32 %v4509, 0.0
        %v4551 = vmax.f32 %v4510, 0.0
        %v4552 = vmax.f32 %v4511, 0.0
        %v4553 = vmax.f32 %v4512, 0.0
        %v4554 = vmax.f32 %v4513, 0.0
        %v4555 = vmax.f32 %v4514, 0.0
        %v4556 = vmax.f32 %v4515, 0.0
        %v4557 = vmax.f32 %v4516, 0.0
        %v4558 = vmax.f32 %v4517, 0.0
        %v4559 = vmax.f32 %v4518, 0.0
        %v4560 = vmax.f32 %v4519, 0.0
        %v4561 = vmax.f32 %v4520, 0.0
        %v4562 = vmax.f32 %v4521, 0.0
        %v4563 = vmax.f32 %v4522, 0.0
        %v4564 = vmax.f32 %v4523, 0.0
        %v4565 = vmax.f32 %v4524, 0.0
        %v4566 = vmax.f32 %v4525, 0.0
        %v4567 = vmax.f32 %v4526, 0.0
        %v4568 = vmax.f32 %v4527, 0.0
        %v4569 = vmax.f32 %v4528, 0.0
        %v4570 = vmax.f32 %v4529, 0.0
        %v4571 = vmax.f32 %v4530, 0.0
        %v4572 = vmax.f32 %v4531, 0.0
        %v4573 = vmax.f32 %v4532, 0.0
        %v4574 = vmax.f32 %v4533, 0.0
        %v4575 = vmax.f32 %v4534, 0.0
        %v4576 = vmax.f32 %v4535, 0.0
        %v4577 = vmax.f32 %v4536, 0.0
        %v4578 = vmax.f32 %v4537, 0.0
        %v4579 = vmax.f32 %v4538, 0.0
        %v4580 = vmax.f32 %v4539, 0.0
        %v4581 = vmax.f32 %v4540, 0.0
        %v4582 = vmax.f32 %v4541, 0.0
        %v4583 = vmax.f32 %v4542, 0.0
        %v4584 = vmax.f32 %v4543, 0.0
        %v4585 = vmax.f32 %v4544, 0.0
        %v4586 = vmax.f32 %v4545, 0.0
        %v4587 = vmax.f32 %v4546, 0.0
        %v4588 = vmax.f32 %v4547, 0.0
        %v4589 = vpack.c.bf16 %v4549, %v4548
        %v4590 = vpack.c.bf16 %v4551, %v4550
        %v4591 = vpack.c.bf16 %v4553, %v4552
        %v4592 = vpack.c.bf16 %v4555, %v4554
        %v4593 = vpack.c.bf16 %v4557, %v4556
        %v4594 = vpack.c.bf16 %v4559, %v4558
        %v4595 = vpack.c.bf16 %v4561, %v4560
        %v4596 = vpack.c.bf16 %v4563, %v4562
        %v4597 = vpack.c.bf16 %v4565, %v4564
        %v4598 = vpack.c.bf16 %v4567, %v4566
        %v4599 = vpack.c.bf16 %v4569, %v4568
        %v4600 = vpack.c.bf16 %v4571, %v4570
        %v4601 = vpack.c.bf16 %v4573, %v4572
        %v4602 = vpack.c.bf16 %v4575, %v4574
        %v4603 = vpack.c.bf16 %v4577, %v4576
        %v4604 = vpack.c.bf16 %v4579, %v4578
        %v4605 = vpack.c.bf16 %v4581, %v4580
        %v4606 = vpack.c.bf16 %v4583, %v4582
        %v4607 = vpack.c.bf16 %v4585, %v4584
        %v4608 = vpack.c.bf16 %v4587, %v4586
        %v4609 = vpack.c.bf16 %v4588, %v4588
        %v4610 = vld [vmem:[%s5] sm:$0xf]
        %v4611 = vld [vmem:[%s5 + $0x4] sm:$0xf]
        %v4612 = vld [vmem:[%s5 + $0x8] sm:$0xf]
        %v4613 = vld [vmem:[%s5 + $0xc] sm:$0xf]
        %v4614 = vld [vmem:[%s6] sm:$0x1]
        %v4616 = vlaneseq
        %v4617 = vshrl.u32 %v4616, 7
        %v4618 = vsub.s32 0, %v4617
        %v4619 = vrot.slane %v4614, %v4618
        %v4625 = vunpack.c.l.b16 %v4610
        %v4626 = vunpack.c.l.b16 %v4611
        %v4627 = vunpack.c.l.b16 %v4612
        %v4628 = vunpack.c.l.b16 %v4613
        %v4629 = vpack.c.b16 %v4626, %v4625
        %v4630 = vpack.c.b16 %v4628, %v4627
        %v4634 = vsel %vm3189, %v4589, 0
        %v4637 = vsel %vm3189, %v4590, 0
        %v4640 = vsel %vm3189, %v4591, 0
        %v4643 = vsel %vm3189, %v4592, 0
        %v4646 = vsel %vm3189, %v4593, 0
        %v4649 = vsel %vm3189, %v4594, 0
        %v4652 = vsel %vm3189, %v4595, 0
        %v4655 = vsel %vm3189, %v4596, 0
        %v4658 = vsel %vm3189, %v4597, 0
        %v4661 = vsel %vm3189, %v4598, 0
        %v4664 = vsel %vm3189, %v4599, 0
        %v4667 = vsel %vm3189, %v4600, 0
        %v4670 = vsel %vm3189, %v4601, 0
        %v4673 = vsel %vm3189, %v4602, 0
        %v4676 = vsel %vm3189, %v4603, 0
        %v4679 = vsel %vm3189, %v4604, 0
        %v4682 = vsel %vm3189, %v4605, 0
        %v4685 = vsel %vm3189, %v4606, 0
        %v4688 = vsel %vm3189, %v4607, 0
        %v4691 = vsel %vm3189, %v4608, 0
        %v4694 = vsel %vm3189, %v4609, 0
        %4696 = vmatprep.subr.bf16.mxu0 0
        %4697 = vmatpush1.bf16.msra.mxu0 %v4629
        %4698 = vmatprep.subr.bf16.mxu0 0
        %4699 = vmatpush1.bf16.msra.mxu0 %v4630
        %4700 = vmatprep.subr.bf16.mxu0 0
        %4701 = vmatpush1.bf16.msra.mxu0 0
        %4702 = vmatprep.subr.bf16.mxu0 0
        %4703 = vmatpush1.bf16.msra.mxu0 0
        %4704 = vmatprep.subr.bf16.mxu0 0
        %4705 = vmatpush1.bf16.msra.mxu0 0
        %4706 = vmatprep.subr.bf16.mxu0 0
        %4707 = vmatpush1.bf16.msra.mxu0 0
        %4708 = vmatprep.subr.bf16.mxu0 0
        %4709 = vmatpush1.bf16.msra.mxu0 0
        %4710 = vmatprep.subr.bf16.mxu0 0
        %4711 = vmatpush1.bf16.msra.mxu0 0
        %4712 = vmatprep.subr.bf16.mxu0 0
        %4713 = vmatpush1.bf16.msra.mxu0 0
        %4714 = vmatprep.subr.bf16.mxu0 0
        %4715 = vmatpush1.bf16.msra.mxu0 0
        %4716 = vmatprep.subr.bf16.mxu0 0
        %4717 = vmatpush1.bf16.msra.mxu0 0
        %4718 = vmatprep.subr.bf16.mxu0 0
        %4719 = vmatpush1.bf16.msra.mxu0 0
        %4720 = vmatprep.subr.bf16.mxu0 0
        %4721 = vmatpush1.bf16.msra.mxu0 0
        %4722 = vmatprep.subr.bf16.mxu0 0
        %4723 = vmatpush1.bf16.msra.mxu0 0
        %4724 = vmatprep.subr.bf16.mxu0 0
        %4725 = vmatpush1.bf16.msra.mxu0 0
        %4726 = vmatprep.subr.bf16.mxu0 0
        %4727 = vmatpush1.bf16.msra.mxu0 0
        %4728 = vmatprep.mubr.bf16.mxu0 0
        %4729 = vmatmul.mubr.bf16.gmra.mrb[0].mxu0 %v4634
        %v4730 = vpop.f32.mrb[0].mxu0
        %v4731 = vpop.f32.mrb[0].mxu0
        %v4732 = vpop.f32.mrb[0].mxu0
        %v4733 = vpop.f32.mrb[0].mxu0
        %4734 = vmatprep.mubr.bf16.mxu0 0
        %4735 = vmatmul.mubr.bf16.gmra.mrb[0].mxu0 %v4637
        %v4736 = vpop.f32.mrb[0].mxu0
        %v4737 = vadd.f32 %v4619, %v4736
        %v4738 = vpop.f32.mrb[0].mxu0
        %v4739 = vpop.f32.mrb[0].mxu0
        %v4740 = vadd.f32 %v4619, %v4739
        %v4741 = vpop.f32.mrb[0].mxu0
        %4742 = vmatprep.mubr.bf16.mxu0 0
        %4743 = vmatmul.mubr.bf16.gmra.mrb[0].mxu0 %v4640
        %v4744 = vpop.f32.mrb[0].mxu0
        %v4745 = vadd.f32 %v4619, %v4744
        %v4746 = vpop.f32.mrb[0].mxu0
        %v4747 = vpop.f32.mrb[0].mxu0
        %v4748 = vadd.f32 %v4619, %v4747
        %v4749 = vpop.f32.mrb[0].mxu0
        %4750 = vmatprep.mubr.bf16.mxu0 0
        %4751 = vmatmul.mubr.bf16.gmra.mrb[0].mxu0 %v4643
        %v4752 = vpop.f32.mrb[0].mxu0
        %v4753 = vadd.f32 %v4619, %v4752
        %v4754 = vpop.f32.mrb[0].mxu0
        %v4755 = vpop.f32.mrb[0].mxu0
        %v4756 = vadd.f32 %v4619, %v4755
        %v4757 = vpop.f32.mrb[0].mxu0
        %4758 = vmatprep.mubr.bf16.mxu0 0
        %4759 = vmatmul.mubr.bf16.gmra.mrb[0].mxu0 %v4646
        %v4760 = vpop.f32.mrb[0].mxu0
        %v4761 = vadd.f32 %v4619, %v4760
        %v4762 = vpop.f32.mrb[0].mxu0
        %v4763 = vpop.f32.mrb[0].mxu0
        %v4764 = vadd.f32 %v4619, %v4763
        %v4765 = vpop.f32.mrb[0].mxu0
        %4766 = vmatprep.mubr.bf16.mxu0 0
        %4767 = vmatmul.mubr.bf16.gmra.mrb[0].mxu0 %v4649
        %v4768 = vpop.f32.mrb[0].mxu0
        %v4769 = vadd.f32 %v4619, %v4768
        %v4770 = vpop.f32.mrb[0].mxu0
        %v4771 = vpop.f32.mrb[0].mxu0
        %v4772 = vadd.f32 %v4619, %v4771
        %v4773 = vpop.f32.mrb[0].mxu0
        %4774 = vmatprep.mubr.bf16.mxu0 0
        %4775 = vmatmul.mubr.bf16.gmra.mrb[0].mxu0 %v4652
        %v4776 = vpop.f32.mrb[0].mxu0
        %v4777 = vadd.f32 %v4619, %v4776
        %v4778 = vpop.f32.mrb[0].mxu0
        %v4779 = vpop.f32.mrb[0].mxu0
        %v4780 = vadd.f32 %v4619, %v4779
        %v4781 = vpop.f32.mrb[0].mxu0
        %4782 = vmatprep.mubr.bf16.mxu0 0
        %4783 = vmatmul.mubr.bf16.gmra.mrb[0].mxu0 %v4655
        %v4784 = vpop.f32.mrb[0].mxu0
        %v4785 = vadd.f32 %v4619, %v4784
        %v4786 = vpop.f32.mrb[0].mxu0
        %v4787 = vpop.f32.mrb[0].mxu0
        %v4788 = vadd.f32 %v4619, %v4787
        %v4789 = vpop.f32.mrb[0].mxu0
        %4790 = vmatprep.mubr.bf16.mxu0 0
        %4791 = vmatmul.mubr.bf16.gmra.mrb[0].mxu0 %v4658
        %v4792 = vpop.f32.mrb[0].mxu0
        %v4793 = vadd.f32 %v4619, %v4792
        %v4794 = vpop.f32.mrb[0].mxu0
        %v4795 = vpop.f32.mrb[0].mxu0
        %v4796 = vadd.f32 %v4619, %v4795
        %v4797 = vpop.f32.mrb[0].mxu0
        %4798 = vmatprep.mubr.bf16.mxu0 0
        %4799 = vmatmul.mubr.bf16.gmra.mrb[0].mxu0 %v4661
        %v4800 = vpop.f32.mrb[0].mxu0
        %v4801 = vadd.f32 %v4619, %v4800
        %v4802 = vpop.f32.mrb[0].mxu0
        %v4803 = vpop.f32.mrb[0].mxu0
        %v4804 = vadd.f32 %v4619, %v4803
        %v4805 = vpop.f32.mrb[0].mxu0
        %4806 = vmatprep.mubr.bf16.mxu0 0
        %4807 = vmatmul.mubr.bf16.gmra.mrb[0].mxu0 %v4664
        %v4808 = vpop.f32.mrb[0].mxu0
        %v4809 = vadd.f32 %v4619, %v4808
        %v4810 = vpop.f32.mrb[0].mxu0
        %v4811 = vpop.f32.mrb[0].mxu0
        %v4812 = vadd.f32 %v4619, %v4811
        %v4813 = vpop.f32.mrb[0].mxu0
        %4814 = vmatprep.mubr.bf16.mxu0 0
        %4815 = vmatmul.mubr.bf16.gmra.mrb[0].mxu0 %v4667
        %v4816 = vpop.f32.mrb[0].mxu0
        %v4817 = vadd.f32 %v4619, %v4816
        %v4818 = vpop.f32.mrb[0].mxu0
        %v4819 = vpop.f32.mrb[0].mxu0
        %v4820 = vadd.f32 %v4619, %v4819
        %v4821 = vpop.f32.mrb[0].mxu0
        %4822 = vmatprep.mubr.bf16.mxu0 0
        %4823 = vmatmul.mubr.bf16.gmra.mrb[0].mxu0 %v4670
        %v4824 = vpop.f32.mrb[0].mxu0
        %v4825 = vadd.f32 %v4619, %v4824
        %v4826 = vpop.f32.mrb[0].mxu0
        %v4827 = vpop.f32.mrb[0].mxu0
        %v4828 = vadd.f32 %v4619, %v4827
        %v4829 = vpop.f32.mrb[0].mxu0
        %4830 = vmatprep.mubr.bf16.mxu0 0
        %4831 = vmatmul.mubr.bf16.gmra.mrb[0].mxu0 %v4673
        %v4832 = vpop.f32.mrb[0].mxu0
        %v4833 = vadd.f32 %v4619, %v4832
        %v4834 = vpop.f32.mrb[0].mxu0
        %v4835 = vpop.f32.mrb[0].mxu0
        %v4836 = vadd.f32 %v4619, %v4835
        %v4837 = vpop.f32.mrb[0].mxu0
        %4838 = vmatprep.mubr.bf16.mxu0 0
        %4839 = vmatmul.mubr.bf16.gmra.mrb[0].mxu0 %v4676
        %v4840 = vpop.f32.mrb[0].mxu0
        %v4841 = vadd.f32 %v4619, %v4840
        %v4842 = vpop.f32.mrb[0].mxu0
        %v4843 = vpop.f32.mrb[0].mxu0
        %v4844 = vadd.f32 %v4619, %v4843
        %v4845 = vpop.f32.mrb[0].mxu0
        %4846 = vmatprep.mubr.bf16.mxu0 0
        %4847 = vmatmul.mubr.bf16.gmra.mrb[0].mxu0 %v4679
        %v4848 = vpop.f32.mrb[0].mxu0
        %v4849 = vadd.f32 %v4619, %v4848
        %v4850 = vpop.f32.mrb[0].mxu0
        %v4851 = vpop.f32.mrb[0].mxu0
        %v4852 = vadd.f32 %v4619, %v4851
        %v4853 = vpop.f32.mrb[0].mxu0
        %4854 = vmatprep.mubr.bf16.mxu0 0
        %4855 = vmatmul.mubr.bf16.gmra.mrb[0].mxu0 %v4682
        %v4856 = vpop.f32.mrb[0].mxu0
        %v4857 = vadd.f32 %v4619, %v4856
        %v4858 = vpop.f32.mrb[0].mxu0
        %v4859 = vpop.f32.mrb[0].mxu0
        %v4860 = vadd.f32 %v4619, %v4859
        %v4861 = vpop.f32.mrb[0].mxu0
        %4862 = vmatprep.mubr.bf16.mxu0 0
        %4863 = vmatmul.mubr.bf16.gmra.mrb[0].mxu0 %v4685
        %v4864 = vpop.f32.mrb[0].mxu0
        %v4865 = vadd.f32 %v4619, %v4864
        %v4866 = vpop.f32.mrb[0].mxu0
        %v4867 = vpop.f32.mrb[0].mxu0
        %v4868 = vadd.f32 %v4619, %v4867
        %v4869 = vpop.f32.mrb[0].mxu0
        %4870 = vmatprep.mubr.bf16.mxu0 0
        %4871 = vmatmul.mubr.bf16.gmra.mrb[0].mxu0 %v4688
        %v4872 = vpop.f32.mrb[0].mxu0
        %v4873 = vadd.f32 %v4619, %v4872
        %v4874 = vpop.f32.mrb[0].mxu0
        %v4875 = vpop.f32.mrb[0].mxu0
        %v4876 = vadd.f32 %v4619, %v4875
        %v4877 = vpop.f32.mrb[0].mxu0
        %4878 = vmatprep.mubr.bf16.mxu0 0
        %4879 = vmatmul.mubr.bf16.gmra.mrb[0].mxu0 %v4691
        %v4880 = vpop.f32.mrb[0].mxu0
        %v4881 = vadd.f32 %v4619, %v4880
        %v4882 = vpop.f32.mrb[0].mxu0
        %v4883 = vpop.f32.mrb[0].mxu0
        %v4884 = vpop.f32.mrb[0].mxu0
        %4885 = vmatprep.mubr.bf16.mxu0 0
        %4886 = vmatmul.mubr.bf16.gmra.mrb[0].mxu0 %v4694
        %v4887 = vpop.f32.mrb[0].mxu0
        %v4888 = vpop.f32.mrb[0].mxu0
        %v4889 = vpop.f32.mrb[0].mxu0
        %v4890 = vpop.f32.mrb[0].mxu0
        %4891 = vdwg.mxu0
        %v4892 = vunpack.c.l.bf16 %v447
        %v4893 = vunpack.c.l.bf16 %v462
        %v4894 = vunpack.c.l.bf16 %v469
        %v4895 = vunpack.c.l.bf16 %v470
        %v4896 = vunpack.c.l.bf16 %v471
        %v4897 = vunpack.c.l.bf16 %v486
        %v4898 = vunpack.c.l.bf16 %v493
        %v4899 = vunpack.c.l.bf16 %v494
        %v4900 = vunpack.c.l.bf16 %v495
        %v4901 = vunpack.c.l.bf16 %v509
        %v4902 = vunpack.c.l.bf16 %v524
        %v4903 = vunpack.c.l.bf16 %v531
        %v4904 = vunpack.c.l.bf16 %v532
        %v4905 = vunpack.c.l.bf16 %v533
        %v4906 = vunpack.c.l.bf16 %v548
        %v4907 = vunpack.c.l.bf16 %v555
        %v4908 = vunpack.c.l.bf16 %v556
        %v4909 = vunpack.c.l.bf16 %v557
        %v4910 = vunpack.c.l.bf16 %v571
        %v4911 = vunpack.c.l.bf16 %v586
        %v4912 = vunpack.c.l.bf16 %v593
        %v4913 = vunpack.c.l.bf16 %v594
        %v4914 = vunpack.c.l.bf16 %v595
        %v4915 = vunpack.c.l.bf16 %v610
        %v4916 = vunpack.c.l.bf16 %v617
        %v4917 = vunpack.c.l.bf16 %v618
        %v4918 = vunpack.c.l.bf16 %v619
        %v4919 = vunpack.c.l.bf16 %v633
        %v4920 = vunpack.c.l.bf16 %v648
        %v4921 = vunpack.c.l.bf16 %v655
        %v4922 = vunpack.c.l.bf16 %v656
        %v4923 = vunpack.c.l.bf16 %v657
        %v4924 = vunpack.c.l.bf16 %v672
        %v4925 = vunpack.c.l.bf16 %v679
        %v4926 = vunpack.c.l.bf16 %v680
        %v4927 = vunpack.c.l.bf16 %v681
        %v4928 = vunpack.c.l.bf16 %v695
        %v4929 = vunpack.c.l.bf16 %v710
        %v4930 = vunpack.c.l.bf16 %v717
        %v4931 = vunpack.c.l.bf16 %v718
        %v4932 = vunpack.c.l.bf16 %v719
        %v4933 = vunpack.c.l.bf16 %v734
        %v4934 = vunpack.c.l.bf16 %v741
        %v4935 = vunpack.c.l.bf16 %v742
        %v4936 = vunpack.c.l.bf16 %v743
        %v4937 = vunpack.c.l.bf16 %v757
        %v4938 = vunpack.c.l.bf16 %v772
        %v4939 = vunpack.c.l.bf16 %v779
        %v4940 = vunpack.c.l.bf16 %v780
        %v4941 = vunpack.c.l.bf16 %v781
        %v4942 = vunpack.c.l.bf16 %v796
        %v4943 = vunpack.c.l.bf16 %v803
        %v4944 = vunpack.c.l.bf16 %v804
        %v4945 = vunpack.c.l.bf16 %v805
        %v4946 = vunpack.c.l.bf16 %v819
        %v4947 = vunpack.c.l.bf16 %v834
        %v4948 = vunpack.c.l.bf16 %v841
        %v4949 = vunpack.c.l.bf16 %v842
        %v4950 = vunpack.c.l.bf16 %v843
        %v4951 = vunpack.c.l.bf16 %v858
        %v4952 = vunpack.c.l.bf16 %v865
        %v4953 = vunpack.c.l.bf16 %v866
        %v4954 = vunpack.c.l.bf16 %v867
        %v4955 = vunpack.c.l.bf16 %v881
        %v4956 = vunpack.c.l.bf16 %v896
        %v4957 = vunpack.c.l.bf16 %v903
        %v4958 = vunpack.c.l.bf16 %v904
        %v4959 = vunpack.c.l.bf16 %v905
        %v4960 = vunpack.c.l.bf16 %v920
        %v4961 = vunpack.c.l.bf16 %v927
        %v4962 = vunpack.c.l.bf16 %v928
        %v4963 = vunpack.c.l.bf16 %v929
        %v4964 = vunpack.c.l.bf16 %v943
        %v4965 = vunpack.c.l.bf16 %v958
        %v4966 = vunpack.c.l.bf16 %v965
        %v4967 = vunpack.c.l.bf16 %v966
        %v4968 = vunpack.c.l.bf16 %v967
        %v4969 = vunpack.c.l.bf16 %v982
        %v4970 = vunpack.c.l.bf16 %v989
        %v4971 = vunpack.c.l.bf16 %v990
        %v4972 = vunpack.c.l.bf16 %v991
        %v4973 = vunpack.c.l.bf16 %v1005
        %v4974 = vunpack.c.l.bf16 %v1020
        %v4975 = vunpack.c.l.bf16 %v1027
        %v4976 = vunpack.c.l.bf16 %v1028
        %v4977 = vunpack.c.l.bf16 %v1029
        %v4978 = vunpack.c.l.bf16 %v1044
        %v4979 = vunpack.c.l.bf16 %v1051
        %v4980 = vunpack.c.l.bf16 %v1052
        %v4981 = vunpack.c.l.bf16 %v1053
        %v4982 = vunpack.c.l.bf16 %v1067
        %v4983 = vunpack.c.l.bf16 %v1082
        %v4984 = vunpack.c.l.bf16 %v1089
        %v4985 = vunpack.c.l.bf16 %v1090
        %v4986 = vunpack.c.l.bf16 %v1091
        %v4987 = vunpack.c.l.bf16 %v1106
        %v4988 = vunpack.c.l.bf16 %v1113
        %v4989 = vunpack.c.l.bf16 %v1114
        %v4990 = vunpack.c.l.bf16 %v1115
        %v4991 = vunpack.c.l.bf16 %v1129
        %v4992 = vunpack.c.l.bf16 %v1144
        %v4993 = vunpack.c.l.bf16 %v1151
        %v4994 = vunpack.c.l.bf16 %v1152
        %v4995 = vunpack.c.l.bf16 %v1153
        %v4996 = vunpack.c.l.bf16 %v1168
        %v4997 = vunpack.c.l.bf16 %v1175
        %v4998 = vunpack.c.l.bf16 %v1176
        %v4999 = vunpack.c.l.bf16 %v1177
        %v5000 = vunpack.c.l.bf16 %v1191
        %v5001 = vunpack.c.l.bf16 %v1206
        %v5002 = vunpack.c.l.bf16 %v1213
        %v5003 = vunpack.c.l.bf16 %v1214
        %v5004 = vunpack.c.l.bf16 %v1215
        %v5005 = vunpack.c.l.bf16 %v1230
        %v5006 = vunpack.c.l.bf16 %v1237
        %v5007 = vunpack.c.l.bf16 %v1238
        %v5008 = vunpack.c.l.bf16 %v1239
        %v5009 = vunpack.c.l.bf16 %v1253
        %v5010 = vunpack.c.l.bf16 %v1268
        %v5011 = vunpack.c.l.bf16 %v1275
        %v5012 = vunpack.c.l.bf16 %v1276
        %v5013 = vunpack.c.l.bf16 %v1277
        %v5014 = vunpack.c.l.bf16 %v1292
        %v5015 = vunpack.c.l.bf16 %v1299
        %v5016 = vunpack.c.l.bf16 %v1300
        %v5017 = vunpack.c.l.bf16 %v1301
        %v5018 = vunpack.c.l.bf16 %v1315
        %v5019 = vunpack.c.l.bf16 %v1330
        %v5020 = vunpack.c.l.bf16 %v1337
        %v5021 = vunpack.c.l.bf16 %v1338
        %v5022 = vunpack.c.l.bf16 %v1339
        %v5023 = vunpack.c.l.bf16 %v1354
        %v5024 = vunpack.c.l.bf16 %v1361
        %v5025 = vunpack.c.l.bf16 %v1362
        %v5026 = vunpack.c.l.bf16 %v1363
        %v5027 = vunpack.c.l.bf16 %v1377
        %v5028 = vunpack.c.l.bf16 %v1392
        %v5029 = vunpack.c.l.bf16 %v1399
        %v5030 = vunpack.c.l.bf16 %v1400
        %v5031 = vunpack.c.l.bf16 %v1401
        %v5032 = vunpack.c.l.bf16 %v1416
        %v5033 = vunpack.c.l.bf16 %v1423
        %v5034 = vunpack.c.l.bf16 %v1424
        %v5035 = vunpack.c.l.bf16 %v1425
        %v5036 = vunpack.c.l.bf16 %v1439
        %v5037 = vunpack.c.l.bf16 %v1454
        %v5038 = vunpack.c.l.bf16 %v1461
        %v5039 = vunpack.c.l.bf16 %v1462
        %v5188 = vcombine.low %v4892, %v4893
        %v5189 = vcombine.low %v4894, %v4895
        %v5191 = vunpack.c.l.s4 1983009808
        %v5192 = vunpack.c.0.s8 %v5191
        %v5193 = vlaneseq
        %v5194 = vshrl.u32 %v5193, 7
        %v5195 = vsub.s32 %v5192, %v5194
        %v5196 = vrot.slane %v5188, %v5195
        %v5198 = vunpack.c.l.s4 1983009808
        %v5199 = vunpack.c.0.s8 %v5198
        %v5200 = vlaneseq
        %v5201 = vshrl.u32 %v5200, 7
        %v5202 = vsub.s32 %v5199, %v5201
        %v5203 = vrot.slane %v5189, %v5202
        %v5204 = vcombine.low %v5196, %v5203
        %v5205 = vcombine.low %v4896, %v4897
        %v5206 = vcombine.low %v4898, %v4899
        %v5208 = vunpack.c.l.s4 1983009808
        %v5209 = vunpack.c.0.s8 %v5208
        %v5210 = vlaneseq
        %v5211 = vshrl.u32 %v5210, 7
        %v5212 = vsub.s32 %v5209, %v5211
        %v5213 = vrot.slane %v5205, %v5212
        %v5215 = vunpack.c.l.s4 1983009808
        %v5216 = vunpack.c.0.s8 %v5215
        %v5217 = vlaneseq
        %v5218 = vshrl.u32 %v5217, 7
        %v5219 = vsub.s32 %v5216, %v5218
        %v5220 = vrot.slane %v5206, %v5219
        %v5221 = vcombine.low %v5213, %v5220
        %v5222 = vcombine.low %v4900, %v4901
        %v5223 = vcombine.low %v4902, %v4903
        %v5225 = vunpack.c.l.s4 1983009808
        %v5226 = vunpack.c.0.s8 %v5225
        %v5227 = vlaneseq
        %v5228 = vshrl.u32 %v5227, 7
        %v5229 = vsub.s32 %v5226, %v5228
        %v5230 = vrot.slane %v5222, %v5229
        %v5232 = vunpack.c.l.s4 1983009808
        %v5233 = vunpack.c.0.s8 %v5232
        %v5234 = vlaneseq
        %v5235 = vshrl.u32 %v5234, 7
        %v5236 = vsub.s32 %v5233, %v5235
        %v5237 = vrot.slane %v5223, %v5236
        %v5238 = vcombine.low %v5230, %v5237
        %v5239 = vcombine.low %v4904, %v4905
        %v5240 = vcombine.low %v4906, %v4907
        %v5242 = vunpack.c.l.s4 1983009808
        %v5243 = vunpack.c.0.s8 %v5242
        %v5244 = vlaneseq
        %v5245 = vshrl.u32 %v5244, 7
        %v5246 = vsub.s32 %v5243, %v5245
        %v5247 = vrot.slane %v5239, %v5246
        %v5249 = vunpack.c.l.s4 1983009808
        %v5250 = vunpack.c.0.s8 %v5249
        %v5251 = vlaneseq
        %v5252 = vshrl.u32 %v5251, 7
        %v5253 = vsub.s32 %v5250, %v5252
        %v5254 = vrot.slane %v5240, %v5253
        %v5255 = vcombine.low %v5247, %v5254
        %v5256 = vcombine.low %v4908, %v4909
        %v5257 = vcombine.low %v4910, %v4911
        %v5259 = vunpack.c.l.s4 1983009808
        %v5260 = vunpack.c.0.s8 %v5259
        %v5261 = vlaneseq
        %v5262 = vshrl.u32 %v5261, 7
        %v5263 = vsub.s32 %v5260, %v5262
        %v5264 = vrot.slane %v5256, %v5263
        %v5266 = vunpack.c.l.s4 1983009808
        %v5267 = vunpack.c.0.s8 %v5266
        %v5268 = vlaneseq
        %v5269 = vshrl.u32 %v5268, 7
        %v5270 = vsub.s32 %v5267, %v5269
        %v5271 = vrot.slane %v5257, %v5270
        %v5272 = vcombine.low %v5264, %v5271
        %v5273 = vcombine.low %v4912, %v4913
        %v5274 = vcombine.low %v4914, %v4915
        %v5276 = vunpack.c.l.s4 1983009808
        %v5277 = vunpack.c.0.s8 %v5276
        %v5278 = vlaneseq
        %v5279 = vshrl.u32 %v5278, 7
        %v5280 = vsub.s32 %v5277, %v5279
        %v5281 = vrot.slane %v5273, %v5280
        %v5283 = vunpack.c.l.s4 1983009808
        %v5284 = vunpack.c.0.s8 %v5283
        %v5285 = vlaneseq
        %v5286 = vshrl.u32 %v5285, 7
        %v5287 = vsub.s32 %v5284, %v5286
        %v5288 = vrot.slane %v5274, %v5287
        %v5289 = vcombine.low %v5281, %v5288
        %v5290 = vcombine.low %v4916, %v4917
        %v5291 = vcombine.low %v4918, %v4919
        %v5293 = vunpack.c.l.s4 1983009808
        %v5294 = vunpack.c.0.s8 %v5293
        %v5295 = vlaneseq
        %v5296 = vshrl.u32 %v5295, 7
        %v5297 = vsub.s32 %v5294, %v5296
        %v5298 = vrot.slane %v5290, %v5297
        %v5300 = vunpack.c.l.s4 1983009808
        %v5301 = vunpack.c.0.s8 %v5300
        %v5302 = vlaneseq
        %v5303 = vshrl.u32 %v5302, 7
        %v5304 = vsub.s32 %v5301, %v5303
        %v5305 = vrot.slane %v5291, %v5304
        %v5306 = vcombine.low %v5298, %v5305
        %v5307 = vcombine.low %v4920, %v4921
        %v5308 = vcombine.low %v4922, %v4923
        %v5310 = vunpack.c.l.s4 1983009808
        %v5311 = vunpack.c.0.s8 %v5310
        %v5312 = vlaneseq
        %v5313 = vshrl.u32 %v5312, 7
        %v5314 = vsub.s32 %v5311, %v5313
        %v5315 = vrot.slane %v5307, %v5314
        %v5317 = vunpack.c.l.s4 1983009808
        %v5318 = vunpack.c.0.s8 %v5317
        %v5319 = vlaneseq
        %v5320 = vshrl.u32 %v5319, 7
        %v5321 = vsub.s32 %v5318, %v5320
        %v5322 = vrot.slane %v5308, %v5321
        %v5323 = vcombine.low %v5315, %v5322
        %v5324 = vcombine.low %v4924, %v4925
        %v5325 = vcombine.low %v4926, %v4927
        %v5327 = vunpack.c.l.s4 1983009808
        %v5328 = vunpack.c.0.s8 %v5327
        %v5329 = vlaneseq
        %v5330 = vshrl.u32 %v5329, 7
        %v5331 = vsub.s32 %v5328, %v5330
        %v5332 = vrot.slane %v5324, %v5331
        %v5334 = vunpack.c.l.s4 1983009808
        %v5335 = vunpack.c.0.s8 %v5334
        %v5336 = vlaneseq
        %v5337 = vshrl.u32 %v5336, 7
        %v5338 = vsub.s32 %v5335, %v5337
        %v5339 = vrot.slane %v5325, %v5338
        %v5340 = vcombine.low %v5332, %v5339
        %v5341 = vcombine.low %v4928, %v4929
        %v5342 = vcombine.low %v4930, %v4931
        %v5344 = vunpack.c.l.s4 1983009808
        %v5345 = vunpack.c.0.s8 %v5344
        %v5346 = vlaneseq
        %v5347 = vshrl.u32 %v5346, 7
        %v5348 = vsub.s32 %v5345, %v5347
        %v5349 = vrot.slane %v5341, %v5348
        %v5351 = vunpack.c.l.s4 1983009808
        %v5352 = vunpack.c.0.s8 %v5351
        %v5353 = vlaneseq
        %v5354 = vshrl.u32 %v5353, 7
        %v5355 = vsub.s32 %v5352, %v5354
        %v5356 = vrot.slane %v5342, %v5355
        %v5357 = vcombine.low %v5349, %v5356
        %v5358 = vcombine.low %v4932, %v4933
        %v5359 = vcombine.low %v4934, %v4935
        %v5361 = vunpack.c.l.s4 1983009808
        %v5362 = vunpack.c.0.s8 %v5361
        %v5363 = vlaneseq
        %v5364 = vshrl.u32 %v5363, 7
        %v5365 = vsub.s32 %v5362, %v5364
        %v5366 = vrot.slane %v5358, %v5365
        %v5368 = vunpack.c.l.s4 1983009808
        %v5369 = vunpack.c.0.s8 %v5368
        %v5370 = vlaneseq
        %v5371 = vshrl.u32 %v5370, 7
        %v5372 = vsub.s32 %v5369, %v5371
        %v5373 = vrot.slane %v5359, %v5372
        %v5374 = vcombine.low %v5366, %v5373
        %v5375 = vcombine.low %v4936, %v4937
        %v5376 = vcombine.low %v4938, %v4939
        %v5378 = vunpack.c.l.s4 1983009808
        %v5379 = vunpack.c.0.s8 %v5378
        %v5380 = vlaneseq
        %v5381 = vshrl.u32 %v5380, 7
        %v5382 = vsub.s32 %v5379, %v5381
        %v5383 = vrot.slane %v5375, %v5382
        %v5385 = vunpack.c.l.s4 1983009808
        %v5386 = vunpack.c.0.s8 %v5385
        %v5387 = vlaneseq
        %v5388 = vshrl.u32 %v5387, 7
        %v5389 = vsub.s32 %v5386, %v5388
        %v5390 = vrot.slane %v5376, %v5389
        %v5391 = vcombine.low %v5383, %v5390
        %v5392 = vcombine.low %v4940, %v4941
        %v5393 = vcombine.low %v4942, %v4943
        %v5395 = vunpack.c.l.s4 1983009808
        %v5396 = vunpack.c.0.s8 %v5395
        %v5397 = vlaneseq
        %v5398 = vshrl.u32 %v5397, 7
        %v5399 = vsub.s32 %v5396, %v5398
        %v5400 = vrot.slane %v5392, %v5399
        %v5402 = vunpack.c.l.s4 1983009808
        %v5403 = vunpack.c.0.s8 %v5402
        %v5404 = vlaneseq
        %v5405 = vshrl.u32 %v5404, 7
        %v5406 = vsub.s32 %v5403, %v5405
        %v5407 = vrot.slane %v5393, %v5406
        %v5408 = vcombine.low %v5400, %v5407
        %v5409 = vcombine.low %v4944, %v4945
        %v5410 = vcombine.low %v4946, %v4947
        %v5412 = vunpack.c.l.s4 1983009808
        %v5413 = vunpack.c.0.s8 %v5412
        %v5414 = vlaneseq
        %v5415 = vshrl.u32 %v5414, 7
        %v5416 = vsub.s32 %v5413, %v5415
        %v5417 = vrot.slane %v5409, %v5416
        %v5419 = vunpack.c.l.s4 1983009808
        %v5420 = vunpack.c.0.s8 %v5419
        %v5421 = vlaneseq
        %v5422 = vshrl.u32 %v5421, 7
        %v5423 = vsub.s32 %v5420, %v5422
        %v5424 = vrot.slane %v5410, %v5423
        %v5425 = vcombine.low %v5417, %v5424
        %v5426 = vcombine.low %v4948, %v4949
        %v5427 = vcombine.low %v4950, %v4951
        %v5429 = vunpack.c.l.s4 1983009808
        %v5430 = vunpack.c.0.s8 %v5429
        %v5431 = vlaneseq
        %v5432 = vshrl.u32 %v5431, 7
        %v5433 = vsub.s32 %v5430, %v5432
        %v5434 = vrot.slane %v5426, %v5433
        %v5436 = vunpack.c.l.s4 1983009808
        %v5437 = vunpack.c.0.s8 %v5436
        %v5438 = vlaneseq
        %v5439 = vshrl.u32 %v5438, 7
        %v5440 = vsub.s32 %v5437, %v5439
        %v5441 = vrot.slane %v5427, %v5440
        %v5442 = vcombine.low %v5434, %v5441
        %v5443 = vcombine.low %v4952, %v4953
        %v5444 = vcombine.low %v4954, %v4955
        %v5446 = vunpack.c.l.s4 1983009808
        %v5447 = vunpack.c.0.s8 %v5446
        %v5448 = vlaneseq
        %v5449 = vshrl.u32 %v5448, 7
        %v5450 = vsub.s32 %v5447, %v5449
        %v5451 = vrot.slane %v5443, %v5450
        %v5453 = vunpack.c.l.s4 1983009808
        %v5454 = vunpack.c.0.s8 %v5453
        %v5455 = vlaneseq
        %v5456 = vshrl.u32 %v5455, 7
        %v5457 = vsub.s32 %v5454, %v5456
        %v5458 = vrot.slane %v5444, %v5457
        %v5459 = vcombine.low %v5451, %v5458
        %v5460 = vcombine.low %v4956, %v4957
        %v5461 = vcombine.low %v4958, %v4959
        %v5463 = vunpack.c.l.s4 1983009808
        %v5464 = vunpack.c.0.s8 %v5463
        %v5465 = vlaneseq
        %v5466 = vshrl.u32 %v5465, 7
        %v5467 = vsub.s32 %v5464, %v5466
        %v5468 = vrot.slane %v5460, %v5467
        %v5470 = vunpack.c.l.s4 1983009808
        %v5471 = vunpack.c.0.s8 %v5470
        %v5472 = vlaneseq
        %v5473 = vshrl.u32 %v5472, 7
        %v5474 = vsub.s32 %v5471, %v5473
        %v5475 = vrot.slane %v5461, %v5474
        %v5476 = vcombine.low %v5468, %v5475
        %v5477 = vcombine.low %v4960, %v4961
        %v5478 = vcombine.low %v4962, %v4963
        %v5480 = vunpack.c.l.s4 1983009808
        %v5481 = vunpack.c.0.s8 %v5480
        %v5482 = vlaneseq
        %v5483 = vshrl.u32 %v5482, 7
        %v5484 = vsub.s32 %v5481, %v5483
        %v5485 = vrot.slane %v5477, %v5484
        %v5487 = vunpack.c.l.s4 1983009808
        %v5488 = vunpack.c.0.s8 %v5487
        %v5489 = vlaneseq
        %v5490 = vshrl.u32 %v5489, 7
        %v5491 = vsub.s32 %v5488, %v5490
        %v5492 = vrot.slane %v5478, %v5491
        %v5493 = vcombine.low %v5485, %v5492
        %v5494 = vcombine.low %v4964, %v4965
        %v5495 = vcombine.low %v4966, %v4967
        %v5497 = vunpack.c.l.s4 1983009808
        %v5498 = vunpack.c.0.s8 %v5497
        %v5499 = vlaneseq
        %v5500 = vshrl.u32 %v5499, 7
        %v5501 = vsub.s32 %v5498, %v5500
        %v5502 = vrot.slane %v5494, %v5501
        %v5504 = vunpack.c.l.s4 1983009808
        %v5505 = vunpack.c.0.s8 %v5504
        %v5506 = vlaneseq
        %v5507 = vshrl.u32 %v5506, 7
        %v5508 = vsub.s32 %v5505, %v5507
        %v5509 = vrot.slane %v5495, %v5508
        %v5510 = vcombine.low %v5502, %v5509
        %v5511 = vcombine.low %v4968, %v4969
        %v5512 = vcombine.low %v4970, %v4971
        %v5514 = vunpack.c.l.s4 1983009808
        %v5515 = vunpack.c.0.s8 %v5514
        %v5516 = vlaneseq
        %v5517 = vshrl.u32 %v5516, 7
        %v5518 = vsub.s32 %v5515, %v5517
        %v5519 = vrot.slane %v5511, %v5518
        %v5521 = vunpack.c.l.s4 1983009808
        %v5522 = vunpack.c.0.s8 %v5521
        %v5523 = vlaneseq
        %v5524 = vshrl.u32 %v5523, 7
        %v5525 = vsub.s32 %v5522, %v5524
        %v5526 = vrot.slane %v5512, %v5525
        %v5527 = vcombine.low %v5519, %v5526
        %v5528 = vcombine.low %v4972, %v4973
        %v5529 = vcombine.low %v4974, %v4975
        %v5531 = vunpack.c.l.s4 1983009808
        %v5532 = vunpack.c.0.s8 %v5531
        %v5533 = vlaneseq
        %v5534 = vshrl.u32 %v5533, 7
        %v5535 = vsub.s32 %v5532, %v5534
        %v5536 = vrot.slane %v5528, %v5535
        %v5538 = vunpack.c.l.s4 1983009808
        %v5539 = vunpack.c.0.s8 %v5538
        %v5540 = vlaneseq
        %v5541 = vshrl.u32 %v5540, 7
        %v5542 = vsub.s32 %v5539, %v5541
        %v5543 = vrot.slane %v5529, %v5542
        %v5544 = vcombine.low %v5536, %v5543
        %v5545 = vcombine.low %v4976, %v4977
        %v5546 = vcombine.low %v4978, %v4979
        %v5548 = vunpack.c.l.s4 1983009808
        %v5549 = vunpack.c.0.s8 %v5548
        %v5550 = vlaneseq
        %v5551 = vshrl.u32 %v5550, 7
        %v5552 = vsub.s32 %v5549, %v5551
        %v5553 = vrot.slane %v5545, %v5552
        %v5555 = vunpack.c.l.s4 1983009808
        %v5556 = vunpack.c.0.s8 %v5555
        %v5557 = vlaneseq
        %v5558 = vshrl.u32 %v5557, 7
        %v5559 = vsub.s32 %v5556, %v5558
        %v5560 = vrot.slane %v5546, %v5559
        %v5561 = vcombine.low %v5553, %v5560
        %v5562 = vcombine.low %v4980, %v4981
        %v5563 = vcombine.low %v4982, %v4983
        %v5565 = vunpack.c.l.s4 1983009808
        %v5566 = vunpack.c.0.s8 %v5565
        %v5567 = vlaneseq
        %v5568 = vshrl.u32 %v5567, 7
        %v5569 = vsub.s32 %v5566, %v5568
        %v5570 = vrot.slane %v5562, %v5569
        %v5572 = vunpack.c.l.s4 1983009808
        %v5573 = vunpack.c.0.s8 %v5572
        %v5574 = vlaneseq
        %v5575 = vshrl.u32 %v5574, 7
        %v5576 = vsub.s32 %v5573, %v5575
        %v5577 = vrot.slane %v5563, %v5576
        %v5578 = vcombine.low %v5570, %v5577
        %v5579 = vcombine.low %v4984, %v4985
        %v5580 = vcombine.low %v4986, %v4987
        %v5582 = vunpack.c.l.s4 1983009808
        %v5583 = vunpack.c.0.s8 %v5582
        %v5584 = vlaneseq
        %v5585 = vshrl.u32 %v5584, 7
        %v5586 = vsub.s32 %v5583, %v5585
        %v5587 = vrot.slane %v5579, %v5586
        %v5589 = vunpack.c.l.s4 1983009808
        %v5590 = vunpack.c.0.s8 %v5589
        %v5591 = vlaneseq
        %v5592 = vshrl.u32 %v5591, 7
        %v5593 = vsub.s32 %v5590, %v5592
        %v5594 = vrot.slane %v5580, %v5593
        %v5595 = vcombine.low %v5587, %v5594
        %v5596 = vcombine.low %v4988, %v4989
        %v5597 = vcombine.low %v4990, %v4991
        %v5599 = vunpack.c.l.s4 1983009808
        %v5600 = vunpack.c.0.s8 %v5599
        %v5601 = vlaneseq
        %v5602 = vshrl.u32 %v5601, 7
        %v5603 = vsub.s32 %v5600, %v5602
        %v5604 = vrot.slane %v5596, %v5603
        %v5606 = vunpack.c.l.s4 1983009808
        %v5607 = vunpack.c.0.s8 %v5606
        %v5608 = vlaneseq
        %v5609 = vshrl.u32 %v5608, 7
        %v5610 = vsub.s32 %v5607, %v5609
        %v5611 = vrot.slane %v5597, %v5610
        %v5612 = vcombine.low %v5604, %v5611
        %v5613 = vcombine.low %v4992, %v4993
        %v5614 = vcombine.low %v4994, %v4995
        %v5616 = vunpack.c.l.s4 1983009808
        %v5617 = vunpack.c.0.s8 %v5616
        %v5618 = vlaneseq
        %v5619 = vshrl.u32 %v5618, 7
        %v5620 = vsub.s32 %v5617, %v5619
        %v5621 = vrot.slane %v5613, %v5620
        %v5623 = vunpack.c.l.s4 1983009808
        %v5624 = vunpack.c.0.s8 %v5623
        %v5625 = vlaneseq
        %v5626 = vshrl.u32 %v5625, 7
        %v5627 = vsub.s32 %v5624, %v5626
        %v5628 = vrot.slane %v5614, %v5627
        %v5629 = vcombine.low %v5621, %v5628
        %v5630 = vcombine.low %v4996, %v4997
        %v5631 = vcombine.low %v4998, %v4999
        %v5633 = vunpack.c.l.s4 1983009808
        %v5634 = vunpack.c.0.s8 %v5633
        %v5635 = vlaneseq
        %v5636 = vshrl.u32 %v5635, 7
        %v5637 = vsub.s32 %v5634, %v5636
        %v5638 = vrot.slane %v5630, %v5637
        %v5640 = vunpack.c.l.s4 1983009808
        %v5641 = vunpack.c.0.s8 %v5640
        %v5642 = vlaneseq
        %v5643 = vshrl.u32 %v5642, 7
        %v5644 = vsub.s32 %v5641, %v5643
        %v5645 = vrot.slane %v5631, %v5644
        %v5646 = vcombine.low %v5638, %v5645
        %v5647 = vcombine.low %v5000, %v5001
        %v5648 = vcombine.low %v5002, %v5003
        %v5650 = vunpack.c.l.s4 1983009808
        %v5651 = vunpack.c.0.s8 %v5650
        %v5652 = vlaneseq
        %v5653 = vshrl.u32 %v5652, 7
        %v5654 = vsub.s32 %v5651, %v5653
        %v5655 = vrot.slane %v5647, %v5654
        %v5657 = vunpack.c.l.s4 1983009808
        %v5658 = vunpack.c.0.s8 %v5657
        %v5659 = vlaneseq
        %v5660 = vshrl.u32 %v5659, 7
        %v5661 = vsub.s32 %v5658, %v5660
        %v5662 = vrot.slane %v5648, %v5661
        %v5663 = vcombine.low %v5655, %v5662
        %v5664 = vcombine.low %v5004, %v5005
        %v5665 = vcombine.low %v5006, %v5007
        %v5667 = vunpack.c.l.s4 1983009808
        %v5668 = vunpack.c.0.s8 %v5667
        %v5669 = vlaneseq
        %v5670 = vshrl.u32 %v5669, 7
        %v5671 = vsub.s32 %v5668, %v5670
        %v5672 = vrot.slane %v5664, %v5671
        %v5674 = vunpack.c.l.s4 1983009808
        %v5675 = vunpack.c.0.s8 %v5674
        %v5676 = vlaneseq
        %v5677 = vshrl.u32 %v5676, 7
        %v5678 = vsub.s32 %v5675, %v5677
        %v5679 = vrot.slane %v5665, %v5678
        %v5680 = vcombine.low %v5672, %v5679
        %v5681 = vcombine.low %v5008, %v5009
        %v5682 = vcombine.low %v5010, %v5011
        %v5684 = vunpack.c.l.s4 1983009808
        %v5685 = vunpack.c.0.s8 %v5684
        %v5686 = vlaneseq
        %v5687 = vshrl.u32 %v5686, 7
        %v5688 = vsub.s32 %v5685, %v5687
        %v5689 = vrot.slane %v5681, %v5688
        %v5691 = vunpack.c.l.s4 1983009808
        %v5692 = vunpack.c.0.s8 %v5691
        %v5693 = vlaneseq
        %v5694 = vshrl.u32 %v5693, 7
        %v5695 = vsub.s32 %v5692, %v5694
        %v5696 = vrot.slane %v5682, %v5695
        %v5697 = vcombine.low %v5689, %v5696
        %v5698 = vcombine.low %v5012, %v5013
        %v5699 = vcombine.low %v5014, %v5015
        %v5701 = vunpack.c.l.s4 1983009808
        %v5702 = vunpack.c.0.s8 %v5701
        %v5703 = vlaneseq
        %v5704 = vshrl.u32 %v5703, 7
        %v5705 = vsub.s32 %v5702, %v5704
        %v5706 = vrot.slane %v5698, %v5705
        %v5708 = vunpack.c.l.s4 1983009808
        %v5709 = vunpack.c.0.s8 %v5708
        %v5710 = vlaneseq
        %v5711 = vshrl.u32 %v5710, 7
        %v5712 = vsub.s32 %v5709, %v5711
        %v5713 = vrot.slane %v5699, %v5712
        %v5714 = vcombine.low %v5706, %v5713
        %v5715 = vcombine.low %v5016, %v5017
        %v5716 = vcombine.low %v5018, %v5019
        %v5718 = vunpack.c.l.s4 1983009808
        %v5719 = vunpack.c.0.s8 %v5718
        %v5720 = vlaneseq
        %v5721 = vshrl.u32 %v5720, 7
        %v5722 = vsub.s32 %v5719, %v5721
        %v5723 = vrot.slane %v5715, %v5722
        %v5725 = vunpack.c.l.s4 1983009808
        %v5726 = vunpack.c.0.s8 %v5725
        %v5727 = vlaneseq
        %v5728 = vshrl.u32 %v5727, 7
        %v5729 = vsub.s32 %v5726, %v5728
        %v5730 = vrot.slane %v5716, %v5729
        %v5731 = vcombine.low %v5723, %v5730
        %v5732 = vcombine.low %v5020, %v5021
        %v5733 = vcombine.low %v5022, %v5023
        %v5735 = vunpack.c.l.s4 1983009808
        %v5736 = vunpack.c.0.s8 %v5735
        %v5737 = vlaneseq
        %v5738 = vshrl.u32 %v5737, 7
        %v5739 = vsub.s32 %v5736, %v5738
        %v5740 = vrot.slane %v5732, %v5739
        %v5742 = vunpack.c.l.s4 1983009808
        %v5743 = vunpack.c.0.s8 %v5742
        %v5744 = vlaneseq
        %v5745 = vshrl.u32 %v5744, 7
        %v5746 = vsub.s32 %v5743, %v5745
        %v5747 = vrot.slane %v5733, %v5746
        %v5748 = vcombine.low %v5740, %v5747
        %v5749 = vcombine.low %v5024, %v5025
        %v5750 = vcombine.low %v5026, %v5027
        %v5752 = vunpack.c.l.s4 1983009808
        %v5753 = vunpack.c.0.s8 %v5752
        %v5754 = vlaneseq
        %v5755 = vshrl.u32 %v5754, 7
        %v5756 = vsub.s32 %v5753, %v5755
        %v5757 = vrot.slane %v5749, %v5756
        %v5759 = vunpack.c.l.s4 1983009808
        %v5760 = vunpack.c.0.s8 %v5759
        %v5761 = vlaneseq
        %v5762 = vshrl.u32 %v5761, 7
        %v5763 = vsub.s32 %v5760, %v5762
        %v5764 = vrot.slane %v5750, %v5763
        %v5765 = vcombine.low %v5757, %v5764
        %v5766 = vcombine.low %v5028, %v5029
        %v5767 = vcombine.low %v5030, %v5031
        %v5769 = vunpack.c.l.s4 1983009808
        %v5770 = vunpack.c.0.s8 %v5769
        %v5771 = vlaneseq
        %v5772 = vshrl.u32 %v5771, 7
        %v5773 = vsub.s32 %v5770, %v5772
        %v5774 = vrot.slane %v5766, %v5773
        %v5776 = vunpack.c.l.s4 1983009808
        %v5777 = vunpack.c.0.s8 %v5776
        %v5778 = vlaneseq
        %v5779 = vshrl.u32 %v5778, 7
        %v5780 = vsub.s32 %v5777, %v5779
        %v5781 = vrot.slane %v5767, %v5780
        %v5782 = vcombine.low %v5774, %v5781
        %v5783 = vcombine.low %v5032, %v5033
        %v5784 = vcombine.low %v5034, %v5035
        %v5786 = vunpack.c.l.s4 1983009808
        %v5787 = vunpack.c.0.s8 %v5786
        %v5788 = vlaneseq
        %v5789 = vshrl.u32 %v5788, 7
        %v5790 = vsub.s32 %v5787, %v5789
        %v5791 = vrot.slane %v5783, %v5790
        %v5793 = vunpack.c.l.s4 1983009808
        %v5794 = vunpack.c.0.s8 %v5793
        %v5795 = vlaneseq
        %v5796 = vshrl.u32 %v5795, 7
        %v5797 = vsub.s32 %v5794, %v5796
        %v5798 = vrot.slane %v5784, %v5797
        %v5799 = vcombine.low %v5791, %v5798
        %v5800 = vcombine.low %v5036, %v5037
        %v5801 = vcombine.low %v5038, %v5039
        %v5803 = vunpack.c.l.s4 1983009808
        %v5804 = vunpack.c.0.s8 %v5803
        %v5805 = vlaneseq
        %v5806 = vshrl.u32 %v5805, 7
        %v5807 = vsub.s32 %v5804, %v5806
        %v5808 = vrot.slane %v5800, %v5807
        %v5810 = vunpack.c.l.s4 1983009808
        %v5811 = vunpack.c.0.s8 %v5810
        %v5812 = vlaneseq
        %v5813 = vshrl.u32 %v5812, 7
        %v5814 = vsub.s32 %v5811, %v5813
        %v5815 = vrot.slane %v5801, %v5814
        %v5816 = vcombine.low %v5808, %v5815
        %v5854 = vadd.f32 %v4737, %v5204
        %v5855 = vadd.f32 %v4740, %v5221
        %v5856 = vadd.f32 %v4745, %v5238
        %v5857 = vadd.f32 %v4748, %v5255
        %v5858 = vadd.f32 %v4753, %v5272
        %v5859 = vadd.f32 %v4756, %v5289
        %v5860 = vadd.f32 %v4761, %v5306
        %v5861 = vadd.f32 %v4764, %v5323
        %v5862 = vadd.f32 %v4769, %v5340
        %v5863 = vadd.f32 %v4772, %v5357
        %v5864 = vadd.f32 %v4777, %v5374
        %v5865 = vadd.f32 %v4780, %v5391
        %v5866 = vadd.f32 %v4785, %v5408
        %v5867 = vadd.f32 %v4788, %v5425
        %v5868 = vadd.f32 %v4793, %v5442
        %v5869 = vadd.f32 %v4796, %v5459
        %v5870 = vadd.f32 %v4801, %v5476
        %v5871 = vadd.f32 %v4804, %v5493
        %v5872 = vadd.f32 %v4809, %v5510
        %v5873 = vadd.f32 %v4812, %v5527
        %v5874 = vadd.f32 %v4817, %v5544
        %v5875 = vadd.f32 %v4820, %v5561
        %v5876 = vadd.f32 %v4825, %v5578
        %v5877 = vadd.f32 %v4828, %v5595
        %v5878 = vadd.f32 %v4833, %v5612
        %v5879 = vadd.f32 %v4836, %v5629
        %v5880 = vadd.f32 %v4841, %v5646
        %v5881 = vadd.f32 %v4844, %v5663
        %v5882 = vadd.f32 %v4849, %v5680
        %v5883 = vadd.f32 %v4852, %v5697
        %v5884 = vadd.f32 %v4857, %v5714
        %v5885 = vadd.f32 %v4860, %v5731
        %v5886 = vadd.f32 %v4865, %v5748
        %v5887 = vadd.f32 %v4868, %v5765
        %v5888 = vadd.f32 %v4873, %v5782
        %v5889 = vadd.f32 %v4876, %v5799
        %v5890 = vadd.f32 %v4881, %v5816
        %v5891 = vmax.f32 %v5854, 0.0
        %v5892 = vmax.f32 %v5855, 0.0
        %v5893 = vmax.f32 %v5856, 0.0
        %v5894 = vmax.f32 %v5857, 0.0
        %v5895 = vmax.f32 %v5858, 0.0
        %v5896 = vmax.f32 %v5859, 0.0
        %v5897 = vmax.f32 %v5860, 0.0
        %v5898 = vmax.f32 %v5861, 0.0
        %v5899 = vmax.f32 %v5862, 0.0
        %v5900 = vmax.f32 %v5863, 0.0
        %v5901 = vmax.f32 %v5864, 0.0
        %v5902 = vmax.f32 %v5865, 0.0
        %v5903 = vmax.f32 %v5866, 0.0
        %v5904 = vmax.f32 %v5867, 0.0
        %v5905 = vmax.f32 %v5868, 0.0
        %v5906 = vmax.f32 %v5869, 0.0
        %v5907 = vmax.f32 %v5870, 0.0
        %v5908 = vmax.f32 %v5871, 0.0
        %v5909 = vmax.f32 %v5872, 0.0
        %v5910 = vmax.f32 %v5873, 0.0
        %v5911 = vmax.f32 %v5874, 0.0
        %v5912 = vmax.f32 %v5875, 0.0
        %v5913 = vmax.f32 %v5876, 0.0
        %v5914 = vmax.f32 %v5877, 0.0
        %v5915 = vmax.f32 %v5878, 0.0
        %v5916 = vmax.f32 %v5879, 0.0
        %v5917 = vmax.f32 %v5880, 0.0
        %v5918 = vmax.f32 %v5881, 0.0
        %v5919 = vmax.f32 %v5882, 0.0
        %v5920 = vmax.f32 %v5883, 0.0
        %v5921 = vmax.f32 %v5884, 0.0
        %v5922 = vmax.f32 %v5885, 0.0
        %v5923 = vmax.f32 %v5886, 0.0
        %v5924 = vmax.f32 %v5887, 0.0
        %v5925 = vmax.f32 %v5888, 0.0
        %v5926 = vmax.f32 %v5889, 0.0
        %v5927 = vmax.f32 %v5890, 0.0
        %v5965 = vcombine.high %v5891, %v5891
        %v5967 = vunpack.c.l.s4 1983009808
        %v5968 = vunpack.c.0.s8 %v5967
        %v5969 = vlaneseq
        %v5970 = vshrl.u32 %v5969, 7
        %v5971 = vsub.s32 %v5968, %v5970
        %v5972 = vrot.slane %v5891, %v5971
        %v5974 = vunpack.c.l.s4 1983009808
        %v5975 = vunpack.c.0.s8 %v5974
        %v5976 = vlaneseq
        %v5977 = vshrl.u32 %v5976, 7
        %v5978 = vsub.s32 %v5975, %v5977
        %v5979 = vrot.slane %v5965, %v5978
        %v5980 = vcombine.high %v5972, %v5972
        %v5981 = vcombine.high %v5979, %v5979
        %v5982 = vcombine.high %v5892, %v5892
        %v5984 = vunpack.c.l.s4 1983009808
        %v5985 = vunpack.c.0.s8 %v5984
        %v5986 = vlaneseq
        %v5987 = vshrl.u32 %v5986, 7
        %v5988 = vsub.s32 %v5985, %v5987
        %v5989 = vrot.slane %v5892, %v5988
        %v5991 = vunpack.c.l.s4 1983009808
        %v5992 = vunpack.c.0.s8 %v5991
        %v5993 = vlaneseq
        %v5994 = vshrl.u32 %v5993, 7
        %v5995 = vsub.s32 %v5992, %v5994
        %v5996 = vrot.slane %v5982, %v5995
        %v5997 = vcombine.high %v5989, %v5989
        %v5998 = vcombine.high %v5996, %v5996
        %v5999 = vcombine.high %v5893, %v5893
        %v6001 = vunpack.c.l.s4 1983009808
        %v6002 = vunpack.c.0.s8 %v6001
        %v6003 = vlaneseq
        %v6004 = vshrl.u32 %v6003, 7
        %v6005 = vsub.s32 %v6002, %v6004
        %v6006 = vrot.slane %v5893, %v6005
        %v6008 = vunpack.c.l.s4 1983009808
        %v6009 = vunpack.c.0.s8 %v6008
        %v6010 = vlaneseq
        %v6011 = vshrl.u32 %v6010, 7
        %v6012 = vsub.s32 %v6009, %v6011
        %v6013 = vrot.slane %v5999, %v6012
        %v6014 = vcombine.high %v6006, %v6006
        %v6015 = vcombine.high %v6013, %v6013
        %v6016 = vcombine.high %v5894, %v5894
        %v6018 = vunpack.c.l.s4 1983009808
        %v6019 = vunpack.c.0.s8 %v6018
        %v6020 = vlaneseq
        %v6021 = vshrl.u32 %v6020, 7
        %v6022 = vsub.s32 %v6019, %v6021
        %v6023 = vrot.slane %v5894, %v6022
        %v6025 = vunpack.c.l.s4 1983009808
        %v6026 = vunpack.c.0.s8 %v6025
        %v6027 = vlaneseq
        %v6028 = vshrl.u32 %v6027, 7
        %v6029 = vsub.s32 %v6026, %v6028
        %v6030 = vrot.slane %v6016, %v6029
        %v6031 = vcombine.high %v6023, %v6023
        %v6032 = vcombine.high %v6030, %v6030
        %v6033 = vcombine.high %v5895, %v5895
        %v6035 = vunpack.c.l.s4 1983009808
        %v6036 = vunpack.c.0.s8 %v6035
        %v6037 = vlaneseq
        %v6038 = vshrl.u32 %v6037, 7
        %v6039 = vsub.s32 %v6036, %v6038
        %v6040 = vrot.slane %v5895, %v6039
        %v6042 = vunpack.c.l.s4 1983009808
        %v6043 = vunpack.c.0.s8 %v6042
        %v6044 = vlaneseq
        %v6045 = vshrl.u32 %v6044, 7
        %v6046 = vsub.s32 %v6043, %v6045
        %v6047 = vrot.slane %v6033, %v6046
        %v6048 = vcombine.high %v6040, %v6040
        %v6049 = vcombine.high %v6047, %v6047
        %v6050 = vcombine.high %v5896, %v5896
        %v6052 = vunpack.c.l.s4 1983009808
        %v6053 = vunpack.c.0.s8 %v6052
        %v6054 = vlaneseq
        %v6055 = vshrl.u32 %v6054, 7
        %v6056 = vsub.s32 %v6053, %v6055
        %v6057 = vrot.slane %v5896, %v6056
        %v6059 = vunpack.c.l.s4 1983009808
        %v6060 = vunpack.c.0.s8 %v6059
        %v6061 = vlaneseq
        %v6062 = vshrl.u32 %v6061, 7
        %v6063 = vsub.s32 %v6060, %v6062
        %v6064 = vrot.slane %v6050, %v6063
        %v6065 = vcombine.high %v6057, %v6057
        %v6066 = vcombine.high %v6064, %v6064
        %v6067 = vcombine.high %v5897, %v5897
        %v6069 = vunpack.c.l.s4 1983009808
        %v6070 = vunpack.c.0.s8 %v6069
        %v6071 = vlaneseq
        %v6072 = vshrl.u32 %v6071, 7
        %v6073 = vsub.s32 %v6070, %v6072
        %v6074 = vrot.slane %v5897, %v6073
        %v6076 = vunpack.c.l.s4 1983009808
        %v6077 = vunpack.c.0.s8 %v6076
        %v6078 = vlaneseq
        %v6079 = vshrl.u32 %v6078, 7
        %v6080 = vsub.s32 %v6077, %v6079
        %v6081 = vrot.slane %v6067, %v6080
        %v6082 = vcombine.high %v6074, %v6074
        %v6083 = vcombine.high %v6081, %v6081
        %v6084 = vcombine.high %v5898, %v5898
        %v6086 = vunpack.c.l.s4 1983009808
        %v6087 = vunpack.c.0.s8 %v6086
        %v6088 = vlaneseq
        %v6089 = vshrl.u32 %v6088, 7
        %v6090 = vsub.s32 %v6087, %v6089
        %v6091 = vrot.slane %v5898, %v6090
        %v6093 = vunpack.c.l.s4 1983009808
        %v6094 = vunpack.c.0.s8 %v6093
        %v6095 = vlaneseq
        %v6096 = vshrl.u32 %v6095, 7
        %v6097 = vsub.s32 %v6094, %v6096
        %v6098 = vrot.slane %v6084, %v6097
        %v6099 = vcombine.high %v6091, %v6091
        %v6100 = vcombine.high %v6098, %v6098
        %v6101 = vcombine.high %v5899, %v5899
        %v6103 = vunpack.c.l.s4 1983009808
        %v6104 = vunpack.c.0.s8 %v6103
        %v6105 = vlaneseq
        %v6106 = vshrl.u32 %v6105, 7
        %v6107 = vsub.s32 %v6104, %v6106
        %v6108 = vrot.slane %v5899, %v6107
        %v6110 = vunpack.c.l.s4 1983009808
        %v6111 = vunpack.c.0.s8 %v6110
        %v6112 = vlaneseq
        %v6113 = vshrl.u32 %v6112, 7
        %v6114 = vsub.s32 %v6111, %v6113
        %v6115 = vrot.slane %v6101, %v6114
        %v6116 = vcombine.high %v6108, %v6108
        %v6117 = vcombine.high %v6115, %v6115
        %v6118 = vcombine.high %v5900, %v5900
        %v6120 = vunpack.c.l.s4 1983009808
        %v6121 = vunpack.c.0.s8 %v6120
        %v6122 = vlaneseq
        %v6123 = vshrl.u32 %v6122, 7
        %v6124 = vsub.s32 %v6121, %v6123
        %v6125 = vrot.slane %v5900, %v6124
        %v6127 = vunpack.c.l.s4 1983009808
        %v6128 = vunpack.c.0.s8 %v6127
        %v6129 = vlaneseq
        %v6130 = vshrl.u32 %v6129, 7
        %v6131 = vsub.s32 %v6128, %v6130
        %v6132 = vrot.slane %v6118, %v6131
        %v6133 = vcombine.high %v6125, %v6125
        %v6134 = vcombine.high %v6132, %v6132
        %v6135 = vcombine.high %v5901, %v5901
        %v6137 = vunpack.c.l.s4 1983009808
        %v6138 = vunpack.c.0.s8 %v6137
        %v6139 = vlaneseq
        %v6140 = vshrl.u32 %v6139, 7
        %v6141 = vsub.s32 %v6138, %v6140
        %v6142 = vrot.slane %v5901, %v6141
        %v6144 = vunpack.c.l.s4 1983009808
        %v6145 = vunpack.c.0.s8 %v6144
        %v6146 = vlaneseq
        %v6147 = vshrl.u32 %v6146, 7
        %v6148 = vsub.s32 %v6145, %v6147
        %v6149 = vrot.slane %v6135, %v6148
        %v6150 = vcombine.high %v6142, %v6142
        %v6151 = vcombine.high %v6149, %v6149
        %v6152 = vcombine.high %v5902, %v5902
        %v6154 = vunpack.c.l.s4 1983009808
        %v6155 = vunpack.c.0.s8 %v6154
        %v6156 = vlaneseq
        %v6157 = vshrl.u32 %v6156, 7
        %v6158 = vsub.s32 %v6155, %v6157
        %v6159 = vrot.slane %v5902, %v6158
        %v6161 = vunpack.c.l.s4 1983009808
        %v6162 = vunpack.c.0.s8 %v6161
        %v6163 = vlaneseq
        %v6164 = vshrl.u32 %v6163, 7
        %v6165 = vsub.s32 %v6162, %v6164
        %v6166 = vrot.slane %v6152, %v6165
        %v6167 = vcombine.high %v6159, %v6159
        %v6168 = vcombine.high %v6166, %v6166
        %v6169 = vcombine.high %v5903, %v5903
        %v6171 = vunpack.c.l.s4 1983009808
        %v6172 = vunpack.c.0.s8 %v6171
        %v6173 = vlaneseq
        %v6174 = vshrl.u32 %v6173, 7
        %v6175 = vsub.s32 %v6172, %v6174
        %v6176 = vrot.slane %v5903, %v6175
        %v6178 = vunpack.c.l.s4 1983009808
        %v6179 = vunpack.c.0.s8 %v6178
        %v6180 = vlaneseq
        %v6181 = vshrl.u32 %v6180, 7
        %v6182 = vsub.s32 %v6179, %v6181
        %v6183 = vrot.slane %v6169, %v6182
        %v6184 = vcombine.high %v6176, %v6176
        %v6185 = vcombine.high %v6183, %v6183
        %v6186 = vcombine.high %v5904, %v5904
        %v6188 = vunpack.c.l.s4 1983009808
        %v6189 = vunpack.c.0.s8 %v6188
        %v6190 = vlaneseq
        %v6191 = vshrl.u32 %v6190, 7
        %v6192 = vsub.s32 %v6189, %v6191
        %v6193 = vrot.slane %v5904, %v6192
        %v6195 = vunpack.c.l.s4 1983009808
        %v6196 = vunpack.c.0.s8 %v6195
        %v6197 = vlaneseq
        %v6198 = vshrl.u32 %v6197, 7
        %v6199 = vsub.s32 %v6196, %v6198
        %v6200 = vrot.slane %v6186, %v6199
        %v6201 = vcombine.high %v6193, %v6193
        %v6202 = vcombine.high %v6200, %v6200
        %v6203 = vcombine.high %v5905, %v5905
        %v6205 = vunpack.c.l.s4 1983009808
        %v6206 = vunpack.c.0.s8 %v6205
        %v6207 = vlaneseq
        %v6208 = vshrl.u32 %v6207, 7
        %v6209 = vsub.s32 %v6206, %v6208
        %v6210 = vrot.slane %v5905, %v6209
        %v6212 = vunpack.c.l.s4 1983009808
        %v6213 = vunpack.c.0.s8 %v6212
        %v6214 = vlaneseq
        %v6215 = vshrl.u32 %v6214, 7
        %v6216 = vsub.s32 %v6213, %v6215
        %v6217 = vrot.slane %v6203, %v6216
        %v6218 = vcombine.high %v6210, %v6210
        %v6219 = vcombine.high %v6217, %v6217
        %v6220 = vcombine.high %v5906, %v5906
        %v6222 = vunpack.c.l.s4 1983009808
        %v6223 = vunpack.c.0.s8 %v6222
        %v6224 = vlaneseq
        %v6225 = vshrl.u32 %v6224, 7
        %v6226 = vsub.s32 %v6223, %v6225
        %v6227 = vrot.slane %v5906, %v6226
        %v6229 = vunpack.c.l.s4 1983009808
        %v6230 = vunpack.c.0.s8 %v6229
        %v6231 = vlaneseq
        %v6232 = vshrl.u32 %v6231, 7
        %v6233 = vsub.s32 %v6230, %v6232
        %v6234 = vrot.slane %v6220, %v6233
        %v6235 = vcombine.high %v6227, %v6227
        %v6236 = vcombine.high %v6234, %v6234
        %v6237 = vcombine.high %v5907, %v5907
        %v6239 = vunpack.c.l.s4 1983009808
        %v6240 = vunpack.c.0.s8 %v6239
        %v6241 = vlaneseq
        %v6242 = vshrl.u32 %v6241, 7
        %v6243 = vsub.s32 %v6240, %v6242
        %v6244 = vrot.slane %v5907, %v6243
        %v6246 = vunpack.c.l.s4 1983009808
        %v6247 = vunpack.c.0.s8 %v6246
        %v6248 = vlaneseq
        %v6249 = vshrl.u32 %v6248, 7
        %v6250 = vsub.s32 %v6247, %v6249
        %v6251 = vrot.slane %v6237, %v6250
        %v6252 = vcombine.high %v6244, %v6244
        %v6253 = vcombine.high %v6251, %v6251
        %v6254 = vcombine.high %v5908, %v5908
        %v6256 = vunpack.c.l.s4 1983009808
        %v6257 = vunpack.c.0.s8 %v6256
        %v6258 = vlaneseq
        %v6259 = vshrl.u32 %v6258, 7
        %v6260 = vsub.s32 %v6257, %v6259
        %v6261 = vrot.slane %v5908, %v6260
        %v6263 = vunpack.c.l.s4 1983009808
        %v6264 = vunpack.c.0.s8 %v6263
        %v6265 = vlaneseq
        %v6266 = vshrl.u32 %v6265, 7
        %v6267 = vsub.s32 %v6264, %v6266
        %v6268 = vrot.slane %v6254, %v6267
        %v6269 = vcombine.high %v6261, %v6261
        %v6270 = vcombine.high %v6268, %v6268
        %v6271 = vcombine.high %v5909, %v5909
        %v6273 = vunpack.c.l.s4 1983009808
        %v6274 = vunpack.c.0.s8 %v6273
        %v6275 = vlaneseq
        %v6276 = vshrl.u32 %v6275, 7
        %v6277 = vsub.s32 %v6274, %v6276
        %v6278 = vrot.slane %v5909, %v6277
        %v6280 = vunpack.c.l.s4 1983009808
        %v6281 = vunpack.c.0.s8 %v6280
        %v6282 = vlaneseq
        %v6283 = vshrl.u32 %v6282, 7
        %v6284 = vsub.s32 %v6281, %v6283
        %v6285 = vrot.slane %v6271, %v6284
        %v6286 = vcombine.high %v6278, %v6278
        %v6287 = vcombine.high %v6285, %v6285
        %v6288 = vcombine.high %v5910, %v5910
        %v6290 = vunpack.c.l.s4 1983009808
        %v6291 = vunpack.c.0.s8 %v6290
        %v6292 = vlaneseq
        %v6293 = vshrl.u32 %v6292, 7
        %v6294 = vsub.s32 %v6291, %v6293
        %v6295 = vrot.slane %v5910, %v6294
        %v6297 = vunpack.c.l.s4 1983009808
        %v6298 = vunpack.c.0.s8 %v6297
        %v6299 = vlaneseq
        %v6300 = vshrl.u32 %v6299, 7
        %v6301 = vsub.s32 %v6298, %v6300
        %v6302 = vrot.slane %v6288, %v6301
        %v6303 = vcombine.high %v6295, %v6295
        %v6304 = vcombine.high %v6302, %v6302
        %v6305 = vcombine.high %v5911, %v5911
        %v6307 = vunpack.c.l.s4 1983009808
        %v6308 = vunpack.c.0.s8 %v6307
        %v6309 = vlaneseq
        %v6310 = vshrl.u32 %v6309, 7
        %v6311 = vsub.s32 %v6308, %v6310
        %v6312 = vrot.slane %v5911, %v6311
        %v6314 = vunpack.c.l.s4 1983009808
        %v6315 = vunpack.c.0.s8 %v6314
        %v6316 = vlaneseq
        %v6317 = vshrl.u32 %v6316, 7
        %v6318 = vsub.s32 %v6315, %v6317
        %v6319 = vrot.slane %v6305, %v6318
        %v6320 = vcombine.high %v6312, %v6312
        %v6321 = vcombine.high %v6319, %v6319
        %v6322 = vcombine.high %v5912, %v5912
        %v6324 = vunpack.c.l.s4 1983009808
        %v6325 = vunpack.c.0.s8 %v6324
        %v6326 = vlaneseq
        %v6327 = vshrl.u32 %v6326, 7
        %v6328 = vsub.s32 %v6325, %v6327
        %v6329 = vrot.slane %v5912, %v6328
        %v6331 = vunpack.c.l.s4 1983009808
        %v6332 = vunpack.c.0.s8 %v6331
        %v6333 = vlaneseq
        %v6334 = vshrl.u32 %v6333, 7
        %v6335 = vsub.s32 %v6332, %v6334
        %v6336 = vrot.slane %v6322, %v6335
        %v6337 = vcombine.high %v6329, %v6329
        %v6338 = vcombine.high %v6336, %v6336
        %v6339 = vcombine.high %v5913, %v5913
        %v6341 = vunpack.c.l.s4 1983009808
        %v6342 = vunpack.c.0.s8 %v6341
        %v6343 = vlaneseq
        %v6344 = vshrl.u32 %v6343, 7
        %v6345 = vsub.s32 %v6342, %v6344
        %v6346 = vrot.slane %v5913, %v6345
        %v6348 = vunpack.c.l.s4 1983009808
        %v6349 = vunpack.c.0.s8 %v6348
        %v6350 = vlaneseq
        %v6351 = vshrl.u32 %v6350, 7
        %v6352 = vsub.s32 %v6349, %v6351
        %v6353 = vrot.slane %v6339, %v6352
        %v6354 = vcombine.high %v6346, %v6346
        %v6355 = vcombine.high %v6353, %v6353
        %v6356 = vcombine.high %v5914, %v5914
        %v6358 = vunpack.c.l.s4 1983009808
        %v6359 = vunpack.c.0.s8 %v6358
        %v6360 = vlaneseq
        %v6361 = vshrl.u32 %v6360, 7
        %v6362 = vsub.s32 %v6359, %v6361
        %v6363 = vrot.slane %v5914, %v6362
        %v6365 = vunpack.c.l.s4 1983009808
        %v6366 = vunpack.c.0.s8 %v6365
        %v6367 = vlaneseq
        %v6368 = vshrl.u32 %v6367, 7
        %v6369 = vsub.s32 %v6366, %v6368
        %v6370 = vrot.slane %v6356, %v6369
        %v6371 = vcombine.high %v6363, %v6363
        %v6372 = vcombine.high %v6370, %v6370
        %v6373 = vcombine.high %v5915, %v5915
        %v6375 = vunpack.c.l.s4 1983009808
        %v6376 = vunpack.c.0.s8 %v6375
        %v6377 = vlaneseq
        %v6378 = vshrl.u32 %v6377, 7
        %v6379 = vsub.s32 %v6376, %v6378
        %v6380 = vrot.slane %v5915, %v6379
        %v6382 = vunpack.c.l.s4 1983009808
        %v6383 = vunpack.c.0.s8 %v6382
        %v6384 = vlaneseq
        %v6385 = vshrl.u32 %v6384, 7
        %v6386 = vsub.s32 %v6383, %v6385
        %v6387 = vrot.slane %v6373, %v6386
        %v6388 = vcombine.high %v6380, %v6380
        %v6389 = vcombine.high %v6387, %v6387
        %v6390 = vcombine.high %v5916, %v5916
        %v6392 = vunpack.c.l.s4 1983009808
        %v6393 = vunpack.c.0.s8 %v6392
        %v6394 = vlaneseq
        %v6395 = vshrl.u32 %v6394, 7
        %v6396 = vsub.s32 %v6393, %v6395
        %v6397 = vrot.slane %v5916, %v6396
        %v6399 = vunpack.c.l.s4 1983009808
        %v6400 = vunpack.c.0.s8 %v6399
        %v6401 = vlaneseq
        %v6402 = vshrl.u32 %v6401, 7
        %v6403 = vsub.s32 %v6400, %v6402
        %v6404 = vrot.slane %v6390, %v6403
        %v6405 = vcombine.high %v6397, %v6397
        %v6406 = vcombine.high %v6404, %v6404
        %v6407 = vcombine.high %v5917, %v5917
        %v6409 = vunpack.c.l.s4 1983009808
        %v6410 = vunpack.c.0.s8 %v6409
        %v6411 = vlaneseq
        %v6412 = vshrl.u32 %v6411, 7
        %v6413 = vsub.s32 %v6410, %v6412
        %v6414 = vrot.slane %v5917, %v6413
        %v6416 = vunpack.c.l.s4 1983009808
        %v6417 = vunpack.c.0.s8 %v6416
        %v6418 = vlaneseq
        %v6419 = vshrl.u32 %v6418, 7
        %v6420 = vsub.s32 %v6417, %v6419
        %v6421 = vrot.slane %v6407, %v6420
        %v6422 = vcombine.high %v6414, %v6414
        %v6423 = vcombine.high %v6421, %v6421
        %v6424 = vcombine.high %v5918, %v5918
        %v6426 = vunpack.c.l.s4 1983009808
        %v6427 = vunpack.c.0.s8 %v6426
        %v6428 = vlaneseq
        %v6429 = vshrl.u32 %v6428, 7
        %v6430 = vsub.s32 %v6427, %v6429
        %v6431 = vrot.slane %v5918, %v6430
        %v6433 = vunpack.c.l.s4 1983009808
        %v6434 = vunpack.c.0.s8 %v6433
        %v6435 = vlaneseq
        %v6436 = vshrl.u32 %v6435, 7
        %v6437 = vsub.s32 %v6434, %v6436
        %v6438 = vrot.slane %v6424, %v6437
        %v6439 = vcombine.high %v6431, %v6431
        %v6440 = vcombine.high %v6438, %v6438
        %v6441 = vcombine.high %v5919, %v5919
        %v6443 = vunpack.c.l.s4 1983009808
        %v6444 = vunpack.c.0.s8 %v6443
        %v6445 = vlaneseq
        %v6446 = vshrl.u32 %v6445, 7
        %v6447 = vsub.s32 %v6444, %v6446
        %v6448 = vrot.slane %v5919, %v6447
        %v6450 = vunpack.c.l.s4 1983009808
        %v6451 = vunpack.c.0.s8 %v6450
        %v6452 = vlaneseq
        %v6453 = vshrl.u32 %v6452, 7
        %v6454 = vsub.s32 %v6451, %v6453
        %v6455 = vrot.slane %v6441, %v6454
        %v6456 = vcombine.high %v6448, %v6448
        %v6457 = vcombine.high %v6455, %v6455
        %v6458 = vcombine.high %v5920, %v5920
        %v6460 = vunpack.c.l.s4 1983009808
        %v6461 = vunpack.c.0.s8 %v6460
        %v6462 = vlaneseq
        %v6463 = vshrl.u32 %v6462, 7
        %v6464 = vsub.s32 %v6461, %v6463
        %v6465 = vrot.slane %v5920, %v6464
        %v6467 = vunpack.c.l.s4 1983009808
        %v6468 = vunpack.c.0.s8 %v6467
        %v6469 = vlaneseq
        %v6470 = vshrl.u32 %v6469, 7
        %v6471 = vsub.s32 %v6468, %v6470
        %v6472 = vrot.slane %v6458, %v6471
        %v6473 = vcombine.high %v6465, %v6465
        %v6474 = vcombine.high %v6472, %v6472
        %v6475 = vcombine.high %v5921, %v5921
        %v6477 = vunpack.c.l.s4 1983009808
        %v6478 = vunpack.c.0.s8 %v6477
        %v6479 = vlaneseq
        %v6480 = vshrl.u32 %v6479, 7
        %v6481 = vsub.s32 %v6478, %v6480
        %v6482 = vrot.slane %v5921, %v6481
        %v6484 = vunpack.c.l.s4 1983009808
        %v6485 = vunpack.c.0.s8 %v6484
        %v6486 = vlaneseq
        %v6487 = vshrl.u32 %v6486, 7
        %v6488 = vsub.s32 %v6485, %v6487
        %v6489 = vrot.slane %v6475, %v6488
        %v6490 = vcombine.high %v6482, %v6482
        %v6491 = vcombine.high %v6489, %v6489
        %v6492 = vcombine.high %v5922, %v5922
        %v6494 = vunpack.c.l.s4 1983009808
        %v6495 = vunpack.c.0.s8 %v6494
        %v6496 = vlaneseq
        %v6497 = vshrl.u32 %v6496, 7
        %v6498 = vsub.s32 %v6495, %v6497
        %v6499 = vrot.slane %v5922, %v6498
        %v6501 = vunpack.c.l.s4 1983009808
        %v6502 = vunpack.c.0.s8 %v6501
        %v6503 = vlaneseq
        %v6504 = vshrl.u32 %v6503, 7
        %v6505 = vsub.s32 %v6502, %v6504
        %v6506 = vrot.slane %v6492, %v6505
        %v6507 = vcombine.high %v6499, %v6499
        %v6508 = vcombine.high %v6506, %v6506
        %v6509 = vcombine.high %v5923, %v5923
        %v6511 = vunpack.c.l.s4 1983009808
        %v6512 = vunpack.c.0.s8 %v6511
        %v6513 = vlaneseq
        %v6514 = vshrl.u32 %v6513, 7
        %v6515 = vsub.s32 %v6512, %v6514
        %v6516 = vrot.slane %v5923, %v6515
        %v6518 = vunpack.c.l.s4 1983009808
        %v6519 = vunpack.c.0.s8 %v6518
        %v6520 = vlaneseq
        %v6521 = vshrl.u32 %v6520, 7
        %v6522 = vsub.s32 %v6519, %v6521
        %v6523 = vrot.slane %v6509, %v6522
        %v6524 = vcombine.high %v6516, %v6516
        %v6525 = vcombine.high %v6523, %v6523
        %v6526 = vcombine.high %v5924, %v5924
        %v6528 = vunpack.c.l.s4 1983009808
        %v6529 = vunpack.c.0.s8 %v6528
        %v6530 = vlaneseq
        %v6531 = vshrl.u32 %v6530, 7
        %v6532 = vsub.s32 %v6529, %v6531
        %v6533 = vrot.slane %v5924, %v6532
        %v6535 = vunpack.c.l.s4 1983009808
        %v6536 = vunpack.c.0.s8 %v6535
        %v6537 = vlaneseq
        %v6538 = vshrl.u32 %v6537, 7
        %v6539 = vsub.s32 %v6536, %v6538
        %v6540 = vrot.slane %v6526, %v6539
        %v6541 = vcombine.high %v6533, %v6533
        %v6542 = vcombine.high %v6540, %v6540
        %v6543 = vcombine.high %v5925, %v5925
        %v6545 = vunpack.c.l.s4 1983009808
        %v6546 = vunpack.c.0.s8 %v6545
        %v6547 = vlaneseq
        %v6548 = vshrl.u32 %v6547, 7
        %v6549 = vsub.s32 %v6546, %v6548
        %v6550 = vrot.slane %v5925, %v6549
        %v6552 = vunpack.c.l.s4 1983009808
        %v6553 = vunpack.c.0.s8 %v6552
        %v6554 = vlaneseq
        %v6555 = vshrl.u32 %v6554, 7
        %v6556 = vsub.s32 %v6553, %v6555
        %v6557 = vrot.slane %v6543, %v6556
        %v6558 = vcombine.high %v6550, %v6550
        %v6559 = vcombine.high %v6557, %v6557
        %v6560 = vcombine.high %v5926, %v5926
        %v6562 = vunpack.c.l.s4 1983009808
        %v6563 = vunpack.c.0.s8 %v6562
        %v6564 = vlaneseq
        %v6565 = vshrl.u32 %v6564, 7
        %v6566 = vsub.s32 %v6563, %v6565
        %v6567 = vrot.slane %v5926, %v6566
        %v6569 = vunpack.c.l.s4 1983009808
        %v6570 = vunpack.c.0.s8 %v6569
        %v6571 = vlaneseq
        %v6572 = vshrl.u32 %v6571, 7
        %v6573 = vsub.s32 %v6570, %v6572
        %v6574 = vrot.slane %v6560, %v6573
        %v6575 = vcombine.high %v6567, %v6567
        %v6576 = vcombine.high %v6574, %v6574
        %v6578 = vunpack.c.l.s4 1983009808
        %v6579 = vunpack.c.0.s8 %v6578
        %v6580 = vlaneseq
        %v6581 = vshrl.u32 %v6580, 7
        %v6582 = vsub.s32 %v6579, %v6581
        %v6583 = vrot.slane %v5927, %v6582
        %v6584 = vcombine.low %v5980, %v5979
        %v6585 = vcombine.low %v5981, %v5989
        %v6587 = vunpack.c.l.s4 1983009808
        %v6588 = vunpack.c.0.s8 %v6587
        %v6589 = vlaneseq
        %v6590 = vshrl.u32 %v6589, 7
        %v6591 = vsub.s32 %v6588, %v6590
        %v6592 = vrot.slane %v6584, %v6591
        %v6594 = vunpack.c.l.s4 1983009808
        %v6595 = vunpack.c.0.s8 %v6594
        %v6596 = vlaneseq
        %v6597 = vshrl.u32 %v6596, 7
        %v6598 = vsub.s32 %v6595, %v6597
        %v6599 = vrot.slane %v6585, %v6598
        %v6600 = vcombine.low %v6592, %v6599
        %v6601 = vcombine.low %v5997, %v5996
        %v6602 = vcombine.low %v5998, %v6006
        %v6604 = vunpack.c.l.s4 1983009808
        %v6605 = vunpack.c.0.s8 %v6604
        %v6606 = vlaneseq
        %v6607 = vshrl.u32 %v6606, 7
        %v6608 = vsub.s32 %v6605, %v6607
        %v6609 = vrot.slane %v6601, %v6608
        %v6611 = vunpack.c.l.s4 1983009808
        %v6612 = vunpack.c.0.s8 %v6611
        %v6613 = vlaneseq
        %v6614 = vshrl.u32 %v6613, 7
        %v6615 = vsub.s32 %v6612, %v6614
        %v6616 = vrot.slane %v6602, %v6615
        %v6617 = vcombine.low %v6609, %v6616
        %v6619 = vunpack.c.l.s4 1983009808
        %v6620 = vunpack.c.0.s8 %v6619
        %v6621 = vlaneseq
        %v6622 = vshrl.u32 %v6621, 7
        %v6623 = vsub.s32 %v6620, %v6622
        %v6624 = vrot.slane %v6014, %v6623
        %v6625 = vcombine.low %v6013, %v6015
        %v6626 = vcombine.low %v6023, %v6031
        %v6628 = vunpack.c.l.s4 1983009808
        %v6629 = vunpack.c.0.s8 %v6628
        %v6630 = vlaneseq
        %v6631 = vshrl.u32 %v6630, 7
        %v6632 = vsub.s32 %v6629, %v6631
        %v6633 = vrot.slane %v6625, %v6632
        %v6635 = vunpack.c.l.s4 1983009808
        %v6636 = vunpack.c.0.s8 %v6635
        %v6637 = vlaneseq
        %v6638 = vshrl.u32 %v6637, 7
        %v6639 = vsub.s32 %v6636, %v6638
        %v6640 = vrot.slane %v6626, %v6639
        %v6641 = vcombine.low %v6633, %v6640
        %v6642 = vcombine.low %v6030, %v6032
        %v6643 = vcombine.low %v6040, %v6048
        %v6645 = vunpack.c.l.s4 1983009808
        %v6646 = vunpack.c.0.s8 %v6645
        %v6647 = vlaneseq
        %v6648 = vshrl.u32 %v6647, 7
        %v6649 = vsub.s32 %v6646, %v6648
        %v6650 = vrot.slane %v6642, %v6649
        %v6652 = vunpack.c.l.s4 1983009808
        %v6653 = vunpack.c.0.s8 %v6652
        %v6654 = vlaneseq
        %v6655 = vshrl.u32 %v6654, 7
        %v6656 = vsub.s32 %v6653, %v6655
        %v6657 = vrot.slane %v6643, %v6656
        %v6658 = vcombine.low %v6650, %v6657
        %v6660 = vunpack.c.l.s4 1983009808
        %v6661 = vunpack.c.0.s8 %v6660
        %v6662 = vlaneseq
        %v6663 = vshrl.u32 %v6662, 7
        %v6664 = vsub.s32 %v6661, %v6663
        %v6665 = vrot.slane %v6047, %v6664
        %v6666 = vcombine.low %v6049, %v6057
        %v6667 = vcombine.low %v6065, %v6064
        %v6669 = vunpack.c.l.s4 1983009808
        %v6670 = vunpack.c.0.s8 %v6669
        %v6671 = vlaneseq
        %v6672 = vshrl.u32 %v6671, 7
        %v6673 = vsub.s32 %v6670, %v6672
        %v6674 = vrot.slane %v6666, %v6673
        %v6676 = vunpack.c.l.s4 1983009808
        %v6677 = vunpack.c.0.s8 %v6676
        %v6678 = vlaneseq
        %v6679 = vshrl.u32 %v6678, 7
        %v6680 = vsub.s32 %v6677, %v6679
        %v6681 = vrot.slane %v6667, %v6680
        %v6682 = vcombine.low %v6674, %v6681
        %v6683 = vcombine.low %v6066, %v6074
        %v6684 = vcombine.low %v6082, %v6081
        %v6686 = vunpack.c.l.s4 1983009808
        %v6687 = vunpack.c.0.s8 %v6686
        %v6688 = vlaneseq
        %v6689 = vshrl.u32 %v6688, 7
        %v6690 = vsub.s32 %v6687, %v6689
        %v6691 = vrot.slane %v6683, %v6690
        %v6693 = vunpack.c.l.s4 1983009808
        %v6694 = vunpack.c.0.s8 %v6693
        %v6695 = vlaneseq
        %v6696 = vshrl.u32 %v6695, 7
        %v6697 = vsub.s32 %v6694, %v6696
        %v6698 = vrot.slane %v6684, %v6697
        %v6699 = vcombine.low %v6691, %v6698
        %v6701 = vunpack.c.l.s4 1983009808
        %v6702 = vunpack.c.0.s8 %v6701
        %v6703 = vlaneseq
        %v6704 = vshrl.u32 %v6703, 7
        %v6705 = vsub.s32 %v6702, %v6704
        %v6706 = vrot.slane %v6083, %v6705
        %v6707 = vcombine.low %v6091, %v6099
        %v6708 = vcombine.low %v6098, %v6100
        %v6710 = vunpack.c.l.s4 1983009808
        %v6711 = vunpack.c.0.s8 %v6710
        %v6712 = vlaneseq
        %v6713 = vshrl.u32 %v6712, 7
        %v6714 = vsub.s32 %v6711, %v6713
        %v6715 = vrot.slane %v6707, %v6714
        %v6717 = vunpack.c.l.s4 1983009808
        %v6718 = vunpack.c.0.s8 %v6717
        %v6719 = vlaneseq
        %v6720 = vshrl.u32 %v6719, 7
        %v6721 = vsub.s32 %v6718, %v6720
        %v6722 = vrot.slane %v6708, %v6721
        %v6723 = vcombine.low %v6715, %v6722
        %v6724 = vcombine.low %v6108, %v6116
        %v6725 = vcombine.low %v6115, %v6117
        %v6727 = vunpack.c.l.s4 1983009808
        %v6728 = vunpack.c.0.s8 %v6727
        %v6729 = vlaneseq
        %v6730 = vshrl.u32 %v6729, 7
        %v6731 = vsub.s32 %v6728, %v6730
        %v6732 = vrot.slane %v6724, %v6731
        %v6734 = vunpack.c.l.s4 1983009808
        %v6735 = vunpack.c.0.s8 %v6734
        %v6736 = vlaneseq
        %v6737 = vshrl.u32 %v6736, 7
        %v6738 = vsub.s32 %v6735, %v6737
        %v6739 = vrot.slane %v6725, %v6738
        %v6740 = vcombine.low %v6732, %v6739
        %v6742 = vunpack.c.l.s4 1983009808
        %v6743 = vunpack.c.0.s8 %v6742
        %v6744 = vlaneseq
        %v6745 = vshrl.u32 %v6744, 7
        %v6746 = vsub.s32 %v6743, %v6745
        %v6747 = vrot.slane %v6125, %v6746
        %v6748 = vcombine.low %v6133, %v6132
        %v6749 = vcombine.low %v6134, %v6142
        %v6751 = vunpack.c.l.s4 1983009808
        %v6752 = vunpack.c.0.s8 %v6751
        %v6753 = vlaneseq
        %v6754 = vshrl.u32 %v6753, 7
        %v6755 = vsub.s32 %v6752, %v6754
        %v6756 = vrot.slane %v6748, %v6755
        %v6758 = vunpack.c.l.s4 1983009808
        %v6759 = vunpack.c.0.s8 %v6758
        %v6760 = vlaneseq
        %v6761 = vshrl.u32 %v6760, 7
        %v6762 = vsub.s32 %v6759, %v6761
        %v6763 = vrot.slane %v6749, %v6762
        %v6764 = vcombine.low %v6756, %v6763
        %v6765 = vcombine.low %v6150, %v6149
        %v6766 = vcombine.low %v6151, %v6159
        %v6768 = vunpack.c.l.s4 1983009808
        %v6769 = vunpack.c.0.s8 %v6768
        %v6770 = vlaneseq
        %v6771 = vshrl.u32 %v6770, 7
        %v6772 = vsub.s32 %v6769, %v6771
        %v6773 = vrot.slane %v6765, %v6772
        %v6775 = vunpack.c.l.s4 1983009808
        %v6776 = vunpack.c.0.s8 %v6775
        %v6777 = vlaneseq
        %v6778 = vshrl.u32 %v6777, 7
        %v6779 = vsub.s32 %v6776, %v6778
        %v6780 = vrot.slane %v6766, %v6779
        %v6781 = vcombine.low %v6773, %v6780
        %v6783 = vunpack.c.l.s4 1983009808
        %v6784 = vunpack.c.0.s8 %v6783
        %v6785 = vlaneseq
        %v6786 = vshrl.u32 %v6785, 7
        %v6787 = vsub.s32 %v6784, %v6786
        %v6788 = vrot.slane %v6167, %v6787
        %v6789 = vcombine.low %v6166, %v6168
        %v6790 = vcombine.low %v6176, %v6184
        %v6792 = vunpack.c.l.s4 1983009808
        %v6793 = vunpack.c.0.s8 %v6792
        %v6794 = vlaneseq
        %v6795 = vshrl.u32 %v6794, 7
        %v6796 = vsub.s32 %v6793, %v6795
        %v6797 = vrot.slane %v6789, %v6796
        %v6799 = vunpack.c.l.s4 1983009808
        %v6800 = vunpack.c.0.s8 %v6799
        %v6801 = vlaneseq
        %v6802 = vshrl.u32 %v6801, 7
        %v6803 = vsub.s32 %v6800, %v6802
        %v6804 = vrot.slane %v6790, %v6803
        %v6805 = vcombine.low %v6797, %v6804
        %v6806 = vcombine.low %v6183, %v6185
        %v6807 = vcombine.low %v6193, %v6201
        %v6809 = vunpack.c.l.s4 1983009808
        %v6810 = vunpack.c.0.s8 %v6809
        %v6811 = vlaneseq
        %v6812 = vshrl.u32 %v6811, 7
        %v6813 = vsub.s32 %v6810, %v6812
        %v6814 = vrot.slane %v6806, %v6813
        %v6816 = vunpack.c.l.s4 1983009808
        %v6817 = vunpack.c.0.s8 %v6816
        %v6818 = vlaneseq
        %v6819 = vshrl.u32 %v6818, 7
        %v6820 = vsub.s32 %v6817, %v6819
        %v6821 = vrot.slane %v6807, %v6820
        %v6822 = vcombine.low %v6814, %v6821
        %v6824 = vunpack.c.l.s4 1983009808
        %v6825 = vunpack.c.0.s8 %v6824
        %v6826 = vlaneseq
        %v6827 = vshrl.u32 %v6826, 7
        %v6828 = vsub.s32 %v6825, %v6827
        %v6829 = vrot.slane %v6200, %v6828
        %v6830 = vcombine.low %v6202, %v6210
        %v6831 = vcombine.low %v6218, %v6217
        %v6833 = vunpack.c.l.s4 1983009808
        %v6834 = vunpack.c.0.s8 %v6833
        %v6835 = vlaneseq
        %v6836 = vshrl.u32 %v6835, 7
        %v6837 = vsub.s32 %v6834, %v6836
        %v6838 = vrot.slane %v6830, %v6837
        %v6840 = vunpack.c.l.s4 1983009808
        %v6841 = vunpack.c.0.s8 %v6840
        %v6842 = vlaneseq
        %v6843 = vshrl.u32 %v6842, 7
        %v6844 = vsub.s32 %v6841, %v6843
        %v6845 = vrot.slane %v6831, %v6844
        %v6846 = vcombine.low %v6838, %v6845
        %v6847 = vcombine.low %v6219, %v6227
        %v6848 = vcombine.low %v6235, %v6234
        %v6850 = vunpack.c.l.s4 1983009808
        %v6851 = vunpack.c.0.s8 %v6850
        %v6852 = vlaneseq
        %v6853 = vshrl.u32 %v6852, 7
        %v6854 = vsub.s32 %v6851, %v6853
        %v6855 = vrot.slane %v6847, %v6854
        %v6857 = vunpack.c.l.s4 1983009808
        %v6858 = vunpack.c.0.s8 %v6857
        %v6859 = vlaneseq
        %v6860 = vshrl.u32 %v6859, 7
        %v6861 = vsub.s32 %v6858, %v6860
        %v6862 = vrot.slane %v6848, %v6861
        %v6863 = vcombine.low %v6855, %v6862
        %v6865 = vunpack.c.l.s4 1983009808
        %v6866 = vunpack.c.0.s8 %v6865
        %v6867 = vlaneseq
        %v6868 = vshrl.u32 %v6867, 7
        %v6869 = vsub.s32 %v6866, %v6868
        %v6870 = vrot.slane %v6236, %v6869
        %v6871 = vcombine.low %v6244, %v6252
        %v6872 = vcombine.low %v6251, %v6253
        %v6874 = vunpack.c.l.s4 1983009808
        %v6875 = vunpack.c.0.s8 %v6874
        %v6876 = vlaneseq
        %v6877 = vshrl.u32 %v6876, 7
        %v6878 = vsub.s32 %v6875, %v6877
        %v6879 = vrot.slane %v6871, %v6878
        %v6881 = vunpack.c.l.s4 1983009808
        %v6882 = vunpack.c.0.s8 %v6881
        %v6883 = vlaneseq
        %v6884 = vshrl.u32 %v6883, 7
        %v6885 = vsub.s32 %v6882, %v6884
        %v6886 = vrot.slane %v6872, %v6885
        %v6887 = vcombine.low %v6879, %v6886
        %v6888 = vcombine.low %v6261, %v6269
        %v6889 = vcombine.low %v6268, %v6270
        %v6891 = vunpack.c.l.s4 1983009808
        %v6892 = vunpack.c.0.s8 %v6891
        %v6893 = vlaneseq
        %v6894 = vshrl.u32 %v6893, 7
        %v6895 = vsub.s32 %v6892, %v6894
        %v6896 = vrot.slane %v6888, %v6895
        %v6898 = vunpack.c.l.s4 1983009808
        %v6899 = vunpack.c.0.s8 %v6898
        %v6900 = vlaneseq
        %v6901 = vshrl.u32 %v6900, 7
        %v6902 = vsub.s32 %v6899, %v6901
        %v6903 = vrot.slane %v6889, %v6902
        %v6904 = vcombine.low %v6896, %v6903
        %v6906 = vunpack.c.l.s4 1983009808
        %v6907 = vunpack.c.0.s8 %v6906
        %v6908 = vlaneseq
        %v6909 = vshrl.u32 %v6908, 7
        %v6910 = vsub.s32 %v6907, %v6909
        %v6911 = vrot.slane %v6278, %v6910
        %v6912 = vcombine.low %v6286, %v6285
        %v6913 = vcombine.low %v6287, %v6295
        %v6915 = vunpack.c.l.s4 1983009808
        %v6916 = vunpack.c.0.s8 %v6915
        %v6917 = vlaneseq
        %v6918 = vshrl.u32 %v6917, 7
        %v6919 = vsub.s32 %v6916, %v6918
        %v6920 = vrot.slane %v6912, %v6919
        %v6922 = vunpack.c.l.s4 1983009808
        %v6923 = vunpack.c.0.s8 %v6922
        %v6924 = vlaneseq
        %v6925 = vshrl.u32 %v6924, 7
        %v6926 = vsub.s32 %v6923, %v6925
        %v6927 = vrot.slane %v6913, %v6926
        %v6928 = vcombine.low %v6920, %v6927
        %v6929 = vcombine.low %v6303, %v6302
        %v6930 = vcombine.low %v6304, %v6312
        %v6932 = vunpack.c.l.s4 1983009808
        %v6933 = vunpack.c.0.s8 %v6932
        %v6934 = vlaneseq
        %v6935 = vshrl.u32 %v6934, 7
        %v6936 = vsub.s32 %v6933, %v6935
        %v6937 = vrot.slane %v6929, %v6936
        %v6939 = vunpack.c.l.s4 1983009808
        %v6940 = vunpack.c.0.s8 %v6939
        %v6941 = vlaneseq
        %v6942 = vshrl.u32 %v6941, 7
        %v6943 = vsub.s32 %v6940, %v6942
        %v6944 = vrot.slane %v6930, %v6943
        %v6945 = vcombine.low %v6937, %v6944
        %v6947 = vunpack.c.l.s4 1983009808
        %v6948 = vunpack.c.0.s8 %v6947
        %v6949 = vlaneseq
        %v6950 = vshrl.u32 %v6949, 7
        %v6951 = vsub.s32 %v6948, %v6950
        %v6952 = vrot.slane %v6320, %v6951
        %v6953 = vcombine.low %v6319, %v6321
        %v6954 = vcombine.low %v6329, %v6337
        %v6956 = vunpack.c.l.s4 1983009808
        %v6957 = vunpack.c.0.s8 %v6956
        %v6958 = vlaneseq
        %v6959 = vshrl.u32 %v6958, 7
        %v6960 = vsub.s32 %v6957, %v6959
        %v6961 = vrot.slane %v6953, %v6960
        %v6963 = vunpack.c.l.s4 1983009808
        %v6964 = vunpack.c.0.s8 %v6963
        %v6965 = vlaneseq
        %v6966 = vshrl.u32 %v6965, 7
        %v6967 = vsub.s32 %v6964, %v6966
        %v6968 = vrot.slane %v6954, %v6967
        %v6969 = vcombine.low %v6961, %v6968
        %v6970 = vcombine.low %v6336, %v6338
        %v6971 = vcombine.low %v6346, %v6354
        %v6973 = vunpack.c.l.s4 1983009808
        %v6974 = vunpack.c.0.s8 %v6973
        %v6975 = vlaneseq
        %v6976 = vshrl.u32 %v6975, 7
        %v6977 = vsub.s32 %v6974, %v6976
        %v6978 = vrot.slane %v6970, %v6977
        %v6980 = vunpack.c.l.s4 1983009808
        %v6981 = vunpack.c.0.s8 %v6980
        %v6982 = vlaneseq
        %v6983 = vshrl.u32 %v6982, 7
        %v6984 = vsub.s32 %v6981, %v6983
        %v6985 = vrot.slane %v6971, %v6984
        %v6986 = vcombine.low %v6978, %v6985
        %v6988 = vunpack.c.l.s4 1983009808
        %v6989 = vunpack.c.0.s8 %v6988
        %v6990 = vlaneseq
        %v6991 = vshrl.u32 %v6990, 7
        %v6992 = vsub.s32 %v6989, %v6991
        %v6993 = vrot.slane %v6353, %v6992
        %v6994 = vcombine.low %v6355, %v6363
        %v6995 = vcombine.low %v6371, %v6370
        %v6997 = vunpack.c.l.s4 1983009808
        %v6998 = vunpack.c.0.s8 %v6997
        %v6999 = vlaneseq
        %v7000 = vshrl.u32 %v6999, 7
        %v7001 = vsub.s32 %v6998, %v7000
        %v7002 = vrot.slane %v6994, %v7001
        %v7004 = vunpack.c.l.s4 1983009808
        %v7005 = vunpack.c.0.s8 %v7004
        %v7006 = vlaneseq
        %v7007 = vshrl.u32 %v7006, 7
        %v7008 = vsub.s32 %v7005, %v7007
        %v7009 = vrot.slane %v6995, %v7008
        %v7010 = vcombine.low %v7002, %v7009
        %v7011 = vcombine.low %v6372, %v6380
        %v7012 = vcombine.low %v6388, %v6387
        %v7014 = vunpack.c.l.s4 1983009808
        %v7015 = vunpack.c.0.s8 %v7014
        %v7016 = vlaneseq
        %v7017 = vshrl.u32 %v7016, 7
        %v7018 = vsub.s32 %v7015, %v7017
        %v7019 = vrot.slane %v7011, %v7018
        %v7021 = vunpack.c.l.s4 1983009808
        %v7022 = vunpack.c.0.s8 %v7021
        %v7023 = vlaneseq
        %v7024 = vshrl.u32 %v7023, 7
        %v7025 = vsub.s32 %v7022, %v7024
        %v7026 = vrot.slane %v7012, %v7025
        %v7027 = vcombine.low %v7019, %v7026
        %v7029 = vunpack.c.l.s4 1983009808
        %v7030 = vunpack.c.0.s8 %v7029
        %v7031 = vlaneseq
        %v7032 = vshrl.u32 %v7031, 7
        %v7033 = vsub.s32 %v7030, %v7032
        %v7034 = vrot.slane %v6389, %v7033
        %v7035 = vcombine.low %v6397, %v6405
        %v7036 = vcombine.low %v6404, %v6406
        %v7038 = vunpack.c.l.s4 1983009808
        %v7039 = vunpack.c.0.s8 %v7038
        %v7040 = vlaneseq
        %v7041 = vshrl.u32 %v7040, 7
        %v7042 = vsub.s32 %v7039, %v7041
        %v7043 = vrot.slane %v7035, %v7042
        %v7045 = vunpack.c.l.s4 1983009808
        %v7046 = vunpack.c.0.s8 %v7045
        %v7047 = vlaneseq
        %v7048 = vshrl.u32 %v7047, 7
        %v7049 = vsub.s32 %v7046, %v7048
        %v7050 = vrot.slane %v7036, %v7049
        %v7051 = vcombine.low %v7043, %v7050
        %v7052 = vcombine.low %v6414, %v6422
        %v7053 = vcombine.low %v6421, %v6423
        %v7055 = vunpack.c.l.s4 1983009808
        %v7056 = vunpack.c.0.s8 %v7055
        %v7057 = vlaneseq
        %v7058 = vshrl.u32 %v7057, 7
        %v7059 = vsub.s32 %v7056, %v7058
        %v7060 = vrot.slane %v7052, %v7059
        %v7062 = vunpack.c.l.s4 1983009808
        %v7063 = vunpack.c.0.s8 %v7062
        %v7064 = vlaneseq
        %v7065 = vshrl.u32 %v7064, 7
        %v7066 = vsub.s32 %v7063, %v7065
        %v7067 = vrot.slane %v7053, %v7066
        %v7068 = vcombine.low %v7060, %v7067
        %v7070 = vunpack.c.l.s4 1983009808
        %v7071 = vunpack.c.0.s8 %v7070
        %v7072 = vlaneseq
        %v7073 = vshrl.u32 %v7072, 7
        %v7074 = vsub.s32 %v7071, %v7073
        %v7075 = vrot.slane %v6431, %v7074
        %v7076 = vcombine.low %v6439, %v6438
        %v7077 = vcombine.low %v6440, %v6448
        %v7079 = vunpack.c.l.s4 1983009808
        %v7080 = vunpack.c.0.s8 %v7079
        %v7081 = vlaneseq
        %v7082 = vshrl.u32 %v7081, 7
        %v7083 = vsub.s32 %v7080, %v7082
        %v7084 = vrot.slane %v7076, %v7083
        %v7086 = vunpack.c.l.s4 1983009808
        %v7087 = vunpack.c.0.s8 %v7086
        %v7088 = vlaneseq
        %v7089 = vshrl.u32 %v7088, 7
        %v7090 = vsub.s32 %v7087, %v7089
        %v7091 = vrot.slane %v7077, %v7090
        %v7092 = vcombine.low %v7084, %v7091
        %v7093 = vcombine.low %v6456, %v6455
        %v7094 = vcombine.low %v6457, %v6465
        %v7096 = vunpack.c.l.s4 1983009808
        %v7097 = vunpack.c.0.s8 %v7096
        %v7098 = vlaneseq
        %v7099 = vshrl.u32 %v7098, 7
        %v7100 = vsub.s32 %v7097, %v7099
        %v7101 = vrot.slane %v7093, %v7100
        %v7103 = vunpack.c.l.s4 1983009808
        %v7104 = vunpack.c.0.s8 %v7103
        %v7105 = vlaneseq
        %v7106 = vshrl.u32 %v7105, 7
        %v7107 = vsub.s32 %v7104, %v7106
        %v7108 = vrot.slane %v7094, %v7107
        %v7109 = vcombine.low %v7101, %v7108
        %v7111 = vunpack.c.l.s4 1983009808
        %v7112 = vunpack.c.0.s8 %v7111
        %v7113 = vlaneseq
        %v7114 = vshrl.u32 %v7113, 7
        %v7115 = vsub.s32 %v7112, %v7114
        %v7116 = vrot.slane %v6473, %v7115
        %v7117 = vcombine.low %v6472, %v6474
        %v7118 = vcombine.low %v6482, %v6490
        %v7120 = vunpack.c.l.s4 1983009808
        %v7121 = vunpack.c.0.s8 %v7120
        %v7122 = vlaneseq
        %v7123 = vshrl.u32 %v7122, 7
        %v7124 = vsub.s32 %v7121, %v7123
        %v7125 = vrot.slane %v7117, %v7124
        %v7127 = vunpack.c.l.s4 1983009808
        %v7128 = vunpack.c.0.s8 %v7127
        %v7129 = vlaneseq
        %v7130 = vshrl.u32 %v7129, 7
        %v7131 = vsub.s32 %v7128, %v7130
        %v7132 = vrot.slane %v7118, %v7131
        %v7133 = vcombine.low %v7125, %v7132
        %v7134 = vcombine.low %v6489, %v6491
        %v7135 = vcombine.low %v6499, %v6507
        %v7137 = vunpack.c.l.s4 1983009808
        %v7138 = vunpack.c.0.s8 %v7137
        %v7139 = vlaneseq
        %v7140 = vshrl.u32 %v7139, 7
        %v7141 = vsub.s32 %v7138, %v7140
        %v7142 = vrot.slane %v7134, %v7141
        %v7144 = vunpack.c.l.s4 1983009808
        %v7145 = vunpack.c.0.s8 %v7144
        %v7146 = vlaneseq
        %v7147 = vshrl.u32 %v7146, 7
        %v7148 = vsub.s32 %v7145, %v7147
        %v7149 = vrot.slane %v7135, %v7148
        %v7150 = vcombine.low %v7142, %v7149
        %v7152 = vunpack.c.l.s4 1983009808
        %v7153 = vunpack.c.0.s8 %v7152
        %v7154 = vlaneseq
        %v7155 = vshrl.u32 %v7154, 7
        %v7156 = vsub.s32 %v7153, %v7155
        %v7157 = vrot.slane %v6506, %v7156
        %v7158 = vcombine.low %v6508, %v6516
        %v7159 = vcombine.low %v6524, %v6523
        %v7161 = vunpack.c.l.s4 1983009808
        %v7162 = vunpack.c.0.s8 %v7161
        %v7163 = vlaneseq
        %v7164 = vshrl.u32 %v7163, 7
        %v7165 = vsub.s32 %v7162, %v7164
        %v7166 = vrot.slane %v7158, %v7165
        %v7168 = vunpack.c.l.s4 1983009808
        %v7169 = vunpack.c.0.s8 %v7168
        %v7170 = vlaneseq
        %v7171 = vshrl.u32 %v7170, 7
        %v7172 = vsub.s32 %v7169, %v7171
        %v7173 = vrot.slane %v7159, %v7172
        %v7174 = vcombine.low %v7166, %v7173
        %v7175 = vcombine.low %v6525, %v6533
        %v7176 = vcombine.low %v6541, %v6540
        %v7178 = vunpack.c.l.s4 1983009808
        %v7179 = vunpack.c.0.s8 %v7178
        %v7180 = vlaneseq
        %v7181 = vshrl.u32 %v7180, 7
        %v7182 = vsub.s32 %v7179, %v7181
        %v7183 = vrot.slane %v7175, %v7182
        %v7185 = vunpack.c.l.s4 1983009808
        %v7186 = vunpack.c.0.s8 %v7185
        %v7187 = vlaneseq
        %v7188 = vshrl.u32 %v7187, 7
        %v7189 = vsub.s32 %v7186, %v7188
        %v7190 = vrot.slane %v7176, %v7189
        %v7191 = vcombine.low %v7183, %v7190
        %v7193 = vunpack.c.l.s4 1983009808
        %v7194 = vunpack.c.0.s8 %v7193
        %v7195 = vlaneseq
        %v7196 = vshrl.u32 %v7195, 7
        %v7197 = vsub.s32 %v7194, %v7196
        %v7198 = vrot.slane %v6542, %v7197
        %v7199 = vcombine.low %v6550, %v6558
        %v7200 = vcombine.low %v6557, %v6559
        %v7202 = vunpack.c.l.s4 1983009808
        %v7203 = vunpack.c.0.s8 %v7202
        %v7204 = vlaneseq
        %v7205 = vshrl.u32 %v7204, 7
        %v7206 = vsub.s32 %v7203, %v7205
        %v7207 = vrot.slane %v7199, %v7206
        %v7209 = vunpack.c.l.s4 1983009808
        %v7210 = vunpack.c.0.s8 %v7209
        %v7211 = vlaneseq
        %v7212 = vshrl.u32 %v7211, 7
        %v7213 = vsub.s32 %v7210, %v7212
        %v7214 = vrot.slane %v7200, %v7213
        %v7215 = vcombine.low %v7207, %v7214
        %v7216 = vcombine.low %v6567, %v6575
        %v7217 = vcombine.low %v6574, %v6576
        %v7219 = vunpack.c.l.s4 1983009808
        %v7220 = vunpack.c.0.s8 %v7219
        %v7221 = vlaneseq
        %v7222 = vshrl.u32 %v7221, 7
        %v7223 = vsub.s32 %v7220, %v7222
        %v7224 = vrot.slane %v7216, %v7223
        %v7226 = vunpack.c.l.s4 1983009808
        %v7227 = vunpack.c.0.s8 %v7226
        %v7228 = vlaneseq
        %v7229 = vshrl.u32 %v7228, 7
        %v7230 = vsub.s32 %v7227, %v7229
        %v7231 = vrot.slane %v7217, %v7230
        %v7232 = vcombine.low %v7224, %v7231
        %v7234 = vunpack.c.l.s4 1983009808
        %v7235 = vunpack.c.0.s8 %v7234
        %v7236 = vlaneseq
        %v7237 = vshrl.u32 %v7236, 7
        %v7238 = vsub.s32 %v7235, %v7237
        %v7239 = vrot.slane %v6583, %v7238
        %7288 = vst [vmem:[%s271 - $0x1] sm:$0xfe] %v6600
        %7289 = vst [vmem:[%s271 + $0x7] sm:$0xff] %v6617
        %7290 = vst [vmem:[%s271 + $0xf] sm:$0x1] %v6624
        %7291 = vst [vmem:[%s271 + $0xf] sm:$0xfe] %v6641
        %7292 = vst [vmem:[%s271 + $0x17] sm:$0xff] %v6658
        %7293 = vst [vmem:[%s271 + $0x1f] sm:$0x1] %v6665
        %7294 = vst [vmem:[%s271 + $0x1f] sm:$0xfe] %v6682
        %7295 = vst [vmem:[%s271 + $0x27] sm:$0xff] %v6699
        %7296 = vst [vmem:[%s271 + $0x2f] sm:$0x1] %v6706
        %7297 = vst [vmem:[%s271 + $0x2f] sm:$0xfe] %v6723
        %7298 = vst [vmem:[%s271 + $0x37] sm:$0xff] %v6740
        %7299 = vst [vmem:[%s271 + $0x3f] sm:$0x1] %v6747
        %7300 = vst [vmem:[%s271 + $0x3f] sm:$0xfe] %v6764
        %7301 = vst [vmem:[%s271 + $0x47] sm:$0xff] %v6781
        %7302 = vst [vmem:[%s271 + $0x4f] sm:$0x1] %v6788
        %7303 = vst [vmem:[%s271 + $0x4f] sm:$0xfe] %v6805
        %7304 = vst [vmem:[%s271 + $0x57] sm:$0xff] %v6822
        %7305 = vst [vmem:[%s271 + $0x5f] sm:$0x1] %v6829
        %7306 = vst [vmem:[%s271 + $0x5f] sm:$0xfe] %v6846
        %7307 = vst [vmem:[%s271 + $0x67] sm:$0xff] %v6863
        %7308 = vst [vmem:[%s271 + $0x6f] sm:$0x1] %v6870
        %7309 = vst [vmem:[%s271 + $0x6f] sm:$0xfe] %v6887
        %7310 = vst [vmem:[%s271 + $0x77] sm:$0xff] %v6904
        %7311 = vst [vmem:[%s271 + $0x7f] sm:$0x1] %v6911
        %7312 = vst [vmem:[%s271 + $0x7f] sm:$0xfe] %v6928
        %7313 = vst [vmem:[%s271 + $0x87] sm:$0xff] %v6945
        %7314 = vst [vmem:[%s271 + $0x8f] sm:$0x1] %v6952
        %7315 = vst [vmem:[%s271 + $0x8f] sm:$0xfe] %v6969
        %7316 = vst [vmem:[%s271 + $0x97] sm:$0xff] %v6986
        %7317 = vst [vmem:[%s271 + $0x9f] sm:$0x1] %v6993
        %7318 = vst [vmem:[%s271 + $0x9f] sm:$0xfe] %v7010
        %7319 = vst [vmem:[%s271 + $0xa7] sm:$0xff] %v7027
        %7320 = vst [vmem:[%s271 + $0xaf] sm:$0x1] %v7034
        %7321 = vst [vmem:[%s271 + $0xaf] sm:$0xfe] %v7051
        %7322 = vst [vmem:[%s271 + $0xb7] sm:$0xff] %v7068
        %7323 = vst [vmem:[%s271 + $0xbf] sm:$0x1] %v7075
        %7324 = vst [vmem:[%s271 + $0xbf] sm:$0xfe] %v7092
        %7325 = vst [vmem:[%s271 + $0xc7] sm:$0xff] %v7109
        %7326 = vst [vmem:[%s271 + $0xcf] sm:$0x1] %v7116
        %7327 = vst [vmem:[%s271 + $0xcf] sm:$0xfe] %v7133
        %7328 = vst [vmem:[%s271 + $0xd7] sm:$0xff] %v7150
        %7329 = vst [vmem:[%s271 + $0xdf] sm:$0x1] %v7157
        %7330 = vst [vmem:[%s271 + $0xdf] sm:$0xfe] %v7174
        %7331 = vst [vmem:[%s271 + $0xe7] sm:$0xff] %v7191
        %7332 = vst [vmem:[%s271 + $0xef] sm:$0x1] %v7198
        %7333 = vst [vmem:[%s271 + $0xef] sm:$0xfe] %v7215
        %7334 = vst [vmem:[%s271 + $0xf7] sm:$0xff] %v7232
        %7335 = vst [vmem:[%s271 + $0xff] sm:$0x1] %v7239
        %s7336 = sand.u32 %s181, 1
        %s7337 = scalar_lea.sflag [#allocation3], %s7336
        %s7338 = sand.u32 %s181, 1
        %s7339 = smul.addr %s7338, 256
        %s7340 = scalar_lea.vmem [#allocation2], %s7339
        // Predicated region
        $region49: #{tpu_custom_call.1} parent=47 // pred_check
          %p7341 = pneg %p191
        $region50: #{tpu_custom_call.1} parent=47 // pred_check_branch
          %7343 = sbr.rel (%p7341) target = $region52
        $region51: #{tpu_custom_call.1} parent=47 // pred_region
          %s7345 = ssub.s32 4096, 4096
          %7346 = vsyncadd %s7337, %s7345
          %s7347 = smul.addr %s21, 32
          %s7348 = smul.addr %s7347, 128
          %s7349 = scalar_lea.hbm %s7, %s7348
          %s7350 = sshll.u32 %s7340, 4
          %s7351 = int_to_ptr.vmem [resolvable:$true] %s7350
          %7356 = dma.vmem_to_hbm [thread:$0]  %s7351, 4096, %s7349, %s7337, 128, 128, 8
        $region52: #{tpu_custom_call.1} parent=47 // pred_fallthru
          _
      $region48: #{tpu_custom_call.1} parent=5 // pred_fallthru
        _
      %p7357 = scmp.le.s32.totalorder 2, %s16
      // Predicated region
      $region53: #{tpu_custom_call.1} parent=5 // pred_check
        %p7358 = pneg %p7357
      $region54: #{tpu_custom_call.1} parent=5 // pred_check_branch
        %7360 = sbr.rel (%p7358) target = $region56
      $region55: #{tpu_custom_call.1} parent=5 // pred_region
        %s7361 = ssub.s32 %s16, 2
        // Predicated region
        $region57: #{tpu_custom_call.1} parent=55 // pred_check
          %p7362 = pneg %p197
        $region58: #{tpu_custom_call.1} parent=55 // pred_check_branch
          %7364 = sbr.rel (%p7362) target = $region60
        $region59: #{tpu_custom_call.1} parent=55 // pred_region
          %s7365 = sand.u32 %s182, 1
          %s7366 = scalar_lea.sflag [#allocation3], %s7365
          %s7367 = sand.u32 %s182, 1
          %s7368 = smul.addr %s7367, 256
          %s7369 = scalar_lea.vmem [#allocation2], %s7368
          %7370 = dma.done %s7366, 4096
        $region60: #{tpu_custom_call.1} parent=55 // pred_fallthru
          _
      $region56: #{tpu_custom_call.1} parent=5 // pred_fallthru
        _
    $region6: #{tpu_custom_call.1} parent=1 // loop_footer
      %s20 = sadd.s32 1, %s16
    $region7: #{tpu_custom_call.1} parent=1 // loop_footer_branch
      %15 = sbr.rel target = $region3
    $region8: #{tpu_custom_call.1} parent=1 // loop_exit
      _
    %7371 = vsyncpa [#allocation3], 1
    %s7372 = scalar_lea.sflag [#allocation3], 1
    %7373 = vsyncpa %s7372, 1

</llo_original>
